<compile_context>
chip_gen: v5e
topology: v5e:2x2
jax: 0.10.0
libtpu: 0.0.40
codegen_flags: <defaults>
</compile_context>

<pallas_src>
import functools

import jax
import jax.numpy as jnp
from jax import lax
from jax.experimental import pallas as pl
from jax.experimental.pallas import tpu as pltpu

# bf16 matmul operands (f32 accumulation) -- native on the MXU of v5e/v6e/v7x.
MATMUL_DTYPE = jnp.bfloat16


# ----------------------------- kernel -----------------------------------------

def _fused_mha_kernel(lm_ref, gr_ref, wq_ref, bq_ref, wk_ref, bk_ref,
                      wv_ref, bv_ref, wo_ref, bo_ref, o_ref, *, num_heads):
    """One query-row tile: QKV proj -> per-head softmax(QK^T)V -> out proj."""
    mm = MATMUL_DTYPE
    lm = lm_ref[...].astype(mm)                      # [tm, D]
    gr = gr_ref[...].astype(mm)                      # [Nk, D]

    # Full-width projections (output dim D fills the MXU; f32 accumulate).
    q = jnp.dot(lm, wq_ref[...].astype(mm),
                preferred_element_type=jnp.float32) + bq_ref[...]     # [tm, D]
    k = jnp.dot(gr, wk_ref[...].astype(mm),
                preferred_element_type=jnp.float32) + bk_ref[...]     # [Nk, D]
    v = jnp.dot(gr, wv_ref[...].astype(mm),
                preferred_element_type=jnp.float32) + bv_ref[...]     # [Nk, D]

    d = q.shape[-1]
    dh = d // num_heads

    ctx_heads = []
    for h in range(num_heads):                       # unrolled; 128-lane-aligned slices
        sl = slice(h * dh, (h + 1) * dh)
        qh = q[:, sl].astype(mm)                     # [tm, dh]
        kh = k[:, sl].astype(mm)                     # [Nk, dh]
        vh = v[:, sl].astype(mm)                     # [Nk, dh]

        # attention_scores = Q_h @ K_h^T  (reference applies no 1/sqrt(dh) scale)
        scores = lax.dot_general(qh, kh, (((1,), (1,)), ((), ())),
                                 preferred_element_type=jnp.float32)  # [tm, Nk]
        m = jnp.max(scores, axis=-1, keepdims=True)
        e = jnp.exp(scores - m)
        l = jnp.sum(e, axis=-1, keepdims=True)
        ctx = jnp.dot(e.astype(mm), vh,
                      preferred_element_type=jnp.float32)             # [tm, dh]
        # Deferred softmax normalization: EUP reciprocal + small VPU multiply
        # instead of a [tm, Nk] divide.
        ctx = ctx * pl.reciprocal(l, approx=True)
        ctx_heads.append(ctx.astype(mm))

    # Concatenate heads (lane-aligned) and do one big out-projection matmul.
    ctx_full = jnp.concatenate(ctx_heads, axis=-1)                    # [tm, D]
    out = jnp.dot(ctx_full, wo_ref[...].astype(mm),
                  preferred_element_type=jnp.float32) + bo_ref[...]
    o_ref[...] = out.astype(o_ref.dtype)


# ----------------------------- wrapper -----------------------------------------

def _pick_row_tile(n):
    """Largest row tile <= 256 that divides n and is a multiple of 8, leaving
    >= 2 tiles when the sequence allows it (so v7x can shard the parallel axis
    across both TensorCores).  Falls back to the full length for tiny/odd n."""
    if n % 8 == 0 and n >= 16:
        cap = min(256, n // 2)
        for tm in range(cap - cap % 8, 7, -8):
            if n % tm == 0:
                return tm
    return n


def fused_mha(lm, gr, wq, bq, wk, bk, wv, bv, wo, bo, *, num_heads, tm):
    n_q, d = lm.shape
    n_k = gr.shape[0]
    x_spec = pl.BlockSpec((tm, d), lambda i: (i, 0))
    g_spec = pl.BlockSpec((n_k, d), lambda i: (0, 0))
    w_spec = pl.BlockSpec((d, d), lambda i: (0, 0))
    b_spec = pl.BlockSpec((1, d), lambda i: (0, 0))
    kernel = functools.partial(_fused_mha_kernel, num_heads=num_heads)
    return pl.pallas_call(
        kernel,
        out_shape=jax.ShapeDtypeStruct((n_q, d), lm.dtype),
        grid=(n_q // tm,),
        in_specs=[x_spec, g_spec,
                  w_spec, b_spec, w_spec, b_spec, w_spec, b_spec,
                  w_spec, b_spec],
        out_specs=pl.BlockSpec((tm, d), lambda i: (i, 0)),
        compiler_params=pltpu.CompilerParams(
            dimension_semantics=("parallel",),
            vmem_limit_bytes=48 * 1024 * 1024),
    )(lm, gr,
      wq, bq.reshape(1, d), wk, bk.reshape(1, d),
      wv, bv.reshape(1, d), wo, bo.reshape(1, d))


@functools.partial(jax.jit, static_argnames=("num_heads",))
def multi_head_attention(params, lm_output, graph_output, *, num_heads):
    n_q, d = lm_output.shape
    assert d % num_heads == 0
    # TODO(synk): for long key sequences, tile K/V inside the body (flash-style
    # online softmax) and hoist the K/V projection out of the per-row-tile
    # recompute; at the target sizes the whole problem is VMEM-resident so
    # full-length K/V per grid step is cheapest.
    tm = _pick_row_tile(n_q)
    return fused_mha(lm_output, graph_output,
                     params["wq"], params["bq"],
                     params["wk"], params["bk"],
                     params["wv"], params["bv"],
                     params["wo"], params["bo"],
                     num_heads=num_heads, tm=tm)


# ----------------------------- params / reference ------------------------------

def init_params(key, hidden_dim):
    """PyTorch nn.Linear default init; weights stored pre-transposed [in, out]."""
    ks = jax.random.split(key, 8)
    bound = 1.0 / (hidden_dim ** 0.5)

    def w(k):
        return jax.random.uniform(k, (hidden_dim, hidden_dim), jnp.float32,
                                  -bound, bound)

    def b(k):
        return jax.random.uniform(k, (hidden_dim,), jnp.float32, -bound, bound)

    return {"wq": w(ks[0]), "bq": b(ks[1]),
            "wk": w(ks[2]), "bk": b(ks[3]),
            "wv": w(ks[4]), "bv": b(ks[5]),
            "wo": w(ks[6]), "bo": b(ks[7])}


def reference_mha(params, lm, gr, num_heads):
    """Pure-JAX reproduction of the PyTorch forward (for correctness check)."""
    d = lm.shape[1]
    dh = d // num_heads
    hp = jax.lax.Precision.HIGHEST
    q = jnp.dot(lm, params["wq"], precision=hp) + params["bq"]
    k = jnp.dot(gr, params["wk"], precision=hp) + params["bk"]
    v = jnp.dot(gr, params["wv"], precision=hp) + params["bv"]

    def split(x):  # transpose_for_scores
        return x.reshape(-1, num_heads, dh).transpose(1, 0, 2)

    qh, kh, vh = split(q), split(k), split(v)
    scores = jnp.einsum("hqd,hkd->hqk", qh, kh, precision=hp)   # no 1/sqrt(dh)
    probs = jax.nn.softmax(scores, axis=-1)
    ctx = jnp.einsum("hqk,hkd->hqd", probs, vh, precision=hp)
    ctx = ctx.transpose(1, 0, 2).reshape(-1, d)
    return jnp.dot(ctx, params["wo"], precision=hp) + params["bo"]


# ----------------------------- main --------------------------------------------

if __name__ == "__main__":
    HIDDEN_DIM = 512     # hidden_dim
    NUM_HEADS = 4        # -> head_dim = 128 (lane-aligned)
    SEQ = 128            # number of (flattened) tokens fed to the attention

    key = jax.random.PRNGKey(0)
    k_par, k_lm, k_gr = jax.random.split(key, 3)
    params = init_params(k_par, HIDDEN_DIM)
    lm_output = jax.random.normal(k_lm, (SEQ, HIDDEN_DIM), jnp.float32)
    graph_output = jax.random.normal(k_gr, (SEQ, HIDDEN_DIM), jnp.float32)

    out = multi_head_attention(params, lm_output, graph_output,
                               num_heads=NUM_HEADS)
    jax.block_until_ready(out)
    assert out.shape == (SEQ, HIDDEN_DIM)
    assert out.dtype == jnp.float32

    ref = reference_mha(params, lm_output, graph_output, NUM_HEADS)
    err = float(jnp.max(jnp.abs(out - ref)))
    # Tolerance loosened for bf16 matmul operands (f32 accumulation / softmax);
    # a genuine structural bug produces errors >> 1e-1 at these value scales.
    assert err < 8e-2, f"max abs error vs reference: {err}"
    print("KERNEL_OK")
</pallas_src>

<mosaic_0001>
module attributes {stable_mosaic.version = 11 : i64} {
  func.func @_fused_mha_kernel(%arg0: i32, %arg1: memref<64x512xf32, #tpu.memory_space<vmem>>, %arg2: memref<128x512xf32, #tpu.memory_space<vmem>>, %arg3: memref<512x512xf32, #tpu.memory_space<vmem>>, %arg4: memref<1x512xf32, #tpu.memory_space<vmem>>, %arg5: memref<512x512xf32, #tpu.memory_space<vmem>>, %arg6: memref<1x512xf32, #tpu.memory_space<vmem>>, %arg7: memref<512x512xf32, #tpu.memory_space<vmem>>, %arg8: memref<1x512xf32, #tpu.memory_space<vmem>>, %arg9: memref<512x512xf32, #tpu.memory_space<vmem>>, %arg10: memref<1x512xf32, #tpu.memory_space<vmem>>, %arg11: memref<64x512xf32, #tpu.memory_space<vmem>>) attributes {dimension_semantics = [#tpu.dimension_semantics<parallel>], iteration_bounds = array<i64: 2>, scalar_prefetch = 0 : i64, scratch_operands = 0 : i64, tpu.core_type = #tpu.core_type<tc>, window_params = [{transform_indices = @transform_0, window_bounds = array<i64: 64, 512>}, {pipeline_mode = #tpu.pipeline_mode<synchronous>, transform_indices = @transform_1, window_bounds = array<i64: 128, 512>}, {pipeline_mode = #tpu.pipeline_mode<synchronous>, transform_indices = @transform_2, window_bounds = array<i64: 512, 512>}, {pipeline_mode = #tpu.pipeline_mode<synchronous>, transform_indices = @transform_3, window_bounds = array<i64: 1, 512>}, {pipeline_mode = #tpu.pipeline_mode<synchronous>, transform_indices = @transform_4, window_bounds = array<i64: 512, 512>}, {pipeline_mode = #tpu.pipeline_mode<synchronous>, transform_indices = @transform_5, window_bounds = array<i64: 1, 512>}, {pipeline_mode = #tpu.pipeline_mode<synchronous>, transform_indices = @transform_6, window_bounds = array<i64: 512, 512>}, {pipeline_mode = #tpu.pipeline_mode<synchronous>, transform_indices = @transform_7, window_bounds = array<i64: 1, 512>}, {pipeline_mode = #tpu.pipeline_mode<synchronous>, transform_indices = @transform_8, window_bounds = array<i64: 512, 512>}, {pipeline_mode = #tpu.pipeline_mode<synchronous>, transform_indices = @transform_9, window_bounds = array<i64: 1, 512>}, {transform_indices = @transform_10, window_bounds = array<i64: 64, 512>}]} {
    %c0 = arith.constant 0 : index
    %c0_0 = arith.constant 0 : index
    %0 = vector.load %arg1[%c0, %c0_0] : memref<64x512xf32, #tpu.memory_space<vmem>>, vector<64x512xf32>
    %1 = arith.truncf %0 : vector<64x512xf32> to vector<64x512xbf16>
    %c0_1 = arith.constant 0 : index
    %c0_2 = arith.constant 0 : index
    %2 = vector.load %arg2[%c0_1, %c0_2] : memref<128x512xf32, #tpu.memory_space<vmem>>, vector<128x512xf32>
    %3 = arith.truncf %2 : vector<128x512xf32> to vector<128x512xbf16>
    %c0_3 = arith.constant 0 : index
    %c0_4 = arith.constant 0 : index
    %4 = vector.load %arg3[%c0_3, %c0_4] : memref<512x512xf32, #tpu.memory_space<vmem>>, vector<512x512xf32>
    %5 = arith.truncf %4 : vector<512x512xf32> to vector<512x512xbf16>
    %cst = arith.constant dense<0.000000e+00> : vector<64x512xf32>
    %6 = tpu.matmul %1, %5, %cst {dimension_numbers = #tpu.dot_dimension_numbers<[1], [0], [0], [1], [0, 0, 1, 1], [], []>} : vector<64x512xbf16>, vector<512x512xbf16>, vector<64x512xf32> -> vector<64x512xf32>
    %c0_5 = arith.constant 0 : index
    %c0_6 = arith.constant 0 : index
    %7 = vector.load %arg4[%c0_5, %c0_6] : memref<1x512xf32, #tpu.memory_space<vmem>>, vector<1x512xf32>
    %8 = vector.broadcast %7 : vector<1x512xf32> to vector<64x512xf32>
    %9 = arith.addf %6, %8 : vector<64x512xf32>
    %c0_7 = arith.constant 0 : index
    %c0_8 = arith.constant 0 : index
    %10 = vector.load %arg5[%c0_7, %c0_8] : memref<512x512xf32, #tpu.memory_space<vmem>>, vector<512x512xf32>
    %11 = arith.truncf %10 : vector<512x512xf32> to vector<512x512xbf16>
    %cst_9 = arith.constant dense<0.000000e+00> : vector<128x512xf32>
    %12 = tpu.matmul %3, %11, %cst_9 {dimension_numbers = #tpu.dot_dimension_numbers<[1], [0], [0], [1], [0, 0, 1, 1], [], []>} : vector<128x512xbf16>, vector<512x512xbf16>, vector<128x512xf32> -> vector<128x512xf32>
    %c0_10 = arith.constant 0 : index
    %c0_11 = arith.constant 0 : index
    %13 = vector.load %arg6[%c0_10, %c0_11] : memref<1x512xf32, #tpu.memory_space<vmem>>, vector<1x512xf32>
    %14 = vector.broadcast %13 : vector<1x512xf32> to vector<128x512xf32>
    %15 = arith.addf %12, %14 : vector<128x512xf32>
    %c0_12 = arith.constant 0 : index
    %c0_13 = arith.constant 0 : index
    %16 = vector.load %arg7[%c0_12, %c0_13] : memref<512x512xf32, #tpu.memory_space<vmem>>, vector<512x512xf32>
    %17 = arith.truncf %16 : vector<512x512xf32> to vector<512x512xbf16>
    %cst_14 = arith.constant dense<0.000000e+00> : vector<128x512xf32>
    %18 = tpu.matmul %3, %17, %cst_14 {dimension_numbers = #tpu.dot_dimension_numbers<[1], [0], [0], [1], [0, 0, 1, 1], [], []>} : vector<128x512xbf16>, vector<512x512xbf16>, vector<128x512xf32> -> vector<128x512xf32>
    %c0_15 = arith.constant 0 : index
    %c0_16 = arith.constant 0 : index
    %19 = vector.load %arg8[%c0_15, %c0_16] : memref<1x512xf32, #tpu.memory_space<vmem>>, vector<1x512xf32>
    %20 = vector.broadcast %19 : vector<1x512xf32> to vector<128x512xf32>
    %21 = arith.addf %18, %20 : vector<128x512xf32>
    %22 = vector.extract_strided_slice %9 {offsets = [0, 0], sizes = [64, 128], strides = [1, 1]} : vector<64x512xf32> to vector<64x128xf32>
    %23 = arith.truncf %22 : vector<64x128xf32> to vector<64x128xbf16>
    %24 = vector.extract_strided_slice %15 {offsets = [0, 0], sizes = [128, 128], strides = [1, 1]} : vector<128x512xf32> to vector<128x128xf32>
    %25 = arith.truncf %24 : vector<128x128xf32> to vector<128x128xbf16>
    %26 = vector.extract_strided_slice %21 {offsets = [0, 0], sizes = [128, 128], strides = [1, 1]} : vector<128x512xf32> to vector<128x128xf32>
    %27 = arith.truncf %26 : vector<128x128xf32> to vector<128x128xbf16>
    %cst_17 = arith.constant dense<0.000000e+00> : vector<64x128xf32>
    %28 = tpu.matmul %23, %25, %cst_17 {dimension_numbers = #tpu.dot_dimension_numbers<[1], [1], [0], [0], [0, 0, 1, 0], [], []>} : vector<64x128xbf16>, vector<128x128xbf16>, vector<64x128xf32> -> vector<64x128xf32>
    %cst_18 = arith.constant dense<0xFF800000> : vector<64xf32>
    %29 = vector.multi_reduction <maximumf>, %28, %cst_18 [1] : vector<64x128xf32> to vector<64xf32>
    %30 = vector.shape_cast %29 : vector<64xf32> to vector<64x1xf32>
    %31 = vector.broadcast %30 : vector<64x1xf32> to vector<64x128xf32>
    %32 = arith.subf %28, %31 : vector<64x128xf32>
    %33 = math.exp %32 : vector<64x128xf32>
    %cst_19 = arith.constant dense<0.000000e+00> : vector<64xf32>
    %34 = vector.multi_reduction <add>, %33, %cst_19 [1] : vector<64x128xf32> to vector<64xf32>
    %35 = vector.shape_cast %34 : vector<64xf32> to vector<64x1xf32>
    %36 = arith.truncf %33 : vector<64x128xf32> to vector<64x128xbf16>
    %cst_20 = arith.constant dense<0.000000e+00> : vector<64x128xf32>
    %37 = tpu.matmul %36, %27, %cst_20 {dimension_numbers = #tpu.dot_dimension_numbers<[1], [0], [0], [1], [0, 0, 1, 1], [], []>} : vector<64x128xbf16>, vector<128x128xbf16>, vector<64x128xf32> -> vector<64x128xf32>
    %38 = tpu.reciprocal %35 {approx = true} : vector<64x1xf32> -> vector<64x1xf32>
    %39 = vector.broadcast %38 : vector<64x1xf32> to vector<64x128xf32>
    %40 = arith.mulf %37, %39 : vector<64x128xf32>
    %41 = arith.truncf %40 : vector<64x128xf32> to vector<64x128xbf16>
    %42 = vector.extract_strided_slice %9 {offsets = [0, 128], sizes = [64, 128], strides = [1, 1]} : vector<64x512xf32> to vector<64x128xf32>
    %43 = arith.truncf %42 : vector<64x128xf32> to vector<64x128xbf16>
    %44 = vector.extract_strided_slice %15 {offsets = [0, 128], sizes = [128, 128], strides = [1, 1]} : vector<128x512xf32> to vector<128x128xf32>
    %45 = arith.truncf %44 : vector<128x128xf32> to vector<128x128xbf16>
    %46 = vector.extract_strided_slice %21 {offsets = [0, 128], sizes = [128, 128], strides = [1, 1]} : vector<128x512xf32> to vector<128x128xf32>
    %47 = arith.truncf %46 : vector<128x128xf32> to vector<128x128xbf16>
    %cst_21 = arith.constant dense<0.000000e+00> : vector<64x128xf32>
    %48 = tpu.matmul %43, %45, %cst_21 {dimension_numbers = #tpu.dot_dimension_numbers<[1], [1], [0], [0], [0, 0, 1, 0], [], []>} : vector<64x128xbf16>, vector<128x128xbf16>, vector<64x128xf32> -> vector<64x128xf32>
    %cst_22 = arith.constant dense<0xFF800000> : vector<64xf32>
    %49 = vector.multi_reduction <maximumf>, %48, %cst_22 [1] : vector<64x128xf32> to vector<64xf32>
    %50 = vector.shape_cast %49 : vector<64xf32> to vector<64x1xf32>
    %51 = vector.broadcast %50 : vector<64x1xf32> to vector<64x128xf32>
    %52 = arith.subf %48, %51 : vector<64x128xf32>
    %53 = math.exp %52 : vector<64x128xf32>
    %cst_23 = arith.constant dense<0.000000e+00> : vector<64xf32>
    %54 = vector.multi_reduction <add>, %53, %cst_23 [1] : vector<64x128xf32> to vector<64xf32>
    %55 = vector.shape_cast %54 : vector<64xf32> to vector<64x1xf32>
    %56 = arith.truncf %53 : vector<64x128xf32> to vector<64x128xbf16>
    %cst_24 = arith.constant dense<0.000000e+00> : vector<64x128xf32>
    %57 = tpu.matmul %56, %47, %cst_24 {dimension_numbers = #tpu.dot_dimension_numbers<[1], [0], [0], [1], [0, 0, 1, 1], [], []>} : vector<64x128xbf16>, vector<128x128xbf16>, vector<64x128xf32> -> vector<64x128xf32>
    %58 = tpu.reciprocal %55 {approx = true} : vector<64x1xf32> -> vector<64x1xf32>
    %59 = vector.broadcast %58 : vector<64x1xf32> to vector<64x128xf32>
    %60 = arith.mulf %57, %59 : vector<64x128xf32>
    %61 = arith.truncf %60 : vector<64x128xf32> to vector<64x128xbf16>
    %62 = vector.extract_strided_slice %9 {offsets = [0, 256], sizes = [64, 128], strides = [1, 1]} : vector<64x512xf32> to vector<64x128xf32>
    %63 = arith.truncf %62 : vector<64x128xf32> to vector<64x128xbf16>
    %64 = vector.extract_strided_slice %15 {offsets = [0, 256], sizes = [128, 128], strides = [1, 1]} : vector<128x512xf32> to vector<128x128xf32>
    %65 = arith.truncf %64 : vector<128x128xf32> to vector<128x128xbf16>
    %66 = vector.extract_strided_slice %21 {offsets = [0, 256], sizes = [128, 128], strides = [1, 1]} : vector<128x512xf32> to vector<128x128xf32>
    %67 = arith.truncf %66 : vector<128x128xf32> to vector<128x128xbf16>
    %cst_25 = arith.constant dense<0.000000e+00> : vector<64x128xf32>
    %68 = tpu.matmul %63, %65, %cst_25 {dimension_numbers = #tpu.dot_dimension_numbers<[1], [1], [0], [0], [0, 0, 1, 0], [], []>} : vector<64x128xbf16>, vector<128x128xbf16>, vector<64x128xf32> -> vector<64x128xf32>
    %cst_26 = arith.constant dense<0xFF800000> : vector<64xf32>
    %69 = vector.multi_reduction <maximumf>, %68, %cst_26 [1] : vector<64x128xf32> to vector<64xf32>
    %70 = vector.shape_cast %69 : vector<64xf32> to vector<64x1xf32>
    %71 = vector.broadcast %70 : vector<64x1xf32> to vector<64x128xf32>
    %72 = arith.subf %68, %71 : vector<64x128xf32>
    %73 = math.exp %72 : vector<64x128xf32>
    %cst_27 = arith.constant dense<0.000000e+00> : vector<64xf32>
    %74 = vector.multi_reduction <add>, %73, %cst_27 [1] : vector<64x128xf32> to vector<64xf32>
    %75 = vector.shape_cast %74 : vector<64xf32> to vector<64x1xf32>
    %76 = arith.truncf %73 : vector<64x128xf32> to vector<64x128xbf16>
    %cst_28 = arith.constant dense<0.000000e+00> : vector<64x128xf32>
    %77 = tpu.matmul %76, %67, %cst_28 {dimension_numbers = #tpu.dot_dimension_numbers<[1], [0], [0], [1], [0, 0, 1, 1], [], []>} : vector<64x128xbf16>, vector<128x128xbf16>, vector<64x128xf32> -> vector<64x128xf32>
    %78 = tpu.reciprocal %75 {approx = true} : vector<64x1xf32> -> vector<64x1xf32>
    %79 = vector.broadcast %78 : vector<64x1xf32> to vector<64x128xf32>
    %80 = arith.mulf %77, %79 : vector<64x128xf32>
    %81 = arith.truncf %80 : vector<64x128xf32> to vector<64x128xbf16>
    %82 = vector.extract_strided_slice %9 {offsets = [0, 384], sizes = [64, 128], strides = [1, 1]} : vector<64x512xf32> to vector<64x128xf32>
    %83 = arith.truncf %82 : vector<64x128xf32> to vector<64x128xbf16>
    %84 = vector.extract_strided_slice %15 {offsets = [0, 384], sizes = [128, 128], strides = [1, 1]} : vector<128x512xf32> to vector<128x128xf32>
    %85 = arith.truncf %84 : vector<128x128xf32> to vector<128x128xbf16>
    %86 = vector.extract_strided_slice %21 {offsets = [0, 384], sizes = [128, 128], strides = [1, 1]} : vector<128x512xf32> to vector<128x128xf32>
    %87 = arith.truncf %86 : vector<128x128xf32> to vector<128x128xbf16>
    %cst_29 = arith.constant dense<0.000000e+00> : vector<64x128xf32>
    %88 = tpu.matmul %83, %85, %cst_29 {dimension_numbers = #tpu.dot_dimension_numbers<[1], [1], [0], [0], [0, 0, 1, 0], [], []>} : vector<64x128xbf16>, vector<128x128xbf16>, vector<64x128xf32> -> vector<64x128xf32>
    %cst_30 = arith.constant dense<0xFF800000> : vector<64xf32>
    %89 = vector.multi_reduction <maximumf>, %88, %cst_30 [1] : vector<64x128xf32> to vector<64xf32>
    %90 = vector.shape_cast %89 : vector<64xf32> to vector<64x1xf32>
    %91 = vector.broadcast %90 : vector<64x1xf32> to vector<64x128xf32>
    %92 = arith.subf %88, %91 : vector<64x128xf32>
    %93 = math.exp %92 : vector<64x128xf32>
    %cst_31 = arith.constant dense<0.000000e+00> : vector<64xf32>
    %94 = vector.multi_reduction <add>, %93, %cst_31 [1] : vector<64x128xf32> to vector<64xf32>
    %95 = vector.shape_cast %94 : vector<64xf32> to vector<64x1xf32>
    %96 = arith.truncf %93 : vector<64x128xf32> to vector<64x128xbf16>
    %cst_32 = arith.constant dense<0.000000e+00> : vector<64x128xf32>
    %97 = tpu.matmul %96, %87, %cst_32 {dimension_numbers = #tpu.dot_dimension_numbers<[1], [0], [0], [1], [0, 0, 1, 1], [], []>} : vector<64x128xbf16>, vector<128x128xbf16>, vector<64x128xf32> -> vector<64x128xf32>
    %98 = tpu.reciprocal %95 {approx = true} : vector<64x1xf32> -> vector<64x1xf32>
    %99 = vector.broadcast %98 : vector<64x1xf32> to vector<64x128xf32>
    %100 = arith.mulf %97, %99 : vector<64x128xf32>
    %101 = arith.truncf %100 : vector<64x128xf32> to vector<64x128xbf16>
    %102 = tpu.concatenate %41, %61, %81, %101 in 1 : vector<64x128xbf16>, vector<64x128xbf16>, vector<64x128xbf16>, vector<64x128xbf16> -> vector<64x512xbf16>
    %c0_33 = arith.constant 0 : index
    %c0_34 = arith.constant 0 : index
    %103 = vector.load %arg9[%c0_33, %c0_34] : memref<512x512xf32, #tpu.memory_space<vmem>>, vector<512x512xf32>
    %104 = arith.truncf %103 : vector<512x512xf32> to vector<512x512xbf16>
    %cst_35 = arith.constant dense<0.000000e+00> : vector<64x512xf32>
    %105 = tpu.matmul %102, %104, %cst_35 {dimension_numbers = #tpu.dot_dimension_numbers<[1], [0], [0], [1], [0, 0, 1, 1], [], []>} : vector<64x512xbf16>, vector<512x512xbf16>, vector<64x512xf32> -> vector<64x512xf32>
    %c0_36 = arith.constant 0 : index
    %c0_37 = arith.constant 0 : index
    %106 = vector.load %arg10[%c0_36, %c0_37] : memref<1x512xf32, #tpu.memory_space<vmem>>, vector<1x512xf32>
    %107 = vector.broadcast %106 : vector<1x512xf32> to vector<64x512xf32>
    %108 = arith.addf %105, %107 : vector<64x512xf32>
    %c0_38 = arith.constant 0 : index
    %c0_39 = arith.constant 0 : index
    %109 = vector.load %arg11[%c0_38, %c0_39] : memref<64x512xf32, #tpu.memory_space<vmem>>, vector<64x512xf32>
    tpu.vector_store %arg11[%c0_38, %c0_39], %108 {strides = array<i32>} : memref<64x512xf32, #tpu.memory_space<vmem>>, vector<64x512xf32>,
    return
  }
  func.func @transform_0(%arg0: i32) -> (i32, i32) {
    %c0_i32 = arith.constant 0 : i32
    %c0_i32_0 = arith.constant 0 : i32
    return %arg0, %c0_i32 : i32, i32
  }
  func.func @transform_1(%arg0: i32) -> (i32, i32) {
    %c0_i32 = arith.constant 0 : i32
    %c0_i32_0 = arith.constant 0 : i32
    %c0_i32_1 = arith.constant 0 : i32
    return %c0_i32, %c0_i32_0 : i32, i32
  }
  func.func @transform_2(%arg0: i32) -> (i32, i32) {
    %c0_i32 = arith.constant 0 : i32
    %c0_i32_0 = arith.constant 0 : i32
    %c0_i32_1 = arith.constant 0 : i32
    return %c0_i32, %c0_i32_0 : i32, i32
  }
  func.func @transform_3(%arg0: i32) -> (i32, i32) {
    %c0_i32 = arith.constant 0 : i32
    %c0_i32_0 = arith.constant 0 : i32
    %c0_i32_1 = arith.constant 0 : i32
    return %c0_i32, %c0_i32_0 : i32, i32
  }
  func.func @transform_4(%arg0: i32) -> (i32, i32) {
    %c0_i32 = arith.constant 0 : i32
    %c0_i32_0 = arith.constant 0 : i32
    %c0_i32_1 = arith.constant 0 : i32
    return %c0_i32, %c0_i32_0 : i32, i32
  }
  func.func @transform_5(%arg0: i32) -> (i32, i32) {
    %c0_i32 = arith.constant 0 : i32
    %c0_i32_0 = arith.constant 0 : i32
    %c0_i32_1 = arith.constant 0 : i32
    return %c0_i32, %c0_i32_0 : i32, i32
  }
  func.func @transform_6(%arg0: i32) -> (i32, i32) {
    %c0_i32 = arith.constant 0 : i32
    %c0_i32_0 = arith.constant 0 : i32
    %c0_i32_1 = arith.constant 0 : i32
    return %c0_i32, %c0_i32_0 : i32, i32
  }
  func.func @transform_7(%arg0: i32) -> (i32, i32) {
    %c0_i32 = arith.constant 0 : i32
    %c0_i32_0 = arith.constant 0 : i32
    %c0_i32_1 = arith.constant 0 : i32
    return %c0_i32, %c0_i32_0 : i32, i32
  }
  func.func @transform_8(%arg0: i32) -> (i32, i32) {
    %c0_i32 = arith.constant 0 : i32
    %c0_i32_0 = arith.constant 0 : i32
    %c0_i32_1 = arith.constant 0 : i32
    return %c0_i32, %c0_i32_0 : i32, i32
  }
  func.func @transform_9(%arg0: i32) -> (i32, i32) {
    %c0_i32 = arith.constant 0 : i32
    %c0_i32_0 = arith.constant 0 : i32
    %c0_i32_1 = arith.constant 0 : i32
    return %c0_i32, %c0_i32_0 : i32, i32
  }
  func.func @transform_10(%arg0: i32) -> (i32, i32) {
    %c0_i32 = arith.constant 0 : i32
    %c0_i32_0 = arith.constant 0 : i32
    return %arg0, %c0_i32 : i32, i32
  }
}

</mosaic_0001>

<llo_original>
// kernel: multi_head_attention.1
$region0: #{multi_head_attention.1}
  #allocation0 [shape = 'u32[]', space=smem, size = 0x4, offset = 0x4, fixed_abs, tag = 'smem constant byte address 0x4 - core index']
  #allocation1 [shape = 'u32[72,128]{1,0:T(1,128)}', space=vmem, size = 0x9000, scoped, tag = 'internal scratch']
  %s0 = inlined_call_operand.hbm [shape: f32[128,512], index: 0, kind: input, shape index: {}]
  %s1 = inlined_call_operand.hbm [shape: f32[128,512], index: 1, kind: input, shape index: {}]
  %s2 = inlined_call_operand.hbm [shape: f32[512,512], index: 2, kind: input, shape index: {}]
  %s3 = inlined_call_operand.vmem [shape: f32[1,512], index: 3, kind: input, shape index: {}]
  %s4 = inlined_call_operand.hbm [shape: f32[512,512], index: 4, kind: input, shape index: {}]
  %s5 = inlined_call_operand.hbm [shape: f32[1,512], index: 5, kind: input, shape index: {}]
  %s6 = inlined_call_operand.hbm [shape: f32[512,512], index: 6, kind: input, shape index: {}]
  %s7 = inlined_call_operand.hbm [shape: f32[1,512], index: 7, kind: input, shape index: {}]
  %s8 = inlined_call_operand.hbm [shape: f32[512,512], index: 8, kind: input, shape index: {}]
  %s9 = inlined_call_operand.hbm [shape: f32[1,512], index: 9, kind: input, shape index: {}]
  %s10 = inlined_call_operand.hbm [shape: f32[128,512], index: 10, kind: output, shape index: {}]
  %s11 = sld [smem:[#allocation0]]
  $region109: #{multi_head_attention.1} parent=0
    _
  %s13 = ssub.s32 1, %s11
  %s14 = scalar_select 0, %s13, %s11
  $region1: #{multi_head_attention.1} parent=0
    #allocation2 [shape = 'u8[262144]{0}', space=vmem, size = 0x40000, scoped, tag = 'input window, operand 0']
    #allocation3 [shape = 's32[2]{0}', space=sflag, size = 0x8, scoped, tag = 'scoped memory for multi_head_attention.1']
    #allocation4 [shape = 's32[2]{0}', space=sflag, size = 0x8, scoped, tag = 'scoped memory for multi_head_attention.1']
    #allocation5 [shape = 'u8[262144]{0}', space=vmem, size = 0x40000, scoped, tag = 'input window, operand 1, single buffered']
    #allocation6 [shape = 's32[1]{0}', space=sflag, size = 0x4, scoped, tag = 'scoped memory for multi_head_attention.1']
    #allocation7 [shape = 'u8[1048576]{0}', space=vmem, size = 0x100000, scoped, tag = 'input window, operand 2, single buffered']
    #allocation8 [shape = 'u8[1048576]{0}', space=vmem, size = 0x100000, scoped, tag = 'input window, operand 4, single buffered']
    #allocation9 [shape = 's32[1]{0}', space=sflag, size = 0x4, scoped, tag = 'scoped memory for multi_head_attention.1']
    #allocation10 [shape = 'u8[2048]{0}', space=vmem, size = 0x800, scoped, tag = 'input window, operand 5, single buffered']
    #allocation11 [shape = 'u8[1048576]{0}', space=vmem, size = 0x100000, scoped, tag = 'input window, operand 6, single buffered']
    #allocation12 [shape = 's32[1]{0}', space=sflag, size = 0x4, scoped, tag = 'scoped memory for multi_head_attention.1']
    #allocation13 [shape = 'u8[2048]{0}', space=vmem, size = 0x800, scoped, tag = 'input window, operand 7, single buffered']
    #allocation14 [shape = 'u8[1048576]{0}', space=vmem, size = 0x100000, scoped, tag = 'input window, operand 8, single buffered']
    #allocation15 [shape = 's32[1]{0}', space=sflag, size = 0x4, scoped, tag = 'scoped memory for multi_head_attention.1']
    #allocation16 [shape = 'u8[2048]{0}', space=vmem, size = 0x800, scoped, tag = 'input window, operand 9, single buffered']
    #allocation17 [shape = 'u8[262144]{0}', space=vmem, size = 0x40000, scoped, tag = 'output window, operand 0']
    %15 = vsyncpa [#allocation3], 0
    %s16 = scalar_lea.sflag [#allocation3], 1
    %17 = vsyncpa %s16, 0
    %18 = vsyncpa [#allocation6], 0
    %19 = vsyncpa [#allocation9], 0
    %20 = vsyncpa [#allocation12], 0
    %21 = vsyncpa [#allocation15], 0
    %22 = vsyncpa [#allocation4], 0
    %s23 = scalar_lea.sflag [#allocation4], 1
    %24 = vsyncpa %s23, 0
    loop: start=0, step=1, limit=4
    $region2: #{multi_head_attention.1} parent=1 // loop_pre_header
      _
    $region3: #{multi_head_attention.1} parent=1 // loop_header
      %s26 = sphi 0, %s30
      %p27 = scmp.ge.s32.totalorder %s26, 4
      %s36 = sphi 0, %s38
      %s39 = sphi 0, %s36
      %s40 = sphi 0, %s39
      %s56 = sphi 0, %s40
      %s60 = sphi 0, %s60
      %s62 = sphi 0, %s60
      %s63 = sphi 0, %s62
      %s77 = sphi 0, %s63
      %s81 = sphi 0, %s81
      %s83 = sphi 0, %s81
      %s84 = sphi 0, %s83
      %s98 = sphi 0, %s84
      %s102 = sphi 0, %s102
      %s104 = sphi 0, %s102
      %s105 = sphi 0, %s104
      %s119 = sphi 0, %s105
      %s123 = sphi 0, %s123
      %s125 = sphi 0, %s123
      %s126 = sphi 0, %s125
      %s140 = sphi 0, %s126
      %s144 = sphi 0, %s144
      %s146 = sphi 0, %s144
      %s147 = sphi 0, %s146
      %s161 = sphi 0, %s147
      %s165 = sphi 0, %s165
      %s167 = sphi 0, %s165
      %s168 = sphi 0, %s167
      %s182 = sphi 0, %s168
      %s186 = sphi 0, %s186
      %s188 = sphi 0, %s186
      %s189 = sphi 0, %s188
      %s203 = sphi 0, %s189
      %s207 = sphi 0, %s207
      %s209 = sphi 0, %s207
      %s210 = sphi 0, %s209
      %s224 = sphi 0, %s210
      %s228 = sphi 0, %s228
      %s230 = sphi 0, %s228
      %s231 = sphi 0, %s230
      %s245 = sphi 0, %s231
      %s251 = sphi 0, %s253
      %s254 = sphi 0, %s251
      %s255 = sphi 0, %s254
      %s271 = sphi 0, %s255
    $region4: #{multi_head_attention.1} parent=1 // loop_header_branch
      %29 = sbr.rel (%p27) target = $region8
    $region5: #{multi_head_attention.1} parent=1 // loop_body
      %s31 = ssub.s32 %s26, 1
      %s32 = ssub.s32 %s26, 2
      %s33 = sadd.s32 %s26, 1
      %s34 = ssub.s32 %s26, %s33
      %p35 = scmp.eq.s32.totalorder %s34, 0
      %s37 = sadd.s32 %s36, 1
      %s38 = scalar_select %p35, %s36, %s37
      %p41 = pneg %p35
      %p42 = scmp.eq.s32.totalorder %s26, 1
      %p43 = por %p41, %p42
      %p44 = scmp.ne.s32.totalorder %s36, %s39
      %p45 = scmp.eq.s32.totalorder %s26, 0
      %p46 = por %p44, %p45
      %p47 = scmp.ne.s32.totalorder %s36, %s39
      %p48 = scmp.eq.s32.totalorder %s31, 1
      %p49 = por %p47, %p48
      %p50 = scmp.ne.s32.totalorder %s39, %s40
      %p51 = scmp.eq.s32.totalorder %s31, 0
      %p52 = por %p50, %p51
      %p53 = scmp.ne.s32.totalorder %s39, %s40
      %p54 = scmp.eq.s32.totalorder %s32, 1
      %p55 = por %p53, %p54
      %p57 = scmp.ne.s32.totalorder %s40, %s56
      %p58 = scmp.eq.s32.totalorder %s32, 0
      %p59 = por %p57, %p58
      %s61 = sadd.s32 %s60, 1
      %p64 = scmp.eq.s32.totalorder %s26, 1
      %p65 = scmp.ne.s32.totalorder %s60, %s62
      %p66 = scmp.eq.s32.totalorder %s26, 0
      %p67 = por %p65, %p66
      %p68 = scmp.ne.s32.totalorder %s60, %s62
      %p69 = scmp.eq.s32.totalorder %s31, 1
      %p70 = por %p68, %p69
      %p71 = scmp.ne.s32.totalorder %s62, %s63
      %p72 = scmp.eq.s32.totalorder %s31, 0
      %p73 = por %p71, %p72
      %p74 = scmp.ne.s32.totalorder %s62, %s63
      %p75 = scmp.eq.s32.totalorder %s32, 1
      %p76 = por %p74, %p75
      %p78 = scmp.ne.s32.totalorder %s63, %s77
      %p79 = scmp.eq.s32.totalorder %s32, 0
      %p80 = por %p78, %p79
      %s82 = sadd.s32 %s81, 1
      %p85 = scmp.eq.s32.totalorder %s26, 1
      %p86 = scmp.ne.s32.totalorder %s81, %s83
      %p87 = scmp.eq.s32.totalorder %s26, 0
      %p88 = por %p86, %p87
      %p89 = scmp.ne.s32.totalorder %s81, %s83
      %p90 = scmp.eq.s32.totalorder %s31, 1
      %p91 = por %p89, %p90
      %p92 = scmp.ne.s32.totalorder %s83, %s84
      %p93 = scmp.eq.s32.totalorder %s31, 0
      %p94 = por %p92, %p93
      %p95 = scmp.ne.s32.totalorder %s83, %s84
      %p96 = scmp.eq.s32.totalorder %s32, 1
      %p97 = por %p95, %p96
      %p99 = scmp.ne.s32.totalorder %s84, %s98
      %p100 = scmp.eq.s32.totalorder %s32, 0
      %p101 = por %p99, %p100
      %s103 = sadd.s32 %s102, 1
      %p106 = scmp.eq.s32.totalorder %s26, 1
      %p107 = scmp.ne.s32.totalorder %s102, %s104
      %p108 = scmp.eq.s32.totalorder %s26, 0
      %p109 = por %p107, %p108
      %p110 = scmp.ne.s32.totalorder %s102, %s104
      %p111 = scmp.eq.s32.totalorder %s31, 1
      %p112 = por %p110, %p111
      %p113 = scmp.ne.s32.totalorder %s104, %s105
      %p114 = scmp.eq.s32.totalorder %s31, 0
      %p115 = por %p113, %p114
      %p116 = scmp.ne.s32.totalorder %s104, %s105
      %p117 = scmp.eq.s32.totalorder %s32, 1
      %p118 = por %p116, %p117
      %p120 = scmp.ne.s32.totalorder %s105, %s119
      %p121 = scmp.eq.s32.totalorder %s32, 0
      %p122 = por %p120, %p121
      %s124 = sadd.s32 %s123, 1
      %p127 = scmp.eq.s32.totalorder %s26, 1
      %p128 = scmp.ne.s32.totalorder %s123, %s125
      %p129 = scmp.eq.s32.totalorder %s26, 0
      %p130 = por %p128, %p129
      %p131 = scmp.ne.s32.totalorder %s123, %s125
      %p132 = scmp.eq.s32.totalorder %s31, 1
      %p133 = por %p131, %p132
      %p134 = scmp.ne.s32.totalorder %s125, %s126
      %p135 = scmp.eq.s32.totalorder %s31, 0
      %p136 = por %p134, %p135
      %p137 = scmp.ne.s32.totalorder %s125, %s126
      %p138 = scmp.eq.s32.totalorder %s32, 1
      %p139 = por %p137, %p138
      %p141 = scmp.ne.s32.totalorder %s126, %s140
      %p142 = scmp.eq.s32.totalorder %s32, 0
      %p143 = por %p141, %p142
      %s145 = sadd.s32 %s144, 1
      %p148 = scmp.eq.s32.totalorder %s26, 1
      %p149 = scmp.ne.s32.totalorder %s144, %s146
      %p150 = scmp.eq.s32.totalorder %s26, 0
      %p151 = por %p149, %p150
      %p152 = scmp.ne.s32.totalorder %s144, %s146
      %p153 = scmp.eq.s32.totalorder %s31, 1
      %p154 = por %p152, %p153
      %p155 = scmp.ne.s32.totalorder %s146, %s147
      %p156 = scmp.eq.s32.totalorder %s31, 0
      %p157 = por %p155, %p156
      %p158 = scmp.ne.s32.totalorder %s146, %s147
      %p159 = scmp.eq.s32.totalorder %s32, 1
      %p160 = por %p158, %p159
      %p162 = scmp.ne.s32.totalorder %s147, %s161
      %p163 = scmp.eq.s32.totalorder %s32, 0
      %p164 = por %p162, %p163
      %s166 = sadd.s32 %s165, 1
      %p169 = scmp.eq.s32.totalorder %s26, 1
      %p170 = scmp.ne.s32.totalorder %s165, %s167
      %p171 = scmp.eq.s32.totalorder %s26, 0
      %p172 = por %p170, %p171
      %p173 = scmp.ne.s32.totalorder %s165, %s167
      %p174 = scmp.eq.s32.totalorder %s31, 1
      %p175 = por %p173, %p174
      %p176 = scmp.ne.s32.totalorder %s167, %s168
      %p177 = scmp.eq.s32.totalorder %s31, 0
      %p178 = por %p176, %p177
      %p179 = scmp.ne.s32.totalorder %s167, %s168
      %p180 = scmp.eq.s32.totalorder %s32, 1
      %p181 = por %p179, %p180
      %p183 = scmp.ne.s32.totalorder %s168, %s182
      %p184 = scmp.eq.s32.totalorder %s32, 0
      %p185 = por %p183, %p184
      %s187 = sadd.s32 %s186, 1
      %p190 = scmp.eq.s32.totalorder %s26, 1
      %p191 = scmp.ne.s32.totalorder %s186, %s188
      %p192 = scmp.eq.s32.totalorder %s26, 0
      %p193 = por %p191, %p192
      %p194 = scmp.ne.s32.totalorder %s186, %s188
      %p195 = scmp.eq.s32.totalorder %s31, 1
      %p196 = por %p194, %p195
      %p197 = scmp.ne.s32.totalorder %s188, %s189
      %p198 = scmp.eq.s32.totalorder %s31, 0
      %p199 = por %p197, %p198
      %p200 = scmp.ne.s32.totalorder %s188, %s189
      %p201 = scmp.eq.s32.totalorder %s32, 1
      %p202 = por %p200, %p201
      %p204 = scmp.ne.s32.totalorder %s189, %s203
      %p205 = scmp.eq.s32.totalorder %s32, 0
      %p206 = por %p204, %p205
      %s208 = sadd.s32 %s207, 1
      %p211 = scmp.eq.s32.totalorder %s26, 1
      %p212 = scmp.ne.s32.totalorder %s207, %s209
      %p213 = scmp.eq.s32.totalorder %s26, 0
      %p214 = por %p212, %p213
      %p215 = scmp.ne.s32.totalorder %s207, %s209
      %p216 = scmp.eq.s32.totalorder %s31, 1
      %p217 = por %p215, %p216
      %p218 = scmp.ne.s32.totalorder %s209, %s210
      %p219 = scmp.eq.s32.totalorder %s31, 0
      %p220 = por %p218, %p219
      %p221 = scmp.ne.s32.totalorder %s209, %s210
      %p222 = scmp.eq.s32.totalorder %s32, 1
      %p223 = por %p221, %p222
      %p225 = scmp.ne.s32.totalorder %s210, %s224
      %p226 = scmp.eq.s32.totalorder %s32, 0
      %p227 = por %p225, %p226
      %s229 = sadd.s32 %s228, 1
      %p232 = scmp.eq.s32.totalorder %s26, 1
      %p233 = scmp.ne.s32.totalorder %s228, %s230
      %p234 = scmp.eq.s32.totalorder %s26, 0
      %p235 = por %p233, %p234
      %p236 = scmp.ne.s32.totalorder %s228, %s230
      %p237 = scmp.eq.s32.totalorder %s31, 1
      %p238 = por %p236, %p237
      %p239 = scmp.ne.s32.totalorder %s230, %s231
      %p240 = scmp.eq.s32.totalorder %s31, 0
      %p241 = por %p239, %p240
      %p242 = scmp.ne.s32.totalorder %s230, %s231
      %p243 = scmp.eq.s32.totalorder %s32, 1
      %p244 = por %p242, %p243
      %p246 = scmp.ne.s32.totalorder %s231, %s245
      %p247 = scmp.eq.s32.totalorder %s32, 0
      %p248 = por %p246, %p247
      %s249 = ssub.s32 %s26, %s33
      %p250 = scmp.eq.s32.totalorder %s249, 0
      %s252 = sadd.s32 %s251, 1
      %s253 = scalar_select %p250, %s251, %s252
      %p256 = pneg %p250
      %p257 = scmp.eq.s32.totalorder %s26, 1
      %p258 = por %p256, %p257
      %p259 = scmp.ne.s32.totalorder %s251, %s254
      %p260 = scmp.eq.s32.totalorder %s26, 0
      %p261 = por %p259, %p260
      %p262 = scmp.ne.s32.totalorder %s251, %s254
      %p263 = scmp.eq.s32.totalorder %s31, 1
      %p264 = por %p262, %p263
      %p265 = scmp.ne.s32.totalorder %s254, %s255
      %p266 = scmp.eq.s32.totalorder %s31, 0
      %p267 = por %p265, %p266
      %p268 = scmp.ne.s32.totalorder %s254, %s255
      %p269 = scmp.eq.s32.totalorder %s32, 1
      %p270 = por %p268, %p269
      %p272 = scmp.ne.s32.totalorder %s255, %s271
      %p273 = scmp.eq.s32.totalorder %s32, 0
      %p274 = por %p272, %p273
      %p275 = scmp.le.s32.totalorder 1, %s26
      %p276 = scmp.lt.s32.totalorder %s26, 3
      %p277 = pnand %p275, %p276
      %p278 = pneg %p277
      // Predicated region
      $region9: #{multi_head_attention.1} parent=5 // pred_check
        _
      $region10: #{multi_head_attention.1} parent=5 // pred_check_branch
        %280 = sbr.rel (%p277) target = $region12
      $region11: #{multi_head_attention.1} parent=5 // pred_region
        %s281 = ssub.s32 %s26, 1
        // Predicated region
        $region13: #{multi_head_attention.1} parent=11 // pred_check
          %p282 = pneg %p73
        $region14: #{multi_head_attention.1} parent=11 // pred_check_branch
          %284 = sbr.rel (%p282) target = $region16
        $region15: #{multi_head_attention.1} parent=11 // pred_region
          %286 = vsyncadd [#allocation6], 0
          %s287 = sshll.u32 %s1, 4
          %s288 = int_to_ptr.hbm [resolvable:$true] %s287
          %s289 = sshll.u32 [#allocation5], 4
          %s290 = int_to_ptr.vmem [resolvable:$true] %s289
          %295 = dma.hbm_to_vmem [thread:$0]  %s288, 8192, %s290, [#allocation6], 512, 512, 32
        $region16: #{multi_head_attention.1} parent=11 // pred_fallthru
          _
        // Predicated region
        $region17: #{multi_head_attention.1} parent=11 // pred_check
          %p296 = pneg %p94
        $region18: #{multi_head_attention.1} parent=11 // pred_check_branch
          %298 = sbr.rel (%p296) target = $region20
        $region19: #{multi_head_attention.1} parent=11 // pred_region
          %300 = vsyncadd [#allocation6], 0
          %s301 = sshll.u32 %s2, 4
          %s302 = int_to_ptr.hbm [resolvable:$true] %s301
          %s303 = sshll.u32 [#allocation7], 4
          %s304 = int_to_ptr.vmem [resolvable:$true] %s303
          %309 = dma.hbm_to_vmem [thread:$0]  %s302, 32768, %s304, [#allocation6], 512, 512, 32
        $region20: #{multi_head_attention.1} parent=11 // pred_fallthru
          _
        // Predicated region
        $region21: #{multi_head_attention.1} parent=11 // pred_check
          %p310 = pneg %p115
        $region22: #{multi_head_attention.1} parent=11 // pred_check_branch
          %312 = sbr.rel (%p310) target = $region24
        $region23: #{multi_head_attention.1} parent=11 // pred_region
          _
        $region24: #{multi_head_attention.1} parent=11 // pred_fallthru
          _
        // Predicated region
        $region25: #{multi_head_attention.1} parent=11 // pred_check
          %p313 = pneg %p136
        $region26: #{multi_head_attention.1} parent=11 // pred_check_branch
          %315 = sbr.rel (%p313) target = $region28
        $region27: #{multi_head_attention.1} parent=11 // pred_region
          %317 = vsyncadd [#allocation9], 0
          %s318 = sshll.u32 %s4, 4
          %s319 = int_to_ptr.hbm [resolvable:$true] %s318
          %s320 = sshll.u32 [#allocation8], 4
          %s321 = int_to_ptr.vmem [resolvable:$true] %s320
          %326 = dma.hbm_to_vmem [thread:$0]  %s319, 32768, %s321, [#allocation9], 512, 512, 32
        $region28: #{multi_head_attention.1} parent=11 // pred_fallthru
          _
        // Predicated region
        $region29: #{multi_head_attention.1} parent=11 // pred_check
          %p327 = pneg %p157
        $region30: #{multi_head_attention.1} parent=11 // pred_check_branch
          %329 = sbr.rel (%p327) target = $region32
        $region31: #{multi_head_attention.1} parent=11 // pred_region
          %331 = vsyncadd [#allocation9], 0
          %s333 = sshll.u32 %s5, 4
          %s334 = int_to_ptr.hbm [resolvable:$true] %s333
          %s335 = sshll.u32 [#allocation10], 4
          %s336 = int_to_ptr.vmem [resolvable:$true] %s335
          %338 = dma.hbm_to_vmem [thread:$0]  %s334, 64, %s336, [#allocation9]
        $region32: #{multi_head_attention.1} parent=11 // pred_fallthru
          _
        // Predicated region
        $region33: #{multi_head_attention.1} parent=11 // pred_check
          %p339 = pneg %p178
        $region34: #{multi_head_attention.1} parent=11 // pred_check_branch
          %341 = sbr.rel (%p339) target = $region36
        $region35: #{multi_head_attention.1} parent=11 // pred_region
          %343 = vsyncadd [#allocation12], 0
          %s344 = sshll.u32 %s6, 4
          %s345 = int_to_ptr.hbm [resolvable:$true] %s344
          %s346 = sshll.u32 [#allocation11], 4
          %s347 = int_to_ptr.vmem [resolvable:$true] %s346
          %352 = dma.hbm_to_vmem [thread:$0]  %s345, 32768, %s347, [#allocation12], 512, 512, 32
        $region36: #{multi_head_attention.1} parent=11 // pred_fallthru
          _
        // Predicated region
        $region37: #{multi_head_attention.1} parent=11 // pred_check
          %p353 = pneg %p199
        $region38: #{multi_head_attention.1} parent=11 // pred_check_branch
          %355 = sbr.rel (%p353) target = $region40
        $region39: #{multi_head_attention.1} parent=11 // pred_region
          %357 = vsyncadd [#allocation12], 0
          %s359 = sshll.u32 %s7, 4
          %s360 = int_to_ptr.hbm [resolvable:$true] %s359
          %s361 = sshll.u32 [#allocation13], 4
          %s362 = int_to_ptr.vmem [resolvable:$true] %s361
          %364 = dma.hbm_to_vmem [thread:$0]  %s360, 64, %s362, [#allocation12]
        $region40: #{multi_head_attention.1} parent=11 // pred_fallthru
          _
        // Predicated region
        $region41: #{multi_head_attention.1} parent=11 // pred_check
          %p365 = pneg %p220
        $region42: #{multi_head_attention.1} parent=11 // pred_check_branch
          %367 = sbr.rel (%p365) target = $region44
        $region43: #{multi_head_attention.1} parent=11 // pred_region
          %369 = vsyncadd [#allocation15], 0
          %s370 = sshll.u32 %s8, 4
          %s371 = int_to_ptr.hbm [resolvable:$true] %s370
          %s372 = sshll.u32 [#allocation14], 4
          %s373 = int_to_ptr.vmem [resolvable:$true] %s372
          %378 = dma.hbm_to_vmem [thread:$0]  %s371, 32768, %s373, [#allocation15], 512, 512, 32
        $region44: #{multi_head_attention.1} parent=11 // pred_fallthru
          _
        // Predicated region
        $region45: #{multi_head_attention.1} parent=11 // pred_check
          %p379 = pneg %p241
        $region46: #{multi_head_attention.1} parent=11 // pred_check_branch
          %381 = sbr.rel (%p379) target = $region48
        $region47: #{multi_head_attention.1} parent=11 // pred_region
          %383 = vsyncadd [#allocation15], 0
          %s385 = sshll.u32 %s9, 4
          %s386 = int_to_ptr.hbm [resolvable:$true] %s385
          %s387 = sshll.u32 [#allocation16], 4
          %s388 = int_to_ptr.vmem [resolvable:$true] %s387
          %390 = dma.hbm_to_vmem [thread:$0]  %s386, 64, %s388, [#allocation15]
        $region48: #{multi_head_attention.1} parent=11 // pred_fallthru
          _
      $region12: #{multi_head_attention.1} parent=5 // pred_fallthru
        _
      %p391 = scmp.lt.s32.totalorder %s26, 2
      // Predicated region
      $region49: #{multi_head_attention.1} parent=5 // pred_check
        %p392 = pneg %p391
      $region50: #{multi_head_attention.1} parent=5 // pred_check_branch
        %394 = sbr.rel (%p392) target = $region52
      $region51: #{multi_head_attention.1} parent=5 // pred_region
        // Predicated region
        $region53: #{multi_head_attention.1} parent=51 // pred_check
          %p395 = pneg %p46
        $region54: #{multi_head_attention.1} parent=51 // pred_check_branch
          %397 = sbr.rel (%p395) target = $region56
        $region55: #{multi_head_attention.1} parent=51 // pred_region
          %s398 = sand.u32 %s36, 1
          %s399 = scalar_lea.sflag [#allocation3], %s398
          %s400 = sand.u32 %s36, 1
          %s401 = smul.addr %s400, 256
          %s402 = scalar_lea.vmem [#allocation2], %s401
          %s403 = smul.u32 8, %s26
          %405 = vsyncadd %s399, 0
          %s406 = smul.addr %s403, 4
          %s407 = smul.addr %s406, 8
          %s408 = scalar_lea.hbm %s0, %s407
          %s409 = sshll.u32 %s408, 4
          %s410 = int_to_ptr.hbm [resolvable:$true] %s409
          %s411 = sshll.u32 %s402, 4
          %s412 = int_to_ptr.vmem [resolvable:$true] %s411
          %417 = dma.hbm_to_vmem [thread:$0]  %s410, 4096, %s412, %s399, 512, 512, 32
        $region56: #{multi_head_attention.1} parent=51 // pred_fallthru
          _
      $region52: #{multi_head_attention.1} parent=5 // pred_fallthru
        _
      %p418 = scmp.le.s32.totalorder 1, %s26
      %p419 = scmp.lt.s32.totalorder %s26, 3
      %p420 = pnand %p418, %p419
      %p421 = pneg %p420
      // Predicated region
      $region57: #{multi_head_attention.1} parent=5 // pred_check
        _
      $region58: #{multi_head_attention.1} parent=5 // pred_check_branch
        %423 = sbr.rel (%p420) target = $region60
      $region59: #{multi_head_attention.1} parent=5 // pred_region
        %s424 = ssub.s32 %s26, 1
        %s425 = sand.u32 %s39, 1
        %s426 = scalar_lea.sflag [#allocation3], %s425
        %s427 = sand.u32 %s39, 1
        %s428 = smul.addr %s427, 256
        %s429 = scalar_lea.vmem [#allocation2], %s428
        // Predicated region
        $region61: #{multi_head_attention.1} parent=59 // pred_check
          %p430 = pneg %p52
        $region62: #{multi_head_attention.1} parent=59 // pred_check_branch
          %432 = sbr.rel (%p430) target = $region64
        $region63: #{multi_head_attention.1} parent=59 // pred_region
          %434 = dma.done %s426, 4096
        $region64: #{multi_head_attention.1} parent=59 // pred_fallthru
          _
        // Predicated region
        $region65: #{multi_head_attention.1} parent=59 // pred_check
          %p435 = pneg %p73
        $region66: #{multi_head_attention.1} parent=59 // pred_check_branch
          %437 = sbr.rel (%p435) target = $region68
        $region67: #{multi_head_attention.1} parent=59 // pred_region
          %439 = dma.done [#allocation6], 8192
        $region68: #{multi_head_attention.1} parent=59 // pred_fallthru
          _
        // Predicated region
        $region69: #{multi_head_attention.1} parent=59 // pred_check
          %p440 = pneg %p94
        $region70: #{multi_head_attention.1} parent=59 // pred_check_branch
          %442 = sbr.rel (%p440) target = $region72
        $region71: #{multi_head_attention.1} parent=59 // pred_region
          %444 = dma.done [#allocation6], 32768
        $region72: #{multi_head_attention.1} parent=59 // pred_fallthru
          _
        // Predicated region
        $region73: #{multi_head_attention.1} parent=59 // pred_check
          %p445 = pneg %p136
        $region74: #{multi_head_attention.1} parent=59 // pred_check_branch
          %447 = sbr.rel (%p445) target = $region76
        $region75: #{multi_head_attention.1} parent=59 // pred_region
          %449 = dma.done [#allocation9], 32768
        $region76: #{multi_head_attention.1} parent=59 // pred_fallthru
          _
        // Predicated region
        $region77: #{multi_head_attention.1} parent=59 // pred_check
          %p450 = pneg %p157
        $region78: #{multi_head_attention.1} parent=59 // pred_check_branch
          %452 = sbr.rel (%p450) target = $region80
        $region79: #{multi_head_attention.1} parent=59 // pred_region
          %454 = dma.done [#allocation9], 64
        $region80: #{multi_head_attention.1} parent=59 // pred_fallthru
          _
        // Predicated region
        $region81: #{multi_head_attention.1} parent=59 // pred_check
          %p455 = pneg %p178
        $region82: #{multi_head_attention.1} parent=59 // pred_check_branch
          %457 = sbr.rel (%p455) target = $region84
        $region83: #{multi_head_attention.1} parent=59 // pred_region
          %459 = dma.done [#allocation12], 32768
        $region84: #{multi_head_attention.1} parent=59 // pred_fallthru
          _
        // Predicated region
        $region85: #{multi_head_attention.1} parent=59 // pred_check
          %p460 = pneg %p199
        $region86: #{multi_head_attention.1} parent=59 // pred_check_branch
          %462 = sbr.rel (%p460) target = $region88
        $region87: #{multi_head_attention.1} parent=59 // pred_region
          %464 = dma.done [#allocation12], 64
        $region88: #{multi_head_attention.1} parent=59 // pred_fallthru
          _
        // Predicated region
        $region89: #{multi_head_attention.1} parent=59 // pred_check
          %p465 = pneg %p220
        $region90: #{multi_head_attention.1} parent=59 // pred_check_branch
          %467 = sbr.rel (%p465) target = $region92
        $region91: #{multi_head_attention.1} parent=59 // pred_region
          %469 = dma.done [#allocation15], 32768
        $region92: #{multi_head_attention.1} parent=59 // pred_fallthru
          _
        // Predicated region
        $region93: #{multi_head_attention.1} parent=59 // pred_check
          %p470 = pneg %p241
        $region94: #{multi_head_attention.1} parent=59 // pred_check_branch
          %472 = sbr.rel (%p470) target = $region96
        $region95: #{multi_head_attention.1} parent=59 // pred_region
          %474 = dma.done [#allocation15], 64
        $region96: #{multi_head_attention.1} parent=59 // pred_fallthru
          _
        %s475 = sand.u32 %s39, 1
        %s476 = scalar_lea.sflag [#allocation3], %s475
        %s477 = sand.u32 %s39, 1
        %s478 = smul.addr %s477, 256
        %s479 = scalar_lea.vmem [#allocation2], %s478
        %p480 = pneg %p52
        %p481 = pneg %p49
        %p482 = pneg %p73
        %p483 = pneg %p70
        %p484 = pneg %p94
        %p485 = pneg %p91
        %p486 = pneg %p115
        %p487 = pneg %p112
        %p488 = pneg %p136
        %p489 = pneg %p133
        %p490 = pneg %p157
        %p491 = pneg %p154
        %p492 = pneg %p178
        %p493 = pneg %p175
        %p494 = pneg %p199
        %p495 = pneg %p196
        %p496 = pneg %p220
        %p497 = pneg %p217
        %p498 = pneg %p241
        %p499 = pneg %p238
        %p500 = pneg %p267
        %p501 = pneg %p264
        %s502 = sand.u32 %s254, 1
        %s503 = scalar_lea.sflag [#allocation4], %s502
        %s504 = sand.u32 %s254, 1
        %s505 = smul.addr %s504, 256
        %s506 = scalar_lea.vmem [#allocation17], %s505
        %s507 = smul.u32 8, %s31
        %s508 = smul.u32 8, %s31
        %v509 = vld [vmem:[%s429] sm:$0xff]
        %v510 = vld [vmem:[%s429 + $0x8] sm:$0xff]
        %v511 = vld [vmem:[%s429 + $0x10] sm:$0xff]
        %v512 = vld [vmem:[%s429 + $0x18] sm:$0xff]
        %v513 = vld [vmem:[%s429 + $0x20] sm:$0xff]
        %v514 = vld [vmem:[%s429 + $0x28] sm:$0xff]
        %v515 = vld [vmem:[%s429 + $0x30] sm:$0xff]
        %v516 = vld [vmem:[%s429 + $0x38] sm:$0xff]
        %v517 = vld [vmem:[%s429 + $0x40] sm:$0xff]
        %v518 = vld [vmem:[%s429 + $0x48] sm:$0xff]
        %v519 = vld [vmem:[%s429 + $0x50] sm:$0xff]
        %v520 = vld [vmem:[%s429 + $0x58] sm:$0xff]
        %v521 = vld [vmem:[%s429 + $0x60] sm:$0xff]
        %v522 = vld [vmem:[%s429 + $0x68] sm:$0xff]
        %v523 = vld [vmem:[%s429 + $0x70] sm:$0xff]
        %v524 = vld [vmem:[%s429 + $0x78] sm:$0xff]
        %v525 = vld [vmem:[%s429 + $0x80] sm:$0xff]
        %v526 = vld [vmem:[%s429 + $0x88] sm:$0xff]
        %v527 = vld [vmem:[%s429 + $0x90] sm:$0xff]
        %v528 = vld [vmem:[%s429 + $0x98] sm:$0xff]
        %v529 = vld [vmem:[%s429 + $0xa0] sm:$0xff]
        %v530 = vld [vmem:[%s429 + $0xa8] sm:$0xff]
        %v531 = vld [vmem:[%s429 + $0xb0] sm:$0xff]
        %v532 = vld [vmem:[%s429 + $0xb8] sm:$0xff]
        %v533 = vld [vmem:[%s429 + $0xc0] sm:$0xff]
        %v534 = vld [vmem:[%s429 + $0xc8] sm:$0xff]
        %v535 = vld [vmem:[%s429 + $0xd0] sm:$0xff]
        %v536 = vld [vmem:[%s429 + $0xd8] sm:$0xff]
        %v537 = vld [vmem:[%s429 + $0xe0] sm:$0xff]
        %v538 = vld [vmem:[%s429 + $0xe8] sm:$0xff]
        %v539 = vld [vmem:[%s429 + $0xf0] sm:$0xff]
        %v540 = vld [vmem:[%s429 + $0xf8] sm:$0xff]
        %v541 = vpack.c.bf16 %v513, %v509
        %v542 = vpack.c.bf16 %v514, %v510
        %v543 = vpack.c.bf16 %v515, %v511
        %v544 = vpack.c.bf16 %v516, %v512
        %v545 = vpack.c.bf16 %v521, %v517
        %v546 = vpack.c.bf16 %v522, %v518
        %v547 = vpack.c.bf16 %v523, %v519
        %v548 = vpack.c.bf16 %v524, %v520
        %v549 = vpack.c.bf16 %v529, %v525
        %v550 = vpack.c.bf16 %v530, %v526
        %v551 = vpack.c.bf16 %v531, %v527
        %v552 = vpack.c.bf16 %v532, %v528
        %v553 = vpack.c.bf16 %v537, %v533
        %v554 = vpack.c.bf16 %v538, %v534
        %v555 = vpack.c.bf16 %v539, %v535
        %v556 = vpack.c.bf16 %v540, %v536
        %v557 = vld [vmem:[#allocation5] sm:$0xff]
        %v558 = vld [vmem:[#allocation5 + $0x8] sm:$0xff]
        %v559 = vld [vmem:[#allocation5 + $0x10] sm:$0xff]
        %v560 = vld [vmem:[#allocation5 + $0x18] sm:$0xff]
        %v561 = vld [vmem:[#allocation5 + $0x20] sm:$0xff]
        %v562 = vld [vmem:[#allocation5 + $0x28] sm:$0xff]
        %v563 = vld [vmem:[#allocation5 + $0x30] sm:$0xff]
        %v564 = vld [vmem:[#allocation5 + $0x38] sm:$0xff]
        %v565 = vld [vmem:[#allocation5 + $0x40] sm:$0xff]
        %v566 = vld [vmem:[#allocation5 + $0x48] sm:$0xff]
        %v567 = vld [vmem:[#allocation5 + $0x50] sm:$0xff]
        %v568 = vld [vmem:[#allocation5 + $0x58] sm:$0xff]
        %v569 = vld [vmem:[#allocation5 + $0x60] sm:$0xff]
        %v570 = vld [vmem:[#allocation5 + $0x68] sm:$0xff]
        %v571 = vld [vmem:[#allocation5 + $0x70] sm:$0xff]
        %v572 = vld [vmem:[#allocation5 + $0x78] sm:$0xff]
        %v573 = vld [vmem:[#allocation5 + $0x80] sm:$0xff]
        %v574 = vld [vmem:[#allocation5 + $0x88] sm:$0xff]
        %v575 = vld [vmem:[#allocation5 + $0x90] sm:$0xff]
        %v576 = vld [vmem:[#allocation5 + $0x98] sm:$0xff]
        %v577 = vld [vmem:[#allocation5 + $0xa0] sm:$0xff]
        %v578 = vld [vmem:[#allocation5 + $0xa8] sm:$0xff]
        %v579 = vld [vmem:[#allocation5 + $0xb0] sm:$0xff]
        %v580 = vld [vmem:[#allocation5 + $0xb8] sm:$0xff]
        %v581 = vld [vmem:[#allocation5 + $0xc0] sm:$0xff]
        %v582 = vld [vmem:[#allocation5 + $0xc8] sm:$0xff]
        %v583 = vld [vmem:[#allocation5 + $0xd0] sm:$0xff]
        %v584 = vld [vmem:[#allocation5 + $0xd8] sm:$0xff]
        %v585 = vld [vmem:[#allocation5 + $0xe0] sm:$0xff]
        %v586 = vld [vmem:[#allocation5 + $0xe8] sm:$0xff]
        %v587 = vld [vmem:[#allocation5 + $0xf0] sm:$0xff]
        %v588 = vld [vmem:[#allocation5 + $0xf8] sm:$0xff]
        %v589 = vld [vmem:[#allocation5 + $0x100] sm:$0xff]
        %v590 = vld [vmem:[#allocation5 + $0x108] sm:$0xff]
        %v591 = vld [vmem:[#allocation5 + $0x110] sm:$0xff]
        %v592 = vld [vmem:[#allocation5 + $0x118] sm:$0xff]
        %v593 = vld [vmem:[#allocation5 + $0x120] sm:$0xff]
        %v594 = vld [vmem:[#allocation5 + $0x128] sm:$0xff]
        %v595 = vld [vmem:[#allocation5 + $0x130] sm:$0xff]
        %v596 = vld [vmem:[#allocation5 + $0x138] sm:$0xff]
        %v597 = vld [vmem:[#allocation5 + $0x140] sm:$0xff]
        %v598 = vld [vmem:[#allocation5 + $0x148] sm:$0xff]
        %v599 = vld [vmem:[#allocation5 + $0x150] sm:$0xff]
        %v600 = vld [vmem:[#allocation5 + $0x158] sm:$0xff]
        %v601 = vld [vmem:[#allocation5 + $0x160] sm:$0xff]
        %v602 = vld [vmem:[#allocation5 + $0x168] sm:$0xff]
        %v603 = vld [vmem:[#allocation5 + $0x170] sm:$0xff]
        %v604 = vld [vmem:[#allocation5 + $0x178] sm:$0xff]
        %v605 = vld [vmem:[#allocation5 + $0x180] sm:$0xff]
        %v606 = vld [vmem:[#allocation5 + $0x188] sm:$0xff]
        %v607 = vld [vmem:[#allocation5 + $0x190] sm:$0xff]
        %v608 = vld [vmem:[#allocation5 + $0x198] sm:$0xff]
        %v609 = vld [vmem:[#allocation5 + $0x1a0] sm:$0xff]
        %v610 = vld [vmem:[#allocation5 + $0x1a8] sm:$0xff]
        %v611 = vld [vmem:[#allocation5 + $0x1b0] sm:$0xff]
        %v612 = vld [vmem:[#allocation5 + $0x1b8] sm:$0xff]
        %v613 = vld [vmem:[#allocation5 + $0x1c0] sm:$0xff]
        %v614 = vld [vmem:[#allocation5 + $0x1c8] sm:$0xff]
        %v615 = vld [vmem:[#allocation5 + $0x1d0] sm:$0xff]
        %v616 = vld [vmem:[#allocation5 + $0x1d8] sm:$0xff]
        %v617 = vld [vmem:[#allocation5 + $0x1e0] sm:$0xff]
        %v618 = vld [vmem:[#allocation5 + $0x1e8] sm:$0xff]
        %v619 = vld [vmem:[#allocation5 + $0x1f0] sm:$0xff]
        %v620 = vld [vmem:[#allocation5 + $0x1f8] sm:$0xff]
        %v621 = vpack.c.bf16 %v561, %v557
        %v622 = vpack.c.bf16 %v562, %v558
        %v623 = vpack.c.bf16 %v563, %v559
        %v624 = vpack.c.bf16 %v564, %v560
        %v625 = vpack.c.bf16 %v569, %v565
        %v626 = vpack.c.bf16 %v570, %v566
        %v627 = vpack.c.bf16 %v571, %v567
        %v628 = vpack.c.bf16 %v572, %v568
        %v629 = vpack.c.bf16 %v577, %v573
        %v630 = vpack.c.bf16 %v578, %v574
        %v631 = vpack.c.bf16 %v579, %v575
        %v632 = vpack.c.bf16 %v580, %v576
        %v633 = vpack.c.bf16 %v585, %v581
        %v634 = vpack.c.bf16 %v586, %v582
        %v635 = vpack.c.bf16 %v587, %v583
        %v636 = vpack.c.bf16 %v588, %v584
        %v637 = vpack.c.bf16 %v593, %v589
        %v638 = vpack.c.bf16 %v594, %v590
        %v639 = vpack.c.bf16 %v595, %v591
        %v640 = vpack.c.bf16 %v596, %v592
        %v641 = vpack.c.bf16 %v601, %v597
        %v642 = vpack.c.bf16 %v602, %v598
        %v643 = vpack.c.bf16 %v603, %v599
        %v644 = vpack.c.bf16 %v604, %v600
        %v645 = vpack.c.bf16 %v609, %v605
        %v646 = vpack.c.bf16 %v610, %v606
        %v647 = vpack.c.bf16 %v611, %v607
        %v648 = vpack.c.bf16 %v612, %v608
        %v649 = vpack.c.bf16 %v617, %v613
        %v650 = vpack.c.bf16 %v618, %v614
        %v651 = vpack.c.bf16 %v619, %v615
        %v652 = vpack.c.bf16 %v620, %v616
        %v653 = vld [vmem:[#allocation7] sm:$0xff]
        %v654 = vld [vmem:[#allocation7 + $0x8] sm:$0xff]
        %v655 = vld [vmem:[#allocation7 + $0x10] sm:$0xff]
        %v656 = vld [vmem:[#allocation7 + $0x18] sm:$0xff]
        %v657 = vld [vmem:[#allocation7 + $0x20] sm:$0xff]
        %v658 = vld [vmem:[#allocation7 + $0x28] sm:$0xff]
        %v659 = vld [vmem:[#allocation7 + $0x30] sm:$0xff]
        %v660 = vld [vmem:[#allocation7 + $0x38] sm:$0xff]
        %v661 = vld [vmem:[#allocation7 + $0x40] sm:$0xff]
        %v662 = vld [vmem:[#allocation7 + $0x48] sm:$0xff]
        %v663 = vld [vmem:[#allocation7 + $0x50] sm:$0xff]
        %v664 = vld [vmem:[#allocation7 + $0x58] sm:$0xff]
        %v665 = vld [vmem:[#allocation7 + $0x60] sm:$0xff]
        %v666 = vld [vmem:[#allocation7 + $0x68] sm:$0xff]
        %v667 = vld [vmem:[#allocation7 + $0x70] sm:$0xff]
        %v668 = vld [vmem:[#allocation7 + $0x78] sm:$0xff]
        %v669 = vld [vmem:[#allocation7 + $0x80] sm:$0xff]
        %v670 = vld [vmem:[#allocation7 + $0x88] sm:$0xff]
        %v671 = vld [vmem:[#allocation7 + $0x90] sm:$0xff]
        %v672 = vld [vmem:[#allocation7 + $0x98] sm:$0xff]
        %v673 = vld [vmem:[#allocation7 + $0xa0] sm:$0xff]
        %v674 = vld [vmem:[#allocation7 + $0xa8] sm:$0xff]
        %v675 = vld [vmem:[#allocation7 + $0xb0] sm:$0xff]
        %v676 = vld [vmem:[#allocation7 + $0xb8] sm:$0xff]
        %v677 = vld [vmem:[#allocation7 + $0xc0] sm:$0xff]
        %v678 = vld [vmem:[#allocation7 + $0xc8] sm:$0xff]
        %v679 = vld [vmem:[#allocation7 + $0xd0] sm:$0xff]
        %v680 = vld [vmem:[#allocation7 + $0xd8] sm:$0xff]
        %v681 = vld [vmem:[#allocation7 + $0xe0] sm:$0xff]
        %v682 = vld [vmem:[#allocation7 + $0xe8] sm:$0xff]
        %v683 = vld [vmem:[#allocation7 + $0xf0] sm:$0xff]
        %v684 = vld [vmem:[#allocation7 + $0xf8] sm:$0xff]
        %v685 = vld [vmem:[#allocation7 + $0x100] sm:$0xff]
        %v686 = vld [vmem:[#allocation7 + $0x108] sm:$0xff]
        %v687 = vld [vmem:[#allocation7 + $0x110] sm:$0xff]
        %v688 = vld [vmem:[#allocation7 + $0x118] sm:$0xff]
        %v689 = vld [vmem:[#allocation7 + $0x120] sm:$0xff]
        %v690 = vld [vmem:[#allocation7 + $0x128] sm:$0xff]
        %v691 = vld [vmem:[#allocation7 + $0x130] sm:$0xff]
        %v692 = vld [vmem:[#allocation7 + $0x138] sm:$0xff]
        %v693 = vld [vmem:[#allocation7 + $0x140] sm:$0xff]
        %v694 = vld [vmem:[#allocation7 + $0x148] sm:$0xff]
        %v695 = vld [vmem:[#allocation7 + $0x150] sm:$0xff]
        %v696 = vld [vmem:[#allocation7 + $0x158] sm:$0xff]
        %v697 = vld [vmem:[#allocation7 + $0x160] sm:$0xff]
        %v698 = vld [vmem:[#allocation7 + $0x168] sm:$0xff]
        %v699 = vld [vmem:[#allocation7 + $0x170] sm:$0xff]
        %v700 = vld [vmem:[#allocation7 + $0x178] sm:$0xff]
        %v701 = vld [vmem:[#allocation7 + $0x180] sm:$0xff]
        %v702 = vld [vmem:[#allocation7 + $0x188] sm:$0xff]
        %v703 = vld [vmem:[#allocation7 + $0x190] sm:$0xff]
        %v704 = vld [vmem:[#allocation7 + $0x198] sm:$0xff]
        %v705 = vld [vmem:[#allocation7 + $0x1a0] sm:$0xff]
        %v706 = vld [vmem:[#allocation7 + $0x1a8] sm:$0xff]
        %v707 = vld [vmem:[#allocation7 + $0x1b0] sm:$0xff]
        %v708 = vld [vmem:[#allocation7 + $0x1b8] sm:$0xff]
        %v709 = vld [vmem:[#allocation7 + $0x1c0] sm:$0xff]
        %v710 = vld [vmem:[#allocation7 + $0x1c8] sm:$0xff]
        %v711 = vld [vmem:[#allocation7 + $0x1d0] sm:$0xff]
        %v712 = vld [vmem:[#allocation7 + $0x1d8] sm:$0xff]
        %v713 = vld [vmem:[#allocation7 + $0x1e0] sm:$0xff]
        %v714 = vld [vmem:[#allocation7 + $0x1e8] sm:$0xff]
        %v715 = vld [vmem:[#allocation7 + $0x1f0] sm:$0xff]
        %v716 = vld [vmem:[#allocation7 + $0x1f8] sm:$0xff]
        %v717 = vld [vmem:[#allocation7 + $0x200] sm:$0xff]
        %v718 = vld [vmem:[#allocation7 + $0x208] sm:$0xff]
        %v719 = vld [vmem:[#allocation7 + $0x210] sm:$0xff]
        %v720 = vld [vmem:[#allocation7 + $0x218] sm:$0xff]
        %v721 = vld [vmem:[#allocation7 + $0x220] sm:$0xff]
        %v722 = vld [vmem:[#allocation7 + $0x228] sm:$0xff]
        %v723 = vld [vmem:[#allocation7 + $0x230] sm:$0xff]
        %v724 = vld [vmem:[#allocation7 + $0x238] sm:$0xff]
        %v725 = vld [vmem:[#allocation7 + $0x240] sm:$0xff]
        %v726 = vld [vmem:[#allocation7 + $0x248] sm:$0xff]
        %v727 = vld [vmem:[#allocation7 + $0x250] sm:$0xff]
        %v728 = vld [vmem:[#allocation7 + $0x258] sm:$0xff]
        %v729 = vld [vmem:[#allocation7 + $0x260] sm:$0xff]
        %v730 = vld [vmem:[#allocation7 + $0x268] sm:$0xff]
        %v731 = vld [vmem:[#allocation7 + $0x270] sm:$0xff]
        %v732 = vld [vmem:[#allocation7 + $0x278] sm:$0xff]
        %v733 = vld [vmem:[#allocation7 + $0x280] sm:$0xff]
        %v734 = vld [vmem:[#allocation7 + $0x288] sm:$0xff]
        %v735 = vld [vmem:[#allocation7 + $0x290] sm:$0xff]
        %v736 = vld [vmem:[#allocation7 + $0x298] sm:$0xff]
        %v737 = vld [vmem:[#allocation7 + $0x2a0] sm:$0xff]
        %v738 = vld [vmem:[#allocation7 + $0x2a8] sm:$0xff]
        %v739 = vld [vmem:[#allocation7 + $0x2b0] sm:$0xff]
        %v740 = vld [vmem:[#allocation7 + $0x2b8] sm:$0xff]
        %v741 = vld [vmem:[#allocation7 + $0x2c0] sm:$0xff]
        %v742 = vld [vmem:[#allocation7 + $0x2c8] sm:$0xff]
        %v743 = vld [vmem:[#allocation7 + $0x2d0] sm:$0xff]
        %v744 = vld [vmem:[#allocation7 + $0x2d8] sm:$0xff]
        %v745 = vld [vmem:[#allocation7 + $0x2e0] sm:$0xff]
        %v746 = vld [vmem:[#allocation7 + $0x2e8] sm:$0xff]
        %v747 = vld [vmem:[#allocation7 + $0x2f0] sm:$0xff]
        %v748 = vld [vmem:[#allocation7 + $0x2f8] sm:$0xff]
        %v749 = vld [vmem:[#allocation7 + $0x300] sm:$0xff]
        %v750 = vld [vmem:[#allocation7 + $0x308] sm:$0xff]
        %v751 = vld [vmem:[#allocation7 + $0x310] sm:$0xff]
        %v752 = vld [vmem:[#allocation7 + $0x318] sm:$0xff]
        %v753 = vld [vmem:[#allocation7 + $0x320] sm:$0xff]
        %v754 = vld [vmem:[#allocation7 + $0x328] sm:$0xff]
        %v755 = vld [vmem:[#allocation7 + $0x330] sm:$0xff]
        %v756 = vld [vmem:[#allocation7 + $0x338] sm:$0xff]
        %v757 = vld [vmem:[#allocation7 + $0x340] sm:$0xff]
        %v758 = vld [vmem:[#allocation7 + $0x348] sm:$0xff]
        %v759 = vld [vmem:[#allocation7 + $0x350] sm:$0xff]
        %v760 = vld [vmem:[#allocation7 + $0x358] sm:$0xff]
        %v761 = vld [vmem:[#allocation7 + $0x360] sm:$0xff]
        %v762 = vld [vmem:[#allocation7 + $0x368] sm:$0xff]
        %v763 = vld [vmem:[#allocation7 + $0x370] sm:$0xff]
        %v764 = vld [vmem:[#allocation7 + $0x378] sm:$0xff]
        %v765 = vld [vmem:[#allocation7 + $0x380] sm:$0xff]
        %v766 = vld [vmem:[#allocation7 + $0x388] sm:$0xff]
        %v767 = vld [vmem:[#allocation7 + $0x390] sm:$0xff]
        %v768 = vld [vmem:[#allocation7 + $0x398] sm:$0xff]
        %v769 = vld [vmem:[#allocation7 + $0x3a0] sm:$0xff]
        %v770 = vld [vmem:[#allocation7 + $0x3a8] sm:$0xff]
        %v771 = vld [vmem:[#allocation7 + $0x3b0] sm:$0xff]
        %v772 = vld [vmem:[#allocation7 + $0x3b8] sm:$0xff]
        %v773 = vld [vmem:[#allocation7 + $0x3c0] sm:$0xff]
        %v774 = vld [vmem:[#allocation7 + $0x3c8] sm:$0xff]
        %v775 = vld [vmem:[#allocation7 + $0x3d0] sm:$0xff]
        %v776 = vld [vmem:[#allocation7 + $0x3d8] sm:$0xff]
        %v777 = vld [vmem:[#allocation7 + $0x3e0] sm:$0xff]
        %v778 = vld [vmem:[#allocation7 + $0x3e8] sm:$0xff]
        %v779 = vld [vmem:[#allocation7 + $0x3f0] sm:$0xff]
        %v780 = vld [vmem:[#allocation7 + $0x3f8] sm:$0xff]
        %v781 = vld [vmem:[#allocation7 + $0x400] sm:$0xff]
        %v782 = vld [vmem:[#allocation7 + $0x408] sm:$0xff]
        %v783 = vld [vmem:[#allocation7 + $0x410] sm:$0xff]
        %v784 = vld [vmem:[#allocation7 + $0x418] sm:$0xff]
        %v785 = vld [vmem:[#allocation7 + $0x420] sm:$0xff]
        %v786 = vld [vmem:[#allocation7 + $0x428] sm:$0xff]
        %v787 = vld [vmem:[#allocation7 + $0x430] sm:$0xff]
        %v788 = vld [vmem:[#allocation7 + $0x438] sm:$0xff]
        %v789 = vld [vmem:[#allocation7 + $0x440] sm:$0xff]
        %v790 = vld [vmem:[#allocation7 + $0x448] sm:$0xff]
        %v791 = vld [vmem:[#allocation7 + $0x450] sm:$0xff]
        %v792 = vld [vmem:[#allocation7 + $0x458] sm:$0xff]
        %v793 = vld [vmem:[#allocation7 + $0x460] sm:$0xff]
        %v794 = vld [vmem:[#allocation7 + $0x468] sm:$0xff]
        %v795 = vld [vmem:[#allocation7 + $0x470] sm:$0xff]
        %v796 = vld [vmem:[#allocation7 + $0x478] sm:$0xff]
        %v797 = vld [vmem:[#allocation7 + $0x480] sm:$0xff]
        %v798 = vld [vmem:[#allocation7 + $0x488] sm:$0xff]
        %v799 = vld [vmem:[#allocation7 + $0x490] sm:$0xff]
        %v800 = vld [vmem:[#allocation7 + $0x498] sm:$0xff]
        %v801 = vld [vmem:[#allocation7 + $0x4a0] sm:$0xff]
        %v802 = vld [vmem:[#allocation7 + $0x4a8] sm:$0xff]
        %v803 = vld [vmem:[#allocation7 + $0x4b0] sm:$0xff]
        %v804 = vld [vmem:[#allocation7 + $0x4b8] sm:$0xff]
        %v805 = vld [vmem:[#allocation7 + $0x4c0] sm:$0xff]
        %v806 = vld [vmem:[#allocation7 + $0x4c8] sm:$0xff]
        %v807 = vld [vmem:[#allocation7 + $0x4d0] sm:$0xff]
        %v808 = vld [vmem:[#allocation7 + $0x4d8] sm:$0xff]
        %v809 = vld [vmem:[#allocation7 + $0x4e0] sm:$0xff]
        %v810 = vld [vmem:[#allocation7 + $0x4e8] sm:$0xff]
        %v811 = vld [vmem:[#allocation7 + $0x4f0] sm:$0xff]
        %v812 = vld [vmem:[#allocation7 + $0x4f8] sm:$0xff]
        %v813 = vld [vmem:[#allocation7 + $0x500] sm:$0xff]
        %v814 = vld [vmem:[#allocation7 + $0x508] sm:$0xff]
        %v815 = vld [vmem:[#allocation7 + $0x510] sm:$0xff]
        %v816 = vld [vmem:[#allocation7 + $0x518] sm:$0xff]
        %v817 = vld [vmem:[#allocation7 + $0x520] sm:$0xff]
        %v818 = vld [vmem:[#allocation7 + $0x528] sm:$0xff]
        %v819 = vld [vmem:[#allocation7 + $0x530] sm:$0xff]
        %v820 = vld [vmem:[#allocation7 + $0x538] sm:$0xff]
        %v821 = vld [vmem:[#allocation7 + $0x540] sm:$0xff]
        %v822 = vld [vmem:[#allocation7 + $0x548] sm:$0xff]
        %v823 = vld [vmem:[#allocation7 + $0x550] sm:$0xff]
        %v824 = vld [vmem:[#allocation7 + $0x558] sm:$0xff]
        %v825 = vld [vmem:[#allocation7 + $0x560] sm:$0xff]
        %v826 = vld [vmem:[#allocation7 + $0x568] sm:$0xff]
        %v827 = vld [vmem:[#allocation7 + $0x570] sm:$0xff]
        %v828 = vld [vmem:[#allocation7 + $0x578] sm:$0xff]
        %v829 = vld [vmem:[#allocation7 + $0x580] sm:$0xff]
        %v830 = vld [vmem:[#allocation7 + $0x588] sm:$0xff]
        %v831 = vld [vmem:[#allocation7 + $0x590] sm:$0xff]
        %v832 = vld [vmem:[#allocation7 + $0x598] sm:$0xff]
        %v833 = vld [vmem:[#allocation7 + $0x5a0] sm:$0xff]
        %v834 = vld [vmem:[#allocation7 + $0x5a8] sm:$0xff]
        %v835 = vld [vmem:[#allocation7 + $0x5b0] sm:$0xff]
        %v836 = vld [vmem:[#allocation7 + $0x5b8] sm:$0xff]
        %v837 = vld [vmem:[#allocation7 + $0x5c0] sm:$0xff]
        %v838 = vld [vmem:[#allocation7 + $0x5c8] sm:$0xff]
        %v839 = vld [vmem:[#allocation7 + $0x5d0] sm:$0xff]
        %v840 = vld [vmem:[#allocation7 + $0x5d8] sm:$0xff]
        %v841 = vld [vmem:[#allocation7 + $0x5e0] sm:$0xff]
        %v842 = vld [vmem:[#allocation7 + $0x5e8] sm:$0xff]
        %v843 = vld [vmem:[#allocation7 + $0x5f0] sm:$0xff]
        %v844 = vld [vmem:[#allocation7 + $0x5f8] sm:$0xff]
        %v845 = vld [vmem:[#allocation7 + $0x600] sm:$0xff]
        %v846 = vld [vmem:[#allocation7 + $0x608] sm:$0xff]
        %v847 = vld [vmem:[#allocation7 + $0x610] sm:$0xff]
        %v848 = vld [vmem:[#allocation7 + $0x618] sm:$0xff]
        %v849 = vld [vmem:[#allocation7 + $0x620] sm:$0xff]
        %v850 = vld [vmem:[#allocation7 + $0x628] sm:$0xff]
        %v851 = vld [vmem:[#allocation7 + $0x630] sm:$0xff]
        %v852 = vld [vmem:[#allocation7 + $0x638] sm:$0xff]
        %v853 = vld [vmem:[#allocation7 + $0x640] sm:$0xff]
        %v854 = vld [vmem:[#allocation7 + $0x648] sm:$0xff]
        %v855 = vld [vmem:[#allocation7 + $0x650] sm:$0xff]
        %v856 = vld [vmem:[#allocation7 + $0x658] sm:$0xff]
        %v857 = vld [vmem:[#allocation7 + $0x660] sm:$0xff]
        %v858 = vld [vmem:[#allocation7 + $0x668] sm:$0xff]
        %v859 = vld [vmem:[#allocation7 + $0x670] sm:$0xff]
        %v860 = vld [vmem:[#allocation7 + $0x678] sm:$0xff]
        %v861 = vld [vmem:[#allocation7 + $0x680] sm:$0xff]
        %v862 = vld [vmem:[#allocation7 + $0x688] sm:$0xff]
        %v863 = vld [vmem:[#allocation7 + $0x690] sm:$0xff]
        %v864 = vld [vmem:[#allocation7 + $0x698] sm:$0xff]
        %v865 = vld [vmem:[#allocation7 + $0x6a0] sm:$0xff]
        %v866 = vld [vmem:[#allocation7 + $0x6a8] sm:$0xff]
        %v867 = vld [vmem:[#allocation7 + $0x6b0] sm:$0xff]
        %v868 = vld [vmem:[#allocation7 + $0x6b8] sm:$0xff]
        %v869 = vld [vmem:[#allocation7 + $0x6c0] sm:$0xff]
        %v870 = vld [vmem:[#allocation7 + $0x6c8] sm:$0xff]
        %v871 = vld [vmem:[#allocation7 + $0x6d0] sm:$0xff]
        %v872 = vld [vmem:[#allocation7 + $0x6d8] sm:$0xff]
        %v873 = vld [vmem:[#allocation7 + $0x6e0] sm:$0xff]
        %v874 = vld [vmem:[#allocation7 + $0x6e8] sm:$0xff]
        %v875 = vld [vmem:[#allocation7 + $0x6f0] sm:$0xff]
        %v876 = vld [vmem:[#allocation7 + $0x6f8] sm:$0xff]
        %v877 = vld [vmem:[#allocation7 + $0x700] sm:$0xff]
        %v878 = vld [vmem:[#allocation7 + $0x708] sm:$0xff]
        %v879 = vld [vmem:[#allocation7 + $0x710] sm:$0xff]
        %v880 = vld [vmem:[#allocation7 + $0x718] sm:$0xff]
        %v881 = vld [vmem:[#allocation7 + $0x720] sm:$0xff]
        %v882 = vld [vmem:[#allocation7 + $0x728] sm:$0xff]
        %v883 = vld [vmem:[#allocation7 + $0x730] sm:$0xff]
        %v884 = vld [vmem:[#allocation7 + $0x738] sm:$0xff]
        %v885 = vld [vmem:[#allocation7 + $0x740] sm:$0xff]
        %v886 = vld [vmem:[#allocation7 + $0x748] sm:$0xff]
        %v887 = vld [vmem:[#allocation7 + $0x750] sm:$0xff]
        %v888 = vld [vmem:[#allocation7 + $0x758] sm:$0xff]
        %v889 = vld [vmem:[#allocation7 + $0x760] sm:$0xff]
        %v890 = vld [vmem:[#allocation7 + $0x768] sm:$0xff]
        %v891 = vld [vmem:[#allocation7 + $0x770] sm:$0xff]
        %v892 = vld [vmem:[#allocation7 + $0x778] sm:$0xff]
        %v893 = vld [vmem:[#allocation7 + $0x780] sm:$0xff]
        %v894 = vld [vmem:[#allocation7 + $0x788] sm:$0xff]
        %v895 = vld [vmem:[#allocation7 + $0x790] sm:$0xff]
        %v896 = vld [vmem:[#allocation7 + $0x798] sm:$0xff]
        %v897 = vld [vmem:[#allocation7 + $0x7a0] sm:$0xff]
        %v898 = vld [vmem:[#allocation7 + $0x7a8] sm:$0xff]
        %v899 = vld [vmem:[#allocation7 + $0x7b0] sm:$0xff]
        %v900 = vld [vmem:[#allocation7 + $0x7b8] sm:$0xff]
        %v901 = vld [vmem:[#allocation7 + $0x7c0] sm:$0xff]
        %v902 = vld [vmem:[#allocation7 + $0x7c8] sm:$0xff]
        %v903 = vld [vmem:[#allocation7 + $0x7d0] sm:$0xff]
        %v904 = vld [vmem:[#allocation7 + $0x7d8] sm:$0xff]
        %v905 = vld [vmem:[#allocation7 + $0x7e0] sm:$0xff]
        %v906 = vld [vmem:[#allocation7 + $0x7e8] sm:$0xff]
        %v907 = vld [vmem:[#allocation7 + $0x7f0] sm:$0xff]
        %v908 = vld [vmem:[#allocation7 + $0x7f8] sm:$0xff]
        %v909 = vpack.c.bf16 %v657, %v653
        %v910 = vpack.c.bf16 %v658, %v654
        %v911 = vpack.c.bf16 %v659, %v655
        %v912 = vpack.c.bf16 %v660, %v656
        %v913 = vpack.c.bf16 %v665, %v661
        %v914 = vpack.c.bf16 %v666, %v662
        %v915 = vpack.c.bf16 %v667, %v663
        %v916 = vpack.c.bf16 %v668, %v664
        %v917 = vpack.c.bf16 %v673, %v669
        %v918 = vpack.c.bf16 %v674, %v670
        %v919 = vpack.c.bf16 %v675, %v671
        %v920 = vpack.c.bf16 %v676, %v672
        %v921 = vpack.c.bf16 %v681, %v677
        %v922 = vpack.c.bf16 %v682, %v678
        %v923 = vpack.c.bf16 %v683, %v679
        %v924 = vpack.c.bf16 %v684, %v680
        %v925 = vpack.c.bf16 %v689, %v685
        %v926 = vpack.c.bf16 %v690, %v686
        %v927 = vpack.c.bf16 %v691, %v687
        %v928 = vpack.c.bf16 %v692, %v688
        %v929 = vpack.c.bf16 %v697, %v693
        %v930 = vpack.c.bf16 %v698, %v694
        %v931 = vpack.c.bf16 %v699, %v695
        %v932 = vpack.c.bf16 %v700, %v696
        %v933 = vpack.c.bf16 %v705, %v701
        %v934 = vpack.c.bf16 %v706, %v702
        %v935 = vpack.c.bf16 %v707, %v703
        %v936 = vpack.c.bf16 %v708, %v704
        %v937 = vpack.c.bf16 %v713, %v709
        %v938 = vpack.c.bf16 %v714, %v710
        %v939 = vpack.c.bf16 %v715, %v711
        %v940 = vpack.c.bf16 %v716, %v712
        %v941 = vpack.c.bf16 %v721, %v717
        %v942 = vpack.c.bf16 %v722, %v718
        %v943 = vpack.c.bf16 %v723, %v719
        %v944 = vpack.c.bf16 %v724, %v720
        %v945 = vpack.c.bf16 %v729, %v725
        %v946 = vpack.c.bf16 %v730, %v726
        %v947 = vpack.c.bf16 %v731, %v727
        %v948 = vpack.c.bf16 %v732, %v728
        %v949 = vpack.c.bf16 %v737, %v733
        %v950 = vpack.c.bf16 %v738, %v734
        %v951 = vpack.c.bf16 %v739, %v735
        %v952 = vpack.c.bf16 %v740, %v736
        %v953 = vpack.c.bf16 %v745, %v741
        %v954 = vpack.c.bf16 %v746, %v742
        %v955 = vpack.c.bf16 %v747, %v743
        %v956 = vpack.c.bf16 %v748, %v744
        %v957 = vpack.c.bf16 %v753, %v749
        %v958 = vpack.c.bf16 %v754, %v750
        %v959 = vpack.c.bf16 %v755, %v751
        %v960 = vpack.c.bf16 %v756, %v752
        %v961 = vpack.c.bf16 %v761, %v757
        %v962 = vpack.c.bf16 %v762, %v758
        %v963 = vpack.c.bf16 %v763, %v759
        %v964 = vpack.c.bf16 %v764, %v760
        %v965 = vpack.c.bf16 %v769, %v765
        %v966 = vpack.c.bf16 %v770, %v766
        %v967 = vpack.c.bf16 %v771, %v767
        %v968 = vpack.c.bf16 %v772, %v768
        %v969 = vpack.c.bf16 %v777, %v773
        %v970 = vpack.c.bf16 %v778, %v774
        %v971 = vpack.c.bf16 %v779, %v775
        %v972 = vpack.c.bf16 %v780, %v776
        %v973 = vpack.c.bf16 %v785, %v781
        %v974 = vpack.c.bf16 %v786, %v782
        %v975 = vpack.c.bf16 %v787, %v783
        %v976 = vpack.c.bf16 %v788, %v784
        %v977 = vpack.c.bf16 %v793, %v789
        %v978 = vpack.c.bf16 %v794, %v790
        %v979 = vpack.c.bf16 %v795, %v791
        %v980 = vpack.c.bf16 %v796, %v792
        %v981 = vpack.c.bf16 %v801, %v797
        %v982 = vpack.c.bf16 %v802, %v798
        %v983 = vpack.c.bf16 %v803, %v799
        %v984 = vpack.c.bf16 %v804, %v800
        %v985 = vpack.c.bf16 %v809, %v805
        %v986 = vpack.c.bf16 %v810, %v806
        %v987 = vpack.c.bf16 %v811, %v807
        %v988 = vpack.c.bf16 %v812, %v808
        %v989 = vpack.c.bf16 %v817, %v813
        %v990 = vpack.c.bf16 %v818, %v814
        %v991 = vpack.c.bf16 %v819, %v815
        %v992 = vpack.c.bf16 %v820, %v816
        %v993 = vpack.c.bf16 %v825, %v821
        %v994 = vpack.c.bf16 %v826, %v822
        %v995 = vpack.c.bf16 %v827, %v823
        %v996 = vpack.c.bf16 %v828, %v824
        %v997 = vpack.c.bf16 %v833, %v829
        %v998 = vpack.c.bf16 %v834, %v830
        %v999 = vpack.c.bf16 %v835, %v831
        %v1000 = vpack.c.bf16 %v836, %v832
        %v1001 = vpack.c.bf16 %v841, %v837
        %v1002 = vpack.c.bf16 %v842, %v838
        %v1003 = vpack.c.bf16 %v843, %v839
        %v1004 = vpack.c.bf16 %v844, %v840
        %v1005 = vpack.c.bf16 %v849, %v845
        %v1006 = vpack.c.bf16 %v850, %v846
        %v1007 = vpack.c.bf16 %v851, %v847
        %v1008 = vpack.c.bf16 %v852, %v848
        %v1009 = vpack.c.bf16 %v857, %v853
        %v1010 = vpack.c.bf16 %v858, %v854
        %v1011 = vpack.c.bf16 %v859, %v855
        %v1012 = vpack.c.bf16 %v860, %v856
        %v1013 = vpack.c.bf16 %v865, %v861
        %v1014 = vpack.c.bf16 %v866, %v862
        %v1015 = vpack.c.bf16 %v867, %v863
        %v1016 = vpack.c.bf16 %v868, %v864
        %v1017 = vpack.c.bf16 %v873, %v869
        %v1018 = vpack.c.bf16 %v874, %v870
        %v1019 = vpack.c.bf16 %v875, %v871
        %v1020 = vpack.c.bf16 %v876, %v872
        %v1021 = vpack.c.bf16 %v881, %v877
        %v1022 = vpack.c.bf16 %v882, %v878
        %v1023 = vpack.c.bf16 %v883, %v879
        %v1024 = vpack.c.bf16 %v884, %v880
        %v1025 = vpack.c.bf16 %v889, %v885
        %v1026 = vpack.c.bf16 %v890, %v886
        %v1027 = vpack.c.bf16 %v891, %v887
        %v1028 = vpack.c.bf16 %v892, %v888
        %v1029 = vpack.c.bf16 %v897, %v893
        %v1030 = vpack.c.bf16 %v898, %v894
        %v1031 = vpack.c.bf16 %v899, %v895
        %v1032 = vpack.c.bf16 %v900, %v896
        %v1033 = vpack.c.bf16 %v905, %v901
        %v1034 = vpack.c.bf16 %v906, %v902
        %v1035 = vpack.c.bf16 %v907, %v903
        %v1036 = vpack.c.bf16 %v908, %v904
        %v1037 = vld [vmem:[%s3] sm:$0xf]
        %v1039 = vperm.slane %v1037, 0
        %v1040 = vperm.slane %v1037, 1
        %v1041 = vperm.slane %v1037, 2
        %v1042 = vperm.slane %v1037, 3
        %1047 = vmatpush.bf16.msra.mxu0 %v937
        %1048 = vmatpush.bf16.msra.mxu0 %v933
        %1049 = vmatpush.bf16.msra.mxu0 %v929
        %1050 = vmatpush.bf16.msra.mxu0 %v925
        %1051 = vmatpush.bf16.msra.mxu0 %v921
        %1052 = vmatpush.bf16.msra.mxu0 %v917
        %1053 = vmatpush.bf16.msra.mxu0 %v913
        %1054 = vmatpush.bf16.msra.mxu0 %v909
        %1055 = vmatmul.bf16.gmra.mxu0 %v541
        %v1056 = vpop.f32.mrf.mxu0
        %v1057 = vadd.f32 %v1039, %v1056
        %v1058 = vpop.f32.mrf.mxu0
        %v1059 = vadd.f32 %v1039, %v1058
        %1060 = vmatmul.bf16.gmra.mxu0 %v545
        %v1061 = vpop.f32.mrf.mxu0
        %v1062 = vadd.f32 %v1039, %v1061
        %v1063 = vpop.f32.mrf.mxu0
        %v1064 = vadd.f32 %v1039, %v1063
        %1065 = vmatmul.bf16.gmra.mxu0 %v549
        %v1066 = vpop.f32.mrf.mxu0
        %v1067 = vadd.f32 %v1039, %v1066
        %v1068 = vpop.f32.mrf.mxu0
        %v1069 = vadd.f32 %v1039, %v1068
        %1070 = vmatmul.bf16.gmra.mxu0 %v553
        %v1071 = vpop.f32.mrf.mxu0
        %v1072 = vadd.f32 %v1039, %v1071
        %v1073 = vpop.f32.mrf.mxu0
        %v1074 = vadd.f32 %v1039, %v1073
        %1075 = vdwg.mxu0
        %1076 = vmatpush.bf16.msra.mxu0 %v969
        %1077 = vmatpush.bf16.msra.mxu0 %v965
        %1078 = vmatpush.bf16.msra.mxu0 %v961
        %1079 = vmatpush.bf16.msra.mxu0 %v957
        %1080 = vmatpush.bf16.msra.mxu0 %v953
        %1081 = vmatpush.bf16.msra.mxu0 %v949
        %1082 = vmatpush.bf16.msra.mxu0 %v945
        %1083 = vmatpush.bf16.msra.mxu0 %v941
        %1084 = vmatmul.bf16.gmra.mxu0 %v542
        %v1085 = vpop.f32.mrf.mxu0
        %v1086 = vadd.f32 %v1057, %v1085
        %v1087 = vpop.f32.mrf.mxu0
        %v1088 = vadd.f32 %v1059, %v1087
        %1089 = vmatmul.bf16.gmra.mxu0 %v546
        %v1090 = vpop.f32.mrf.mxu0
        %v1091 = vadd.f32 %v1062, %v1090
        %v1092 = vpop.f32.mrf.mxu0
        %v1093 = vadd.f32 %v1064, %v1092
        %1094 = vmatmul.bf16.gmra.mxu0 %v550
        %v1095 = vpop.f32.mrf.mxu0
        %v1096 = vadd.f32 %v1067, %v1095
        %v1097 = vpop.f32.mrf.mxu0
        %v1098 = vadd.f32 %v1069, %v1097
        %1099 = vmatmul.bf16.gmra.mxu0 %v554
        %v1100 = vpop.f32.mrf.mxu0
        %v1101 = vadd.f32 %v1072, %v1100
        %v1102 = vpop.f32.mrf.mxu0
        %v1103 = vadd.f32 %v1074, %v1102
        %1104 = vdwg.mxu0
        %1105 = vmatpush.bf16.msra.mxu0 %v1001
        %1106 = vmatpush.bf16.msra.mxu0 %v997
        %1107 = vmatpush.bf16.msra.mxu0 %v993
        %1108 = vmatpush.bf16.msra.mxu0 %v989
        %1109 = vmatpush.bf16.msra.mxu0 %v985
        %1110 = vmatpush.bf16.msra.mxu0 %v981
        %1111 = vmatpush.bf16.msra.mxu0 %v977
        %1112 = vmatpush.bf16.msra.mxu0 %v973
        %1113 = vmatmul.bf16.gmra.mxu0 %v543
        %v1114 = vpop.f32.mrf.mxu0
        %v1115 = vadd.f32 %v1086, %v1114
        %v1116 = vpop.f32.mrf.mxu0
        %v1117 = vadd.f32 %v1088, %v1116
        %1118 = vmatmul.bf16.gmra.mxu0 %v547
        %v1119 = vpop.f32.mrf.mxu0
        %v1120 = vadd.f32 %v1091, %v1119
        %v1121 = vpop.f32.mrf.mxu0
        %v1122 = vadd.f32 %v1093, %v1121
        %1123 = vmatmul.bf16.gmra.mxu0 %v551
        %v1124 = vpop.f32.mrf.mxu0
        %v1125 = vadd.f32 %v1096, %v1124
        %v1126 = vpop.f32.mrf.mxu0
        %v1127 = vadd.f32 %v1098, %v1126
        %1128 = vmatmul.bf16.gmra.mxu0 %v555
        %v1129 = vpop.f32.mrf.mxu0
        %v1130 = vadd.f32 %v1101, %v1129
        %v1131 = vpop.f32.mrf.mxu0
        %v1132 = vadd.f32 %v1103, %v1131
        %1133 = vdwg.mxu0
        %1134 = vmatpush.bf16.msra.mxu0 %v1033
        %1135 = vmatpush.bf16.msra.mxu0 %v1029
        %1136 = vmatpush.bf16.msra.mxu0 %v1025
        %1137 = vmatpush.bf16.msra.mxu0 %v1021
        %1138 = vmatpush.bf16.msra.mxu0 %v1017
        %1139 = vmatpush.bf16.msra.mxu0 %v1013
        %1140 = vmatpush.bf16.msra.mxu0 %v1009
        %1141 = vmatpush.bf16.msra.mxu0 %v1005
        %1142 = vmatmul.bf16.gmra.mxu0 %v544
        %v1143 = vpop.f32.mrf.mxu0
        %v1144 = vadd.f32 %v1115, %v1143
        %v1145 = vpop.f32.mrf.mxu0
        %v1146 = vadd.f32 %v1117, %v1145
        %1147 = vmatmul.bf16.gmra.mxu0 %v548
        %v1148 = vpop.f32.mrf.mxu0
        %v1149 = vadd.f32 %v1120, %v1148
        %v1150 = vpop.f32.mrf.mxu0
        %v1151 = vadd.f32 %v1122, %v1150
        %1152 = vmatmul.bf16.gmra.mxu0 %v552
        %v1153 = vpop.f32.mrf.mxu0
        %v1154 = vadd.f32 %v1125, %v1153
        %v1155 = vpop.f32.mrf.mxu0
        %v1156 = vadd.f32 %v1127, %v1155
        %1157 = vmatmul.bf16.gmra.mxu0 %v556
        %v1158 = vpop.f32.mrf.mxu0
        %v1159 = vadd.f32 %v1130, %v1158
        %v1160 = vpop.f32.mrf.mxu0
        %v1161 = vadd.f32 %v1132, %v1160
        %1162 = vdwg.mxu0
        %1163 = vmatpush.bf16.msra.mxu0 %v938
        %1164 = vmatpush.bf16.msra.mxu0 %v934
        %1165 = vmatpush.bf16.msra.mxu0 %v930
        %1166 = vmatpush.bf16.msra.mxu0 %v926
        %1167 = vmatpush.bf16.msra.mxu0 %v922
        %1168 = vmatpush.bf16.msra.mxu0 %v918
        %1169 = vmatpush.bf16.msra.mxu0 %v914
        %1170 = vmatpush.bf16.msra.mxu0 %v910
        %1171 = vmatmul.bf16.gmra.mxu0 %v541
        %v1172 = vpop.f32.mrf.mxu0
        %v1173 = vadd.f32 %v1040, %v1172
        %v1174 = vpop.f32.mrf.mxu0
        %v1175 = vadd.f32 %v1040, %v1174
        %1176 = vmatmul.bf16.gmra.mxu0 %v545
        %v1177 = vpop.f32.mrf.mxu0
        %v1178 = vadd.f32 %v1040, %v1177
        %v1179 = vpop.f32.mrf.mxu0
        %v1180 = vadd.f32 %v1040, %v1179
        %1181 = vmatmul.bf16.gmra.mxu0 %v549
        %v1182 = vpop.f32.mrf.mxu0
        %v1183 = vadd.f32 %v1040, %v1182
        %v1184 = vpop.f32.mrf.mxu0
        %v1185 = vadd.f32 %v1040, %v1184
        %1186 = vmatmul.bf16.gmra.mxu0 %v553
        %v1187 = vpop.f32.mrf.mxu0
        %v1188 = vadd.f32 %v1040, %v1187
        %v1189 = vpop.f32.mrf.mxu0
        %v1190 = vadd.f32 %v1040, %v1189
        %1191 = vdwg.mxu0
        %1192 = vmatpush.bf16.msra.mxu0 %v970
        %1193 = vmatpush.bf16.msra.mxu0 %v966
        %1194 = vmatpush.bf16.msra.mxu0 %v962
        %1195 = vmatpush.bf16.msra.mxu0 %v958
        %1196 = vmatpush.bf16.msra.mxu0 %v954
        %1197 = vmatpush.bf16.msra.mxu0 %v950
        %1198 = vmatpush.bf16.msra.mxu0 %v946
        %1199 = vmatpush.bf16.msra.mxu0 %v942
        %1200 = vmatmul.bf16.gmra.mxu0 %v542
        %v1201 = vpop.f32.mrf.mxu0
        %v1202 = vadd.f32 %v1173, %v1201
        %v1203 = vpop.f32.mrf.mxu0
        %v1204 = vadd.f32 %v1175, %v1203
        %1205 = vmatmul.bf16.gmra.mxu0 %v546
        %v1206 = vpop.f32.mrf.mxu0
        %v1207 = vadd.f32 %v1178, %v1206
        %v1208 = vpop.f32.mrf.mxu0
        %v1209 = vadd.f32 %v1180, %v1208
        %1210 = vmatmul.bf16.gmra.mxu0 %v550
        %v1211 = vpop.f32.mrf.mxu0
        %v1212 = vadd.f32 %v1183, %v1211
        %v1213 = vpop.f32.mrf.mxu0
        %v1214 = vadd.f32 %v1185, %v1213
        %1215 = vmatmul.bf16.gmra.mxu0 %v554
        %v1216 = vpop.f32.mrf.mxu0
        %v1217 = vadd.f32 %v1188, %v1216
        %v1218 = vpop.f32.mrf.mxu0
        %v1219 = vadd.f32 %v1190, %v1218
        %1220 = vdwg.mxu0
        %1221 = vmatpush.bf16.msra.mxu0 %v1002
        %1222 = vmatpush.bf16.msra.mxu0 %v998
        %1223 = vmatpush.bf16.msra.mxu0 %v994
        %1224 = vmatpush.bf16.msra.mxu0 %v990
        %1225 = vmatpush.bf16.msra.mxu0 %v986
        %1226 = vmatpush.bf16.msra.mxu0 %v982
        %1227 = vmatpush.bf16.msra.mxu0 %v978
        %1228 = vmatpush.bf16.msra.mxu0 %v974
        %1229 = vmatmul.bf16.gmra.mxu0 %v543
        %v1230 = vpop.f32.mrf.mxu0
        %v1231 = vadd.f32 %v1202, %v1230
        %v1232 = vpop.f32.mrf.mxu0
        %v1233 = vadd.f32 %v1204, %v1232
        %1234 = vmatmul.bf16.gmra.mxu0 %v547
        %v1235 = vpop.f32.mrf.mxu0
        %v1236 = vadd.f32 %v1207, %v1235
        %v1237 = vpop.f32.mrf.mxu0
        %v1238 = vadd.f32 %v1209, %v1237
        %1239 = vmatmul.bf16.gmra.mxu0 %v551
        %v1240 = vpop.f32.mrf.mxu0
        %v1241 = vadd.f32 %v1212, %v1240
        %v1242 = vpop.f32.mrf.mxu0
        %v1243 = vadd.f32 %v1214, %v1242
        %1244 = vmatmul.bf16.gmra.mxu0 %v555
        %v1245 = vpop.f32.mrf.mxu0
        %v1246 = vadd.f32 %v1217, %v1245
        %v1247 = vpop.f32.mrf.mxu0
        %v1248 = vadd.f32 %v1219, %v1247
        %1249 = vdwg.mxu0
        %1250 = vmatpush.bf16.msra.mxu0 %v1034
        %1251 = vmatpush.bf16.msra.mxu0 %v1030
        %1252 = vmatpush.bf16.msra.mxu0 %v1026
        %1253 = vmatpush.bf16.msra.mxu0 %v1022
        %1254 = vmatpush.bf16.msra.mxu0 %v1018
        %1255 = vmatpush.bf16.msra.mxu0 %v1014
        %1256 = vmatpush.bf16.msra.mxu0 %v1010
        %1257 = vmatpush.bf16.msra.mxu0 %v1006
        %1258 = vmatmul.bf16.gmra.mxu0 %v544
        %v1259 = vpop.f32.mrf.mxu0
        %v1260 = vadd.f32 %v1231, %v1259
        %v1261 = vpop.f32.mrf.mxu0
        %v1262 = vadd.f32 %v1233, %v1261
        %1263 = vmatmul.bf16.gmra.mxu0 %v548
        %v1264 = vpop.f32.mrf.mxu0
        %v1265 = vadd.f32 %v1236, %v1264
        %v1266 = vpop.f32.mrf.mxu0
        %v1267 = vadd.f32 %v1238, %v1266
        %1268 = vmatmul.bf16.gmra.mxu0 %v552
        %v1269 = vpop.f32.mrf.mxu0
        %v1270 = vadd.f32 %v1241, %v1269
        %v1271 = vpop.f32.mrf.mxu0
        %v1272 = vadd.f32 %v1243, %v1271
        %1273 = vmatmul.bf16.gmra.mxu0 %v556
        %v1274 = vpop.f32.mrf.mxu0
        %v1275 = vadd.f32 %v1246, %v1274
        %v1276 = vpop.f32.mrf.mxu0
        %v1277 = vadd.f32 %v1248, %v1276
        %1278 = vdwg.mxu0
        %1279 = vmatpush.bf16.msra.mxu0 %v939
        %1280 = vmatpush.bf16.msra.mxu0 %v935
        %1281 = vmatpush.bf16.msra.mxu0 %v931
        %1282 = vmatpush.bf16.msra.mxu0 %v927
        %1283 = vmatpush.bf16.msra.mxu0 %v923
        %1284 = vmatpush.bf16.msra.mxu0 %v919
        %1285 = vmatpush.bf16.msra.mxu0 %v915
        %1286 = vmatpush.bf16.msra.mxu0 %v911
        %1287 = vmatmul.bf16.gmra.mxu0 %v541
        %v1288 = vpop.f32.mrf.mxu0
        %v1289 = vadd.f32 %v1041, %v1288
        %v1290 = vpop.f32.mrf.mxu0
        %v1291 = vadd.f32 %v1041, %v1290
        %1292 = vmatmul.bf16.gmra.mxu0 %v545
        %v1293 = vpop.f32.mrf.mxu0
        %v1294 = vadd.f32 %v1041, %v1293
        %v1295 = vpop.f32.mrf.mxu0
        %v1296 = vadd.f32 %v1041, %v1295
        %1297 = vmatmul.bf16.gmra.mxu0 %v549
        %v1298 = vpop.f32.mrf.mxu0
        %v1299 = vadd.f32 %v1041, %v1298
        %v1300 = vpop.f32.mrf.mxu0
        %v1301 = vadd.f32 %v1041, %v1300
        %1302 = vmatmul.bf16.gmra.mxu0 %v553
        %v1303 = vpop.f32.mrf.mxu0
        %v1304 = vadd.f32 %v1041, %v1303
        %v1305 = vpop.f32.mrf.mxu0
        %v1306 = vadd.f32 %v1041, %v1305
        %1307 = vdwg.mxu0
        %1308 = vmatpush.bf16.msra.mxu0 %v971
        %1309 = vmatpush.bf16.msra.mxu0 %v967
        %1310 = vmatpush.bf16.msra.mxu0 %v963
        %1311 = vmatpush.bf16.msra.mxu0 %v959
        %1312 = vmatpush.bf16.msra.mxu0 %v955
        %1313 = vmatpush.bf16.msra.mxu0 %v951
        %1314 = vmatpush.bf16.msra.mxu0 %v947
        %1315 = vmatpush.bf16.msra.mxu0 %v943
        %1316 = vmatmul.bf16.gmra.mxu0 %v542
        %v1317 = vpop.f32.mrf.mxu0
        %v1318 = vadd.f32 %v1289, %v1317
        %v1319 = vpop.f32.mrf.mxu0
        %v1320 = vadd.f32 %v1291, %v1319
        %1321 = vmatmul.bf16.gmra.mxu0 %v546
        %v1322 = vpop.f32.mrf.mxu0
        %v1323 = vadd.f32 %v1294, %v1322
        %v1324 = vpop.f32.mrf.mxu0
        %v1325 = vadd.f32 %v1296, %v1324
        %1326 = vmatmul.bf16.gmra.mxu0 %v550
        %v1327 = vpop.f32.mrf.mxu0
        %v1328 = vadd.f32 %v1299, %v1327
        %v1329 = vpop.f32.mrf.mxu0
        %v1330 = vadd.f32 %v1301, %v1329
        %1331 = vmatmul.bf16.gmra.mxu0 %v554
        %v1332 = vpop.f32.mrf.mxu0
        %v1333 = vadd.f32 %v1304, %v1332
        %v1334 = vpop.f32.mrf.mxu0
        %v1335 = vadd.f32 %v1306, %v1334
        %1336 = vdwg.mxu0
        %1337 = vmatpush.bf16.msra.mxu0 %v1003
        %1338 = vmatpush.bf16.msra.mxu0 %v999
        %1339 = vmatpush.bf16.msra.mxu0 %v995
        %1340 = vmatpush.bf16.msra.mxu0 %v991
        %1341 = vmatpush.bf16.msra.mxu0 %v987
        %1342 = vmatpush.bf16.msra.mxu0 %v983
        %1343 = vmatpush.bf16.msra.mxu0 %v979
        %1344 = vmatpush.bf16.msra.mxu0 %v975
        %1345 = vmatmul.bf16.gmra.mxu0 %v543
        %v1346 = vpop.f32.mrf.mxu0
        %v1347 = vadd.f32 %v1318, %v1346
        %v1348 = vpop.f32.mrf.mxu0
        %v1349 = vadd.f32 %v1320, %v1348
        %1350 = vmatmul.bf16.gmra.mxu0 %v547
        %v1351 = vpop.f32.mrf.mxu0
        %v1352 = vadd.f32 %v1323, %v1351
        %v1353 = vpop.f32.mrf.mxu0
        %v1354 = vadd.f32 %v1325, %v1353
        %1355 = vmatmul.bf16.gmra.mxu0 %v551
        %v1356 = vpop.f32.mrf.mxu0
        %v1357 = vadd.f32 %v1328, %v1356
        %v1358 = vpop.f32.mrf.mxu0
        %v1359 = vadd.f32 %v1330, %v1358
        %1360 = vmatmul.bf16.gmra.mxu0 %v555
        %v1361 = vpop.f32.mrf.mxu0
        %v1362 = vadd.f32 %v1333, %v1361
        %v1363 = vpop.f32.mrf.mxu0
        %v1364 = vadd.f32 %v1335, %v1363
        %1365 = vdwg.mxu0
        %1366 = vmatpush.bf16.msra.mxu0 %v1035
        %1367 = vmatpush.bf16.msra.mxu0 %v1031
        %1368 = vmatpush.bf16.msra.mxu0 %v1027
        %1369 = vmatpush.bf16.msra.mxu0 %v1023
        %1370 = vmatpush.bf16.msra.mxu0 %v1019
        %1371 = vmatpush.bf16.msra.mxu0 %v1015
        %1372 = vmatpush.bf16.msra.mxu0 %v1011
        %1373 = vmatpush.bf16.msra.mxu0 %v1007
        %1374 = vmatmul.bf16.gmra.mxu0 %v544
        %v1375 = vpop.f32.mrf.mxu0
        %v1376 = vadd.f32 %v1347, %v1375
        %v1377 = vpop.f32.mrf.mxu0
        %v1378 = vadd.f32 %v1349, %v1377
        %1379 = vmatmul.bf16.gmra.mxu0 %v548
        %v1380 = vpop.f32.mrf.mxu0
        %v1381 = vadd.f32 %v1352, %v1380
        %v1382 = vpop.f32.mrf.mxu0
        %v1383 = vadd.f32 %v1354, %v1382
        %1384 = vmatmul.bf16.gmra.mxu0 %v552
        %v1385 = vpop.f32.mrf.mxu0
        %v1386 = vadd.f32 %v1357, %v1385
        %v1387 = vpop.f32.mrf.mxu0
        %v1388 = vadd.f32 %v1359, %v1387
        %1389 = vmatmul.bf16.gmra.mxu0 %v556
        %v1390 = vpop.f32.mrf.mxu0
        %v1391 = vadd.f32 %v1362, %v1390
        %v1392 = vpop.f32.mrf.mxu0
        %v1393 = vadd.f32 %v1364, %v1392
        %1394 = vdwg.mxu0
        %1395 = vmatpush.bf16.msra.mxu0 %v940
        %1396 = vmatpush.bf16.msra.mxu0 %v936
        %1397 = vmatpush.bf16.msra.mxu0 %v932
        %1398 = vmatpush.bf16.msra.mxu0 %v928
        %1399 = vmatpush.bf16.msra.mxu0 %v924
        %1400 = vmatpush.bf16.msra.mxu0 %v920
        %1401 = vmatpush.bf16.msra.mxu0 %v916
        %1402 = vmatpush.bf16.msra.mxu0 %v912
        %1403 = vmatmul.bf16.gmra.mxu0 %v541
        %v1404 = vpop.f32.mrf.mxu0
        %v1405 = vadd.f32 %v1042, %v1404
        %v1406 = vpop.f32.mrf.mxu0
        %v1407 = vadd.f32 %v1042, %v1406
        %1408 = vmatmul.bf16.gmra.mxu0 %v545
        %v1409 = vpop.f32.mrf.mxu0
        %v1410 = vadd.f32 %v1042, %v1409
        %v1411 = vpop.f32.mrf.mxu0
        %v1412 = vadd.f32 %v1042, %v1411
        %1413 = vmatmul.bf16.gmra.mxu0 %v549
        %v1414 = vpop.f32.mrf.mxu0
        %v1415 = vadd.f32 %v1042, %v1414
        %v1416 = vpop.f32.mrf.mxu0
        %v1417 = vadd.f32 %v1042, %v1416
        %1418 = vmatmul.bf16.gmra.mxu0 %v553
        %v1419 = vpop.f32.mrf.mxu0
        %v1420 = vadd.f32 %v1042, %v1419
        %v1421 = vpop.f32.mrf.mxu0
        %v1422 = vadd.f32 %v1042, %v1421
        %1423 = vdwg.mxu0
        %1424 = vmatpush.bf16.msra.mxu0 %v972
        %1425 = vmatpush.bf16.msra.mxu0 %v968
        %1426 = vmatpush.bf16.msra.mxu0 %v964
        %1427 = vmatpush.bf16.msra.mxu0 %v960
        %1428 = vmatpush.bf16.msra.mxu0 %v956
        %1429 = vmatpush.bf16.msra.mxu0 %v952
        %1430 = vmatpush.bf16.msra.mxu0 %v948
        %1431 = vmatpush.bf16.msra.mxu0 %v944
        %1432 = vmatmul.bf16.gmra.mxu0 %v542
        %v1433 = vpop.f32.mrf.mxu0
        %v1434 = vadd.f32 %v1405, %v1433
        %v1435 = vpop.f32.mrf.mxu0
        %v1436 = vadd.f32 %v1407, %v1435
        %1437 = vmatmul.bf16.gmra.mxu0 %v546
        %v1438 = vpop.f32.mrf.mxu0
        %v1439 = vadd.f32 %v1410, %v1438
        %v1440 = vpop.f32.mrf.mxu0
        %v1441 = vadd.f32 %v1412, %v1440
        %1442 = vmatmul.bf16.gmra.mxu0 %v550
        %v1443 = vpop.f32.mrf.mxu0
        %v1444 = vadd.f32 %v1415, %v1443
        %v1445 = vpop.f32.mrf.mxu0
        %v1446 = vadd.f32 %v1417, %v1445
        %1447 = vmatmul.bf16.gmra.mxu0 %v554
        %v1448 = vpop.f32.mrf.mxu0
        %v1449 = vadd.f32 %v1420, %v1448
        %v1450 = vpop.f32.mrf.mxu0
        %v1451 = vadd.f32 %v1422, %v1450
        %1452 = vdwg.mxu0
        %1453 = vmatpush.bf16.msra.mxu0 %v1004
        %1454 = vmatpush.bf16.msra.mxu0 %v1000
        %1455 = vmatpush.bf16.msra.mxu0 %v996
        %1456 = vmatpush.bf16.msra.mxu0 %v992
        %1457 = vmatpush.bf16.msra.mxu0 %v988
        %1458 = vmatpush.bf16.msra.mxu0 %v984
        %1459 = vmatpush.bf16.msra.mxu0 %v980
        %1460 = vmatpush.bf16.msra.mxu0 %v976
        %1461 = vmatmul.bf16.gmra.mxu0 %v543
        %v1462 = vpop.f32.mrf.mxu0
        %v1463 = vadd.f32 %v1434, %v1462
        %v1464 = vpop.f32.mrf.mxu0
        %v1465 = vadd.f32 %v1436, %v1464
        %1466 = vmatmul.bf16.gmra.mxu0 %v547
        %v1467 = vpop.f32.mrf.mxu0
        %v1468 = vadd.f32 %v1439, %v1467
        %v1469 = vpop.f32.mrf.mxu0
        %v1470 = vadd.f32 %v1441, %v1469
        %1471 = vmatmul.bf16.gmra.mxu0 %v551
        %v1472 = vpop.f32.mrf.mxu0
        %v1473 = vadd.f32 %v1444, %v1472
        %v1474 = vpop.f32.mrf.mxu0
        %v1475 = vadd.f32 %v1446, %v1474
        %1476 = vmatmul.bf16.gmra.mxu0 %v555
        %v1477 = vpop.f32.mrf.mxu0
        %v1478 = vadd.f32 %v1449, %v1477
        %v1479 = vpop.f32.mrf.mxu0
        %v1480 = vadd.f32 %v1451, %v1479
        %1481 = vdwg.mxu0
        %1482 = vmatpush.bf16.msra.mxu0 %v1036
        %1483 = vmatpush.bf16.msra.mxu0 %v1032
        %1484 = vmatpush.bf16.msra.mxu0 %v1028
        %1485 = vmatpush.bf16.msra.mxu0 %v1024
        %1486 = vmatpush.bf16.msra.mxu0 %v1020
        %1487 = vmatpush.bf16.msra.mxu0 %v1016
        %1488 = vmatpush.bf16.msra.mxu0 %v1012
        %1489 = vmatpush.bf16.msra.mxu0 %v1008
        %1490 = vmatmul.bf16.gmra.mxu0 %v544
        %v1491 = vpop.f32.mrf.mxu0
        %v1492 = vadd.f32 %v1463, %v1491
        %v1493 = vpop.f32.mrf.mxu0
        %v1494 = vadd.f32 %v1465, %v1493
        %1495 = vmatmul.bf16.gmra.mxu0 %v548
        %v1496 = vpop.f32.mrf.mxu0
        %v1497 = vadd.f32 %v1468, %v1496
        %v1498 = vpop.f32.mrf.mxu0
        %v1499 = vadd.f32 %v1470, %v1498
        %1500 = vmatmul.bf16.gmra.mxu0 %v552
        %v1501 = vpop.f32.mrf.mxu0
        %v1502 = vadd.f32 %v1473, %v1501
        %v1503 = vpop.f32.mrf.mxu0
        %v1504 = vadd.f32 %v1475, %v1503
        %1505 = vmatmul.bf16.gmra.mxu0 %v556
        %v1506 = vpop.f32.mrf.mxu0
        %v1507 = vadd.f32 %v1478, %v1506
        %v1508 = vpop.f32.mrf.mxu0
        %v1509 = vadd.f32 %v1480, %v1508
        %1510 = vdwg.mxu0
        %v1511 = vld [vmem:[#allocation8] sm:$0xff]
        %v1512 = vld [vmem:[#allocation8 + $0x8] sm:$0xff]
        %v1513 = vld [vmem:[#allocation8 + $0x10] sm:$0xff]
        %v1514 = vld [vmem:[#allocation8 + $0x18] sm:$0xff]
        %v1515 = vld [vmem:[#allocation8 + $0x20] sm:$0xff]
        %v1516 = vld [vmem:[#allocation8 + $0x28] sm:$0xff]
        %v1517 = vld [vmem:[#allocation8 + $0x30] sm:$0xff]
        %v1518 = vld [vmem:[#allocation8 + $0x38] sm:$0xff]
        %v1519 = vld [vmem:[#allocation8 + $0x40] sm:$0xff]
        %v1520 = vld [vmem:[#allocation8 + $0x48] sm:$0xff]
        %v1521 = vld [vmem:[#allocation8 + $0x50] sm:$0xff]
        %v1522 = vld [vmem:[#allocation8 + $0x58] sm:$0xff]
        %v1523 = vld [vmem:[#allocation8 + $0x60] sm:$0xff]
        %v1524 = vld [vmem:[#allocation8 + $0x68] sm:$0xff]
        %v1525 = vld [vmem:[#allocation8 + $0x70] sm:$0xff]
        %v1526 = vld [vmem:[#allocation8 + $0x78] sm:$0xff]
        %v1527 = vld [vmem:[#allocation8 + $0x80] sm:$0xff]
        %v1528 = vld [vmem:[#allocation8 + $0x88] sm:$0xff]
        %v1529 = vld [vmem:[#allocation8 + $0x90] sm:$0xff]
        %v1530 = vld [vmem:[#allocation8 + $0x98] sm:$0xff]
        %v1531 = vld [vmem:[#allocation8 + $0xa0] sm:$0xff]
        %v1532 = vld [vmem:[#allocation8 + $0xa8] sm:$0xff]
        %v1533 = vld [vmem:[#allocation8 + $0xb0] sm:$0xff]
        %v1534 = vld [vmem:[#allocation8 + $0xb8] sm:$0xff]
        %v1535 = vld [vmem:[#allocation8 + $0xc0] sm:$0xff]
        %v1536 = vld [vmem:[#allocation8 + $0xc8] sm:$0xff]
        %v1537 = vld [vmem:[#allocation8 + $0xd0] sm:$0xff]
        %v1538 = vld [vmem:[#allocation8 + $0xd8] sm:$0xff]
        %v1539 = vld [vmem:[#allocation8 + $0xe0] sm:$0xff]
        %v1540 = vld [vmem:[#allocation8 + $0xe8] sm:$0xff]
        %v1541 = vld [vmem:[#allocation8 + $0xf0] sm:$0xff]
        %v1542 = vld [vmem:[#allocation8 + $0xf8] sm:$0xff]
        %v1543 = vld [vmem:[#allocation8 + $0x100] sm:$0xff]
        %v1544 = vld [vmem:[#allocation8 + $0x108] sm:$0xff]
        %v1545 = vld [vmem:[#allocation8 + $0x110] sm:$0xff]
        %v1546 = vld [vmem:[#allocation8 + $0x118] sm:$0xff]
        %v1547 = vld [vmem:[#allocation8 + $0x120] sm:$0xff]
        %v1548 = vld [vmem:[#allocation8 + $0x128] sm:$0xff]
        %v1549 = vld [vmem:[#allocation8 + $0x130] sm:$0xff]
        %v1550 = vld [vmem:[#allocation8 + $0x138] sm:$0xff]
        %v1551 = vld [vmem:[#allocation8 + $0x140] sm:$0xff]
        %v1552 = vld [vmem:[#allocation8 + $0x148] sm:$0xff]
        %v1553 = vld [vmem:[#allocation8 + $0x150] sm:$0xff]
        %v1554 = vld [vmem:[#allocation8 + $0x158] sm:$0xff]
        %v1555 = vld [vmem:[#allocation8 + $0x160] sm:$0xff]
        %v1556 = vld [vmem:[#allocation8 + $0x168] sm:$0xff]
        %v1557 = vld [vmem:[#allocation8 + $0x170] sm:$0xff]
        %v1558 = vld [vmem:[#allocation8 + $0x178] sm:$0xff]
        %v1559 = vld [vmem:[#allocation8 + $0x180] sm:$0xff]
        %v1560 = vld [vmem:[#allocation8 + $0x188] sm:$0xff]
        %v1561 = vld [vmem:[#allocation8 + $0x190] sm:$0xff]
        %v1562 = vld [vmem:[#allocation8 + $0x198] sm:$0xff]
        %v1563 = vld [vmem:[#allocation8 + $0x1a0] sm:$0xff]
        %v1564 = vld [vmem:[#allocation8 + $0x1a8] sm:$0xff]
        %v1565 = vld [vmem:[#allocation8 + $0x1b0] sm:$0xff]
        %v1566 = vld [vmem:[#allocation8 + $0x1b8] sm:$0xff]
        %v1567 = vld [vmem:[#allocation8 + $0x1c0] sm:$0xff]
        %v1568 = vld [vmem:[#allocation8 + $0x1c8] sm:$0xff]
        %v1569 = vld [vmem:[#allocation8 + $0x1d0] sm:$0xff]
        %v1570 = vld [vmem:[#allocation8 + $0x1d8] sm:$0xff]
        %v1571 = vld [vmem:[#allocation8 + $0x1e0] sm:$0xff]
        %v1572 = vld [vmem:[#allocation8 + $0x1e8] sm:$0xff]
        %v1573 = vld [vmem:[#allocation8 + $0x1f0] sm:$0xff]
        %v1574 = vld [vmem:[#allocation8 + $0x1f8] sm:$0xff]
        %v1575 = vld [vmem:[#allocation8 + $0x200] sm:$0xff]
        %v1576 = vld [vmem:[#allocation8 + $0x208] sm:$0xff]
        %v1577 = vld [vmem:[#allocation8 + $0x210] sm:$0xff]
        %v1578 = vld [vmem:[#allocation8 + $0x218] sm:$0xff]
        %v1579 = vld [vmem:[#allocation8 + $0x220] sm:$0xff]
        %v1580 = vld [vmem:[#allocation8 + $0x228] sm:$0xff]
        %v1581 = vld [vmem:[#allocation8 + $0x230] sm:$0xff]
        %v1582 = vld [vmem:[#allocation8 + $0x238] sm:$0xff]
        %v1583 = vld [vmem:[#allocation8 + $0x240] sm:$0xff]
        %v1584 = vld [vmem:[#allocation8 + $0x248] sm:$0xff]
        %v1585 = vld [vmem:[#allocation8 + $0x250] sm:$0xff]
        %v1586 = vld [vmem:[#allocation8 + $0x258] sm:$0xff]
        %v1587 = vld [vmem:[#allocation8 + $0x260] sm:$0xff]
        %v1588 = vld [vmem:[#allocation8 + $0x268] sm:$0xff]
        %v1589 = vld [vmem:[#allocation8 + $0x270] sm:$0xff]
        %v1590 = vld [vmem:[#allocation8 + $0x278] sm:$0xff]
        %v1591 = vld [vmem:[#allocation8 + $0x280] sm:$0xff]
        %v1592 = vld [vmem:[#allocation8 + $0x288] sm:$0xff]
        %v1593 = vld [vmem:[#allocation8 + $0x290] sm:$0xff]
        %v1594 = vld [vmem:[#allocation8 + $0x298] sm:$0xff]
        %v1595 = vld [vmem:[#allocation8 + $0x2a0] sm:$0xff]
        %v1596 = vld [vmem:[#allocation8 + $0x2a8] sm:$0xff]
        %v1597 = vld [vmem:[#allocation8 + $0x2b0] sm:$0xff]
        %v1598 = vld [vmem:[#allocation8 + $0x2b8] sm:$0xff]
        %v1599 = vld [vmem:[#allocation8 + $0x2c0] sm:$0xff]
        %v1600 = vld [vmem:[#allocation8 + $0x2c8] sm:$0xff]
        %v1601 = vld [vmem:[#allocation8 + $0x2d0] sm:$0xff]
        %v1602 = vld [vmem:[#allocation8 + $0x2d8] sm:$0xff]
        %v1603 = vld [vmem:[#allocation8 + $0x2e0] sm:$0xff]
        %v1604 = vld [vmem:[#allocation8 + $0x2e8] sm:$0xff]
        %v1605 = vld [vmem:[#allocation8 + $0x2f0] sm:$0xff]
        %v1606 = vld [vmem:[#allocation8 + $0x2f8] sm:$0xff]
        %v1607 = vld [vmem:[#allocation8 + $0x300] sm:$0xff]
        %v1608 = vld [vmem:[#allocation8 + $0x308] sm:$0xff]
        %v1609 = vld [vmem:[#allocation8 + $0x310] sm:$0xff]
        %v1610 = vld [vmem:[#allocation8 + $0x318] sm:$0xff]
        %v1611 = vld [vmem:[#allocation8 + $0x320] sm:$0xff]
        %v1612 = vld [vmem:[#allocation8 + $0x328] sm:$0xff]
        %v1613 = vld [vmem:[#allocation8 + $0x330] sm:$0xff]
        %v1614 = vld [vmem:[#allocation8 + $0x338] sm:$0xff]
        %v1615 = vld [vmem:[#allocation8 + $0x340] sm:$0xff]
        %v1616 = vld [vmem:[#allocation8 + $0x348] sm:$0xff]
        %v1617 = vld [vmem:[#allocation8 + $0x350] sm:$0xff]
        %v1618 = vld [vmem:[#allocation8 + $0x358] sm:$0xff]
        %v1619 = vld [vmem:[#allocation8 + $0x360] sm:$0xff]
        %v1620 = vld [vmem:[#allocation8 + $0x368] sm:$0xff]
        %v1621 = vld [vmem:[#allocation8 + $0x370] sm:$0xff]
        %v1622 = vld [vmem:[#allocation8 + $0x378] sm:$0xff]
        %v1623 = vld [vmem:[#allocation8 + $0x380] sm:$0xff]
        %v1624 = vld [vmem:[#allocation8 + $0x388] sm:$0xff]
        %v1625 = vld [vmem:[#allocation8 + $0x390] sm:$0xff]
        %v1626 = vld [vmem:[#allocation8 + $0x398] sm:$0xff]
        %v1627 = vld [vmem:[#allocation8 + $0x3a0] sm:$0xff]
        %v1628 = vld [vmem:[#allocation8 + $0x3a8] sm:$0xff]
        %v1629 = vld [vmem:[#allocation8 + $0x3b0] sm:$0xff]
        %v1630 = vld [vmem:[#allocation8 + $0x3b8] sm:$0xff]
        %v1631 = vld [vmem:[#allocation8 + $0x3c0] sm:$0xff]
        %v1632 = vld [vmem:[#allocation8 + $0x3c8] sm:$0xff]
        %v1633 = vld [vmem:[#allocation8 + $0x3d0] sm:$0xff]
        %v1634 = vld [vmem:[#allocation8 + $0x3d8] sm:$0xff]
        %v1635 = vld [vmem:[#allocation8 + $0x3e0] sm:$0xff]
        %v1636 = vld [vmem:[#allocation8 + $0x3e8] sm:$0xff]
        %v1637 = vld [vmem:[#allocation8 + $0x3f0] sm:$0xff]
        %v1638 = vld [vmem:[#allocation8 + $0x3f8] sm:$0xff]
        %v1639 = vld [vmem:[#allocation8 + $0x400] sm:$0xff]
        %v1640 = vld [vmem:[#allocation8 + $0x408] sm:$0xff]
        %v1641 = vld [vmem:[#allocation8 + $0x410] sm:$0xff]
        %v1642 = vld [vmem:[#allocation8 + $0x418] sm:$0xff]
        %v1643 = vld [vmem:[#allocation8 + $0x420] sm:$0xff]
        %v1644 = vld [vmem:[#allocation8 + $0x428] sm:$0xff]
        %v1645 = vld [vmem:[#allocation8 + $0x430] sm:$0xff]
        %v1646 = vld [vmem:[#allocation8 + $0x438] sm:$0xff]
        %v1647 = vld [vmem:[#allocation8 + $0x440] sm:$0xff]
        %v1648 = vld [vmem:[#allocation8 + $0x448] sm:$0xff]
        %v1649 = vld [vmem:[#allocation8 + $0x450] sm:$0xff]
        %v1650 = vld [vmem:[#allocation8 + $0x458] sm:$0xff]
        %v1651 = vld [vmem:[#allocation8 + $0x460] sm:$0xff]
        %v1652 = vld [vmem:[#allocation8 + $0x468] sm:$0xff]
        %v1653 = vld [vmem:[#allocation8 + $0x470] sm:$0xff]
        %v1654 = vld [vmem:[#allocation8 + $0x478] sm:$0xff]
        %v1655 = vld [vmem:[#allocation8 + $0x480] sm:$0xff]
        %v1656 = vld [vmem:[#allocation8 + $0x488] sm:$0xff]
        %v1657 = vld [vmem:[#allocation8 + $0x490] sm:$0xff]
        %v1658 = vld [vmem:[#allocation8 + $0x498] sm:$0xff]
        %v1659 = vld [vmem:[#allocation8 + $0x4a0] sm:$0xff]
        %v1660 = vld [vmem:[#allocation8 + $0x4a8] sm:$0xff]
        %v1661 = vld [vmem:[#allocation8 + $0x4b0] sm:$0xff]
        %v1662 = vld [vmem:[#allocation8 + $0x4b8] sm:$0xff]
        %v1663 = vld [vmem:[#allocation8 + $0x4c0] sm:$0xff]
        %v1664 = vld [vmem:[#allocation8 + $0x4c8] sm:$0xff]
        %v1665 = vld [vmem:[#allocation8 + $0x4d0] sm:$0xff]
        %v1666 = vld [vmem:[#allocation8 + $0x4d8] sm:$0xff]
        %v1667 = vld [vmem:[#allocation8 + $0x4e0] sm:$0xff]
        %v1668 = vld [vmem:[#allocation8 + $0x4e8] sm:$0xff]
        %v1669 = vld [vmem:[#allocation8 + $0x4f0] sm:$0xff]
        %v1670 = vld [vmem:[#allocation8 + $0x4f8] sm:$0xff]
        %v1671 = vld [vmem:[#allocation8 + $0x500] sm:$0xff]
        %v1672 = vld [vmem:[#allocation8 + $0x508] sm:$0xff]
        %v1673 = vld [vmem:[#allocation8 + $0x510] sm:$0xff]
        %v1674 = vld [vmem:[#allocation8 + $0x518] sm:$0xff]
        %v1675 = vld [vmem:[#allocation8 + $0x520] sm:$0xff]
        %v1676 = vld [vmem:[#allocation8 + $0x528] sm:$0xff]
        %v1677 = vld [vmem:[#allocation8 + $0x530] sm:$0xff]
        %v1678 = vld [vmem:[#allocation8 + $0x538] sm:$0xff]
        %v1679 = vld [vmem:[#allocation8 + $0x540] sm:$0xff]
        %v1680 = vld [vmem:[#allocation8 + $0x548] sm:$0xff]
        %v1681 = vld [vmem:[#allocation8 + $0x550] sm:$0xff]
        %v1682 = vld [vmem:[#allocation8 + $0x558] sm:$0xff]
        %v1683 = vld [vmem:[#allocation8 + $0x560] sm:$0xff]
        %v1684 = vld [vmem:[#allocation8 + $0x568] sm:$0xff]
        %v1685 = vld [vmem:[#allocation8 + $0x570] sm:$0xff]
        %v1686 = vld [vmem:[#allocation8 + $0x578] sm:$0xff]
        %v1687 = vld [vmem:[#allocation8 + $0x580] sm:$0xff]
        %v1688 = vld [vmem:[#allocation8 + $0x588] sm:$0xff]
        %v1689 = vld [vmem:[#allocation8 + $0x590] sm:$0xff]
        %v1690 = vld [vmem:[#allocation8 + $0x598] sm:$0xff]
        %v1691 = vld [vmem:[#allocation8 + $0x5a0] sm:$0xff]
        %v1692 = vld [vmem:[#allocation8 + $0x5a8] sm:$0xff]
        %v1693 = vld [vmem:[#allocation8 + $0x5b0] sm:$0xff]
        %v1694 = vld [vmem:[#allocation8 + $0x5b8] sm:$0xff]
        %v1695 = vld [vmem:[#allocation8 + $0x5c0] sm:$0xff]
        %v1696 = vld [vmem:[#allocation8 + $0x5c8] sm:$0xff]
        %v1697 = vld [vmem:[#allocation8 + $0x5d0] sm:$0xff]
        %v1698 = vld [vmem:[#allocation8 + $0x5d8] sm:$0xff]
        %v1699 = vld [vmem:[#allocation8 + $0x5e0] sm:$0xff]
        %v1700 = vld [vmem:[#allocation8 + $0x5e8] sm:$0xff]
        %v1701 = vld [vmem:[#allocation8 + $0x5f0] sm:$0xff]
        %v1702 = vld [vmem:[#allocation8 + $0x5f8] sm:$0xff]
        %v1703 = vld [vmem:[#allocation8 + $0x600] sm:$0xff]
        %v1704 = vld [vmem:[#allocation8 + $0x608] sm:$0xff]
        %v1705 = vld [vmem:[#allocation8 + $0x610] sm:$0xff]
        %v1706 = vld [vmem:[#allocation8 + $0x618] sm:$0xff]
        %v1707 = vld [vmem:[#allocation8 + $0x620] sm:$0xff]
        %v1708 = vld [vmem:[#allocation8 + $0x628] sm:$0xff]
        %v1709 = vld [vmem:[#allocation8 + $0x630] sm:$0xff]
        %v1710 = vld [vmem:[#allocation8 + $0x638] sm:$0xff]
        %v1711 = vld [vmem:[#allocation8 + $0x640] sm:$0xff]
        %v1712 = vld [vmem:[#allocation8 + $0x648] sm:$0xff]
        %v1713 = vld [vmem:[#allocation8 + $0x650] sm:$0xff]
        %v1714 = vld [vmem:[#allocation8 + $0x658] sm:$0xff]
        %v1715 = vld [vmem:[#allocation8 + $0x660] sm:$0xff]
        %v1716 = vld [vmem:[#allocation8 + $0x668] sm:$0xff]
        %v1717 = vld [vmem:[#allocation8 + $0x670] sm:$0xff]
        %v1718 = vld [vmem:[#allocation8 + $0x678] sm:$0xff]
        %v1719 = vld [vmem:[#allocation8 + $0x680] sm:$0xff]
        %v1720 = vld [vmem:[#allocation8 + $0x688] sm:$0xff]
        %v1721 = vld [vmem:[#allocation8 + $0x690] sm:$0xff]
        %v1722 = vld [vmem:[#allocation8 + $0x698] sm:$0xff]
        %v1723 = vld [vmem:[#allocation8 + $0x6a0] sm:$0xff]
        %v1724 = vld [vmem:[#allocation8 + $0x6a8] sm:$0xff]
        %v1725 = vld [vmem:[#allocation8 + $0x6b0] sm:$0xff]
        %v1726 = vld [vmem:[#allocation8 + $0x6b8] sm:$0xff]
        %v1727 = vld [vmem:[#allocation8 + $0x6c0] sm:$0xff]
        %v1728 = vld [vmem:[#allocation8 + $0x6c8] sm:$0xff]
        %v1729 = vld [vmem:[#allocation8 + $0x6d0] sm:$0xff]
        %v1730 = vld [vmem:[#allocation8 + $0x6d8] sm:$0xff]
        %v1731 = vld [vmem:[#allocation8 + $0x6e0] sm:$0xff]
        %v1732 = vld [vmem:[#allocation8 + $0x6e8] sm:$0xff]
        %v1733 = vld [vmem:[#allocation8 + $0x6f0] sm:$0xff]
        %v1734 = vld [vmem:[#allocation8 + $0x6f8] sm:$0xff]
        %v1735 = vld [vmem:[#allocation8 + $0x700] sm:$0xff]
        %v1736 = vld [vmem:[#allocation8 + $0x708] sm:$0xff]
        %v1737 = vld [vmem:[#allocation8 + $0x710] sm:$0xff]
        %v1738 = vld [vmem:[#allocation8 + $0x718] sm:$0xff]
        %v1739 = vld [vmem:[#allocation8 + $0x720] sm:$0xff]
        %v1740 = vld [vmem:[#allocation8 + $0x728] sm:$0xff]
        %v1741 = vld [vmem:[#allocation8 + $0x730] sm:$0xff]
        %v1742 = vld [vmem:[#allocation8 + $0x738] sm:$0xff]
        %v1743 = vld [vmem:[#allocation8 + $0x740] sm:$0xff]
        %v1744 = vld [vmem:[#allocation8 + $0x748] sm:$0xff]
        %v1745 = vld [vmem:[#allocation8 + $0x750] sm:$0xff]
        %v1746 = vld [vmem:[#allocation8 + $0x758] sm:$0xff]
        %v1747 = vld [vmem:[#allocation8 + $0x760] sm:$0xff]
        %v1748 = vld [vmem:[#allocation8 + $0x768] sm:$0xff]
        %v1749 = vld [vmem:[#allocation8 + $0x770] sm:$0xff]
        %v1750 = vld [vmem:[#allocation8 + $0x778] sm:$0xff]
        %v1751 = vld [vmem:[#allocation8 + $0x780] sm:$0xff]
        %v1752 = vld [vmem:[#allocation8 + $0x788] sm:$0xff]
        %v1753 = vld [vmem:[#allocation8 + $0x790] sm:$0xff]
        %v1754 = vld [vmem:[#allocation8 + $0x798] sm:$0xff]
        %v1755 = vld [vmem:[#allocation8 + $0x7a0] sm:$0xff]
        %v1756 = vld [vmem:[#allocation8 + $0x7a8] sm:$0xff]
        %v1757 = vld [vmem:[#allocation8 + $0x7b0] sm:$0xff]
        %v1758 = vld [vmem:[#allocation8 + $0x7b8] sm:$0xff]
        %v1759 = vld [vmem:[#allocation8 + $0x7c0] sm:$0xff]
        %v1760 = vld [vmem:[#allocation8 + $0x7c8] sm:$0xff]
        %v1761 = vld [vmem:[#allocation8 + $0x7d0] sm:$0xff]
        %v1762 = vld [vmem:[#allocation8 + $0x7d8] sm:$0xff]
        %v1763 = vld [vmem:[#allocation8 + $0x7e0] sm:$0xff]
        %v1764 = vld [vmem:[#allocation8 + $0x7e8] sm:$0xff]
        %v1765 = vld [vmem:[#allocation8 + $0x7f0] sm:$0xff]
        %v1766 = vld [vmem:[#allocation8 + $0x7f8] sm:$0xff]
        %v1767 = vpack.c.bf16 %v1515, %v1511
        %v1768 = vpack.c.bf16 %v1516, %v1512
        %v1769 = vpack.c.bf16 %v1517, %v1513
        %v1770 = vpack.c.bf16 %v1518, %v1514
        %v1771 = vpack.c.bf16 %v1523, %v1519
        %v1772 = vpack.c.bf16 %v1524, %v1520
        %v1773 = vpack.c.bf16 %v1525, %v1521
        %v1774 = vpack.c.bf16 %v1526, %v1522
        %v1775 = vpack.c.bf16 %v1531, %v1527
        %v1776 = vpack.c.bf16 %v1532, %v1528
        %v1777 = vpack.c.bf16 %v1533, %v1529
        %v1778 = vpack.c.bf16 %v1534, %v1530
        %v1779 = vpack.c.bf16 %v1539, %v1535
        %v1780 = vpack.c.bf16 %v1540, %v1536
        %v1781 = vpack.c.bf16 %v1541, %v1537
        %v1782 = vpack.c.bf16 %v1542, %v1538
        %v1783 = vpack.c.bf16 %v1547, %v1543
        %v1784 = vpack.c.bf16 %v1548, %v1544
        %v1785 = vpack.c.bf16 %v1549, %v1545
        %v1786 = vpack.c.bf16 %v1550, %v1546
        %v1787 = vpack.c.bf16 %v1555, %v1551
        %v1788 = vpack.c.bf16 %v1556, %v1552
        %v1789 = vpack.c.bf16 %v1557, %v1553
        %v1790 = vpack.c.bf16 %v1558, %v1554
        %v1791 = vpack.c.bf16 %v1563, %v1559
        %v1792 = vpack.c.bf16 %v1564, %v1560
        %v1793 = vpack.c.bf16 %v1565, %v1561
        %v1794 = vpack.c.bf16 %v1566, %v1562
        %v1795 = vpack.c.bf16 %v1571, %v1567
        %v1796 = vpack.c.bf16 %v1572, %v1568
        %v1797 = vpack.c.bf16 %v1573, %v1569
        %v1798 = vpack.c.bf16 %v1574, %v1570
        %v1799 = vpack.c.bf16 %v1579, %v1575
        %v1800 = vpack.c.bf16 %v1580, %v1576
        %v1801 = vpack.c.bf16 %v1581, %v1577
        %v1802 = vpack.c.bf16 %v1582, %v1578
        %v1803 = vpack.c.bf16 %v1587, %v1583
        %v1804 = vpack.c.bf16 %v1588, %v1584
        %v1805 = vpack.c.bf16 %v1589, %v1585
        %v1806 = vpack.c.bf16 %v1590, %v1586
        %v1807 = vpack.c.bf16 %v1595, %v1591
        %v1808 = vpack.c.bf16 %v1596, %v1592
        %v1809 = vpack.c.bf16 %v1597, %v1593
        %v1810 = vpack.c.bf16 %v1598, %v1594
        %v1811 = vpack.c.bf16 %v1603, %v1599
        %v1812 = vpack.c.bf16 %v1604, %v1600
        %v1813 = vpack.c.bf16 %v1605, %v1601
        %v1814 = vpack.c.bf16 %v1606, %v1602
        %v1815 = vpack.c.bf16 %v1611, %v1607
        %v1816 = vpack.c.bf16 %v1612, %v1608
        %v1817 = vpack.c.bf16 %v1613, %v1609
        %v1818 = vpack.c.bf16 %v1614, %v1610
        %v1819 = vpack.c.bf16 %v1619, %v1615
        %v1820 = vpack.c.bf16 %v1620, %v1616
        %v1821 = vpack.c.bf16 %v1621, %v1617
        %v1822 = vpack.c.bf16 %v1622, %v1618
        %v1823 = vpack.c.bf16 %v1627, %v1623
        %v1824 = vpack.c.bf16 %v1628, %v1624
        %v1825 = vpack.c.bf16 %v1629, %v1625
        %v1826 = vpack.c.bf16 %v1630, %v1626
        %v1827 = vpack.c.bf16 %v1635, %v1631
        %v1828 = vpack.c.bf16 %v1636, %v1632
        %v1829 = vpack.c.bf16 %v1637, %v1633
        %v1830 = vpack.c.bf16 %v1638, %v1634
        %v1831 = vpack.c.bf16 %v1643, %v1639
        %v1832 = vpack.c.bf16 %v1644, %v1640
        %v1833 = vpack.c.bf16 %v1645, %v1641
        %v1834 = vpack.c.bf16 %v1646, %v1642
        %v1835 = vpack.c.bf16 %v1651, %v1647
        %v1836 = vpack.c.bf16 %v1652, %v1648
        %v1837 = vpack.c.bf16 %v1653, %v1649
        %v1838 = vpack.c.bf16 %v1654, %v1650
        %v1839 = vpack.c.bf16 %v1659, %v1655
        %v1840 = vpack.c.bf16 %v1660, %v1656
        %v1841 = vpack.c.bf16 %v1661, %v1657
        %v1842 = vpack.c.bf16 %v1662, %v1658
        %v1843 = vpack.c.bf16 %v1667, %v1663
        %v1844 = vpack.c.bf16 %v1668, %v1664
        %v1845 = vpack.c.bf16 %v1669, %v1665
        %v1846 = vpack.c.bf16 %v1670, %v1666
        %v1847 = vpack.c.bf16 %v1675, %v1671
        %v1848 = vpack.c.bf16 %v1676, %v1672
        %v1849 = vpack.c.bf16 %v1677, %v1673
        %v1850 = vpack.c.bf16 %v1678, %v1674
        %v1851 = vpack.c.bf16 %v1683, %v1679
        %v1852 = vpack.c.bf16 %v1684, %v1680
        %v1853 = vpack.c.bf16 %v1685, %v1681
        %v1854 = vpack.c.bf16 %v1686, %v1682
        %v1855 = vpack.c.bf16 %v1691, %v1687
        %v1856 = vpack.c.bf16 %v1692, %v1688
        %v1857 = vpack.c.bf16 %v1693, %v1689
        %v1858 = vpack.c.bf16 %v1694, %v1690
        %v1859 = vpack.c.bf16 %v1699, %v1695
        %v1860 = vpack.c.bf16 %v1700, %v1696
        %v1861 = vpack.c.bf16 %v1701, %v1697
        %v1862 = vpack.c.bf16 %v1702, %v1698
        %v1863 = vpack.c.bf16 %v1707, %v1703
        %v1864 = vpack.c.bf16 %v1708, %v1704
        %v1865 = vpack.c.bf16 %v1709, %v1705
        %v1866 = vpack.c.bf16 %v1710, %v1706
        %v1867 = vpack.c.bf16 %v1715, %v1711
        %v1868 = vpack.c.bf16 %v1716, %v1712
        %v1869 = vpack.c.bf16 %v1717, %v1713
        %v1870 = vpack.c.bf16 %v1718, %v1714
        %v1871 = vpack.c.bf16 %v1723, %v1719
        %v1872 = vpack.c.bf16 %v1724, %v1720
        %v1873 = vpack.c.bf16 %v1725, %v1721
        %v1874 = vpack.c.bf16 %v1726, %v1722
        %v1875 = vpack.c.bf16 %v1731, %v1727
        %v1876 = vpack.c.bf16 %v1732, %v1728
        %v1877 = vpack.c.bf16 %v1733, %v1729
        %v1878 = vpack.c.bf16 %v1734, %v1730
        %v1879 = vpack.c.bf16 %v1739, %v1735
        %v1880 = vpack.c.bf16 %v1740, %v1736
        %v1881 = vpack.c.bf16 %v1741, %v1737
        %v1882 = vpack.c.bf16 %v1742, %v1738
        %v1883 = vpack.c.bf16 %v1747, %v1743
        %v1884 = vpack.c.bf16 %v1748, %v1744
        %v1885 = vpack.c.bf16 %v1749, %v1745
        %v1886 = vpack.c.bf16 %v1750, %v1746
        %v1887 = vpack.c.bf16 %v1755, %v1751
        %v1888 = vpack.c.bf16 %v1756, %v1752
        %v1889 = vpack.c.bf16 %v1757, %v1753
        %v1890 = vpack.c.bf16 %v1758, %v1754
        %v1891 = vpack.c.bf16 %v1763, %v1759
        %v1892 = vpack.c.bf16 %v1764, %v1760
        %v1893 = vpack.c.bf16 %v1765, %v1761
        %v1894 = vpack.c.bf16 %v1766, %v1762
        %v1895 = vld [vmem:[#allocation10] sm:$0xf]
        %v1897 = vperm.slane %v1895, 0
        %v1898 = vperm.slane %v1895, 1
        %v1899 = vperm.slane %v1895, 2
        %v1900 = vperm.slane %v1895, 3
        %1905 = vmatpush.bf16.msra.mxu0 %v1795
        %1906 = vmatpush.bf16.msra.mxu0 %v1791
        %1907 = vmatpush.bf16.msra.mxu0 %v1787
        %1908 = vmatpush.bf16.msra.mxu0 %v1783
        %1909 = vmatpush.bf16.msra.mxu0 %v1779
        %1910 = vmatpush.bf16.msra.mxu0 %v1775
        %1911 = vmatpush.bf16.msra.mxu0 %v1771
        %1912 = vmatpush.bf16.msra.mxu0 %v1767
        %1913 = vmatmul.bf16.gmra.mxu0 %v621
        %v1914 = vpop.f32.mrf.mxu0
        %v1915 = vadd.f32 %v1897, %v1914
        %v1916 = vpop.f32.mrf.mxu0
        %v1917 = vadd.f32 %v1897, %v1916
        %1918 = vmatmul.bf16.gmra.mxu0 %v625
        %v1919 = vpop.f32.mrf.mxu0
        %v1920 = vadd.f32 %v1897, %v1919
        %v1921 = vpop.f32.mrf.mxu0
        %v1922 = vadd.f32 %v1897, %v1921
        %1923 = vmatmul.bf16.gmra.mxu0 %v629
        %v1924 = vpop.f32.mrf.mxu0
        %v1925 = vadd.f32 %v1897, %v1924
        %v1926 = vpop.f32.mrf.mxu0
        %v1927 = vadd.f32 %v1897, %v1926
        %1928 = vmatmul.bf16.gmra.mxu0 %v633
        %v1929 = vpop.f32.mrf.mxu0
        %v1930 = vadd.f32 %v1897, %v1929
        %v1931 = vpop.f32.mrf.mxu0
        %v1932 = vadd.f32 %v1897, %v1931
        %1933 = vmatmul.bf16.gmra.mxu0 %v637
        %v1934 = vpop.f32.mrf.mxu0
        %v1935 = vadd.f32 %v1897, %v1934
        %v1936 = vpop.f32.mrf.mxu0
        %v1937 = vadd.f32 %v1897, %v1936
        %1938 = vmatmul.bf16.gmra.mxu0 %v641
        %v1939 = vpop.f32.mrf.mxu0
        %v1940 = vadd.f32 %v1897, %v1939
        %v1941 = vpop.f32.mrf.mxu0
        %v1942 = vadd.f32 %v1897, %v1941
        %1943 = vmatmul.bf16.gmra.mxu0 %v645
        %v1944 = vpop.f32.mrf.mxu0
        %v1945 = vadd.f32 %v1897, %v1944
        %v1946 = vpop.f32.mrf.mxu0
        %v1947 = vadd.f32 %v1897, %v1946
        %1948 = vmatmul.bf16.gmra.mxu0 %v649
        %v1949 = vpop.f32.mrf.mxu0
        %v1950 = vadd.f32 %v1897, %v1949
        %v1951 = vpop.f32.mrf.mxu0
        %v1952 = vadd.f32 %v1897, %v1951
        %1953 = vdwg.mxu0
        %1954 = vmatpush.bf16.msra.mxu0 %v1827
        %1955 = vmatpush.bf16.msra.mxu0 %v1823
        %1956 = vmatpush.bf16.msra.mxu0 %v1819
        %1957 = vmatpush.bf16.msra.mxu0 %v1815
        %1958 = vmatpush.bf16.msra.mxu0 %v1811
        %1959 = vmatpush.bf16.msra.mxu0 %v1807
        %1960 = vmatpush.bf16.msra.mxu0 %v1803
        %1961 = vmatpush.bf16.msra.mxu0 %v1799
        %1962 = vmatmul.bf16.gmra.mxu0 %v622
        %v1963 = vpop.f32.mrf.mxu0
        %v1964 = vadd.f32 %v1915, %v1963
        %v1965 = vpop.f32.mrf.mxu0
        %v1966 = vadd.f32 %v1917, %v1965
        %1967 = vmatmul.bf16.gmra.mxu0 %v626
        %v1968 = vpop.f32.mrf.mxu0
        %v1969 = vadd.f32 %v1920, %v1968
        %v1970 = vpop.f32.mrf.mxu0
        %v1971 = vadd.f32 %v1922, %v1970
        %1972 = vmatmul.bf16.gmra.mxu0 %v630
        %v1973 = vpop.f32.mrf.mxu0
        %v1974 = vadd.f32 %v1925, %v1973
        %v1975 = vpop.f32.mrf.mxu0
        %v1976 = vadd.f32 %v1927, %v1975
        %1977 = vmatmul.bf16.gmra.mxu0 %v634
        %v1978 = vpop.f32.mrf.mxu0
        %v1979 = vadd.f32 %v1930, %v1978
        %v1980 = vpop.f32.mrf.mxu0
        %v1981 = vadd.f32 %v1932, %v1980
        %1982 = vmatmul.bf16.gmra.mxu0 %v638
        %v1983 = vpop.f32.mrf.mxu0
        %v1984 = vadd.f32 %v1935, %v1983
        %v1985 = vpop.f32.mrf.mxu0
        %v1986 = vadd.f32 %v1937, %v1985
        %1987 = vmatmul.bf16.gmra.mxu0 %v642
        %v1988 = vpop.f32.mrf.mxu0
        %v1989 = vadd.f32 %v1940, %v1988
        %v1990 = vpop.f32.mrf.mxu0
        %v1991 = vadd.f32 %v1942, %v1990
        %1992 = vmatmul.bf16.gmra.mxu0 %v646
        %v1993 = vpop.f32.mrf.mxu0
        %v1994 = vadd.f32 %v1945, %v1993
        %v1995 = vpop.f32.mrf.mxu0
        %v1996 = vadd.f32 %v1947, %v1995
        %1997 = vmatmul.bf16.gmra.mxu0 %v650
        %v1998 = vpop.f32.mrf.mxu0
        %v1999 = vadd.f32 %v1950, %v1998
        %v2000 = vpop.f32.mrf.mxu0
        %v2001 = vadd.f32 %v1952, %v2000
        %2002 = vdwg.mxu0
        %2003 = vmatpush.bf16.msra.mxu0 %v1859
        %2004 = vmatpush.bf16.msra.mxu0 %v1855
        %2005 = vmatpush.bf16.msra.mxu0 %v1851
        %2006 = vmatpush.bf16.msra.mxu0 %v1847
        %2007 = vmatpush.bf16.msra.mxu0 %v1843
        %2008 = vmatpush.bf16.msra.mxu0 %v1839
        %2009 = vmatpush.bf16.msra.mxu0 %v1835
        %2010 = vmatpush.bf16.msra.mxu0 %v1831
        %2011 = vmatmul.bf16.gmra.mxu0 %v623
        %v2012 = vpop.f32.mrf.mxu0
        %v2013 = vadd.f32 %v1964, %v2012
        %v2014 = vpop.f32.mrf.mxu0
        %v2015 = vadd.f32 %v1966, %v2014
        %2016 = vmatmul.bf16.gmra.mxu0 %v627
        %v2017 = vpop.f32.mrf.mxu0
        %v2018 = vadd.f32 %v1969, %v2017
        %v2019 = vpop.f32.mrf.mxu0
        %v2020 = vadd.f32 %v1971, %v2019
        %2021 = vmatmul.bf16.gmra.mxu0 %v631
        %v2022 = vpop.f32.mrf.mxu0
        %v2023 = vadd.f32 %v1974, %v2022
        %v2024 = vpop.f32.mrf.mxu0
        %v2025 = vadd.f32 %v1976, %v2024
        %2026 = vmatmul.bf16.gmra.mxu0 %v635
        %v2027 = vpop.f32.mrf.mxu0
        %v2028 = vadd.f32 %v1979, %v2027
        %v2029 = vpop.f32.mrf.mxu0
        %v2030 = vadd.f32 %v1981, %v2029
        %2031 = vmatmul.bf16.gmra.mxu0 %v639
        %v2032 = vpop.f32.mrf.mxu0
        %v2033 = vadd.f32 %v1984, %v2032
        %v2034 = vpop.f32.mrf.mxu0
        %v2035 = vadd.f32 %v1986, %v2034
        %2036 = vmatmul.bf16.gmra.mxu0 %v643
        %v2037 = vpop.f32.mrf.mxu0
        %v2038 = vadd.f32 %v1989, %v2037
        %v2039 = vpop.f32.mrf.mxu0
        %v2040 = vadd.f32 %v1991, %v2039
        %2041 = vmatmul.bf16.gmra.mxu0 %v647
        %v2042 = vpop.f32.mrf.mxu0
        %v2043 = vadd.f32 %v1994, %v2042
        %v2044 = vpop.f32.mrf.mxu0
        %v2045 = vadd.f32 %v1996, %v2044
        %2046 = vmatmul.bf16.gmra.mxu0 %v651
        %v2047 = vpop.f32.mrf.mxu0
        %v2048 = vadd.f32 %v1999, %v2047
        %v2049 = vpop.f32.mrf.mxu0
        %v2050 = vadd.f32 %v2001, %v2049
        %2051 = vdwg.mxu0
        %2052 = vmatpush.bf16.msra.mxu0 %v1891
        %2053 = vmatpush.bf16.msra.mxu0 %v1887
        %2054 = vmatpush.bf16.msra.mxu0 %v1883
        %2055 = vmatpush.bf16.msra.mxu0 %v1879
        %2056 = vmatpush.bf16.msra.mxu0 %v1875
        %2057 = vmatpush.bf16.msra.mxu0 %v1871
        %2058 = vmatpush.bf16.msra.mxu0 %v1867
        %2059 = vmatpush.bf16.msra.mxu0 %v1863
        %2060 = vmatmul.bf16.gmra.mxu0 %v624
        %v2061 = vpop.f32.mrf.mxu0
        %v2062 = vadd.f32 %v2013, %v2061
        %v2063 = vpop.f32.mrf.mxu0
        %v2064 = vadd.f32 %v2015, %v2063
        %2065 = vmatmul.bf16.gmra.mxu0 %v628
        %v2066 = vpop.f32.mrf.mxu0
        %v2067 = vadd.f32 %v2018, %v2066
        %v2068 = vpop.f32.mrf.mxu0
        %v2069 = vadd.f32 %v2020, %v2068
        %2070 = vmatmul.bf16.gmra.mxu0 %v632
        %v2071 = vpop.f32.mrf.mxu0
        %v2072 = vadd.f32 %v2023, %v2071
        %v2073 = vpop.f32.mrf.mxu0
        %v2074 = vadd.f32 %v2025, %v2073
        %2075 = vmatmul.bf16.gmra.mxu0 %v636
        %v2076 = vpop.f32.mrf.mxu0
        %v2077 = vadd.f32 %v2028, %v2076
        %v2078 = vpop.f32.mrf.mxu0
        %v2079 = vadd.f32 %v2030, %v2078
        %2080 = vmatmul.bf16.gmra.mxu0 %v640
        %v2081 = vpop.f32.mrf.mxu0
        %v2082 = vadd.f32 %v2033, %v2081
        %v2083 = vpop.f32.mrf.mxu0
        %v2084 = vadd.f32 %v2035, %v2083
        %2085 = vmatmul.bf16.gmra.mxu0 %v644
        %v2086 = vpop.f32.mrf.mxu0
        %v2087 = vadd.f32 %v2038, %v2086
        %v2088 = vpop.f32.mrf.mxu0
        %v2089 = vadd.f32 %v2040, %v2088
        %2090 = vmatmul.bf16.gmra.mxu0 %v648
        %v2091 = vpop.f32.mrf.mxu0
        %v2092 = vadd.f32 %v2043, %v2091
        %v2093 = vpop.f32.mrf.mxu0
        %v2094 = vadd.f32 %v2045, %v2093
        %2095 = vmatmul.bf16.gmra.mxu0 %v652
        %v2096 = vpop.f32.mrf.mxu0
        %v2097 = vadd.f32 %v2048, %v2096
        %v2098 = vpop.f32.mrf.mxu0
        %v2099 = vadd.f32 %v2050, %v2098
        %2100 = vdwg.mxu0
        %2101 = vmatpush.bf16.msra.mxu0 %v1796
        %2102 = vmatpush.bf16.msra.mxu0 %v1792
        %2103 = vmatpush.bf16.msra.mxu0 %v1788
        %2104 = vmatpush.bf16.msra.mxu0 %v1784
        %2105 = vmatpush.bf16.msra.mxu0 %v1780
        %2106 = vmatpush.bf16.msra.mxu0 %v1776
        %2107 = vmatpush.bf16.msra.mxu0 %v1772
        %2108 = vmatpush.bf16.msra.mxu0 %v1768
        %2109 = vmatmul.bf16.gmra.mxu0 %v621
        %v2110 = vpop.f32.mrf.mxu0
        %v2111 = vadd.f32 %v1898, %v2110
        %v2112 = vpop.f32.mrf.mxu0
        %v2113 = vadd.f32 %v1898, %v2112
        %2114 = vmatmul.bf16.gmra.mxu0 %v625
        %v2115 = vpop.f32.mrf.mxu0
        %v2116 = vadd.f32 %v1898, %v2115
        %v2117 = vpop.f32.mrf.mxu0
        %v2118 = vadd.f32 %v1898, %v2117
        %2119 = vmatmul.bf16.gmra.mxu0 %v629
        %v2120 = vpop.f32.mrf.mxu0
        %v2121 = vadd.f32 %v1898, %v2120
        %v2122 = vpop.f32.mrf.mxu0
        %v2123 = vadd.f32 %v1898, %v2122
        %2124 = vmatmul.bf16.gmra.mxu0 %v633
        %v2125 = vpop.f32.mrf.mxu0
        %v2126 = vadd.f32 %v1898, %v2125
        %v2127 = vpop.f32.mrf.mxu0
        %v2128 = vadd.f32 %v1898, %v2127
        %2129 = vmatmul.bf16.gmra.mxu0 %v637
        %v2130 = vpop.f32.mrf.mxu0
        %v2131 = vadd.f32 %v1898, %v2130
        %v2132 = vpop.f32.mrf.mxu0
        %v2133 = vadd.f32 %v1898, %v2132
        %2134 = vmatmul.bf16.gmra.mxu0 %v641
        %v2135 = vpop.f32.mrf.mxu0
        %v2136 = vadd.f32 %v1898, %v2135
        %v2137 = vpop.f32.mrf.mxu0
        %v2138 = vadd.f32 %v1898, %v2137
        %2139 = vmatmul.bf16.gmra.mxu0 %v645
        %v2140 = vpop.f32.mrf.mxu0
        %v2141 = vadd.f32 %v1898, %v2140
        %v2142 = vpop.f32.mrf.mxu0
        %v2143 = vadd.f32 %v1898, %v2142
        %2144 = vmatmul.bf16.gmra.mxu0 %v649
        %v2145 = vpop.f32.mrf.mxu0
        %v2146 = vadd.f32 %v1898, %v2145
        %v2147 = vpop.f32.mrf.mxu0
        %v2148 = vadd.f32 %v1898, %v2147
        %2149 = vdwg.mxu0
        %2150 = vmatpush.bf16.msra.mxu0 %v1828
        %2151 = vmatpush.bf16.msra.mxu0 %v1824
        %2152 = vmatpush.bf16.msra.mxu0 %v1820
        %2153 = vmatpush.bf16.msra.mxu0 %v1816
        %2154 = vmatpush.bf16.msra.mxu0 %v1812
        %2155 = vmatpush.bf16.msra.mxu0 %v1808
        %2156 = vmatpush.bf16.msra.mxu0 %v1804
        %2157 = vmatpush.bf16.msra.mxu0 %v1800
        %2158 = vmatmul.bf16.gmra.mxu0 %v622
        %v2159 = vpop.f32.mrf.mxu0
        %v2160 = vadd.f32 %v2111, %v2159
        %v2161 = vpop.f32.mrf.mxu0
        %v2162 = vadd.f32 %v2113, %v2161
        %2163 = vmatmul.bf16.gmra.mxu0 %v626
        %v2164 = vpop.f32.mrf.mxu0
        %v2165 = vadd.f32 %v2116, %v2164
        %v2166 = vpop.f32.mrf.mxu0
        %v2167 = vadd.f32 %v2118, %v2166
        %2168 = vmatmul.bf16.gmra.mxu0 %v630
        %v2169 = vpop.f32.mrf.mxu0
        %v2170 = vadd.f32 %v2121, %v2169
        %v2171 = vpop.f32.mrf.mxu0
        %v2172 = vadd.f32 %v2123, %v2171
        %2173 = vmatmul.bf16.gmra.mxu0 %v634
        %v2174 = vpop.f32.mrf.mxu0
        %v2175 = vadd.f32 %v2126, %v2174
        %v2176 = vpop.f32.mrf.mxu0
        %v2177 = vadd.f32 %v2128, %v2176
        %2178 = vmatmul.bf16.gmra.mxu0 %v638
        %v2179 = vpop.f32.mrf.mxu0
        %v2180 = vadd.f32 %v2131, %v2179
        %v2181 = vpop.f32.mrf.mxu0
        %v2182 = vadd.f32 %v2133, %v2181
        %2183 = vmatmul.bf16.gmra.mxu0 %v642
        %v2184 = vpop.f32.mrf.mxu0
        %v2185 = vadd.f32 %v2136, %v2184
        %v2186 = vpop.f32.mrf.mxu0
        %v2187 = vadd.f32 %v2138, %v2186
        %2188 = vmatmul.bf16.gmra.mxu0 %v646
        %v2189 = vpop.f32.mrf.mxu0
        %v2190 = vadd.f32 %v2141, %v2189
        %v2191 = vpop.f32.mrf.mxu0
        %v2192 = vadd.f32 %v2143, %v2191
        %2193 = vmatmul.bf16.gmra.mxu0 %v650
        %v2194 = vpop.f32.mrf.mxu0
        %v2195 = vadd.f32 %v2146, %v2194
        %v2196 = vpop.f32.mrf.mxu0
        %v2197 = vadd.f32 %v2148, %v2196
        %2198 = vdwg.mxu0
        %2199 = vmatpush.bf16.msra.mxu0 %v1860
        %2200 = vmatpush.bf16.msra.mxu0 %v1856
        %2201 = vmatpush.bf16.msra.mxu0 %v1852
        %2202 = vmatpush.bf16.msra.mxu0 %v1848
        %2203 = vmatpush.bf16.msra.mxu0 %v1844
        %2204 = vmatpush.bf16.msra.mxu0 %v1840
        %2205 = vmatpush.bf16.msra.mxu0 %v1836
        %2206 = vmatpush.bf16.msra.mxu0 %v1832
        %2207 = vmatmul.bf16.gmra.mxu0 %v623
        %v2208 = vpop.f32.mrf.mxu0
        %v2209 = vadd.f32 %v2160, %v2208
        %v2210 = vpop.f32.mrf.mxu0
        %v2211 = vadd.f32 %v2162, %v2210
        %2212 = vmatmul.bf16.gmra.mxu0 %v627
        %v2213 = vpop.f32.mrf.mxu0
        %v2214 = vadd.f32 %v2165, %v2213
        %v2215 = vpop.f32.mrf.mxu0
        %v2216 = vadd.f32 %v2167, %v2215
        %2217 = vmatmul.bf16.gmra.mxu0 %v631
        %v2218 = vpop.f32.mrf.mxu0
        %v2219 = vadd.f32 %v2170, %v2218
        %v2220 = vpop.f32.mrf.mxu0
        %v2221 = vadd.f32 %v2172, %v2220
        %2222 = vmatmul.bf16.gmra.mxu0 %v635
        %v2223 = vpop.f32.mrf.mxu0
        %v2224 = vadd.f32 %v2175, %v2223
        %v2225 = vpop.f32.mrf.mxu0
        %v2226 = vadd.f32 %v2177, %v2225
        %2227 = vmatmul.bf16.gmra.mxu0 %v639
        %v2228 = vpop.f32.mrf.mxu0
        %v2229 = vadd.f32 %v2180, %v2228
        %v2230 = vpop.f32.mrf.mxu0
        %v2231 = vadd.f32 %v2182, %v2230
        %2232 = vmatmul.bf16.gmra.mxu0 %v643
        %v2233 = vpop.f32.mrf.mxu0
        %v2234 = vadd.f32 %v2185, %v2233
        %v2235 = vpop.f32.mrf.mxu0
        %v2236 = vadd.f32 %v2187, %v2235
        %2237 = vmatmul.bf16.gmra.mxu0 %v647
        %v2238 = vpop.f32.mrf.mxu0
        %v2239 = vadd.f32 %v2190, %v2238
        %v2240 = vpop.f32.mrf.mxu0
        %v2241 = vadd.f32 %v2192, %v2240
        %2242 = vmatmul.bf16.gmra.mxu0 %v651
        %v2243 = vpop.f32.mrf.mxu0
        %v2244 = vadd.f32 %v2195, %v2243
        %v2245 = vpop.f32.mrf.mxu0
        %v2246 = vadd.f32 %v2197, %v2245
        %2247 = vdwg.mxu0
        %2248 = vmatpush.bf16.msra.mxu0 %v1892
        %2249 = vmatpush.bf16.msra.mxu0 %v1888
        %2250 = vmatpush.bf16.msra.mxu0 %v1884
        %2251 = vmatpush.bf16.msra.mxu0 %v1880
        %2252 = vmatpush.bf16.msra.mxu0 %v1876
        %2253 = vmatpush.bf16.msra.mxu0 %v1872
        %2254 = vmatpush.bf16.msra.mxu0 %v1868
        %2255 = vmatpush.bf16.msra.mxu0 %v1864
        %2256 = vmatmul.bf16.gmra.mxu0 %v624
        %v2257 = vpop.f32.mrf.mxu0
        %v2258 = vadd.f32 %v2209, %v2257
        %v2259 = vpop.f32.mrf.mxu0
        %v2260 = vadd.f32 %v2211, %v2259
        %2261 = vmatmul.bf16.gmra.mxu0 %v628
        %v2262 = vpop.f32.mrf.mxu0
        %v2263 = vadd.f32 %v2214, %v2262
        %v2264 = vpop.f32.mrf.mxu0
        %v2265 = vadd.f32 %v2216, %v2264
        %2266 = vmatmul.bf16.gmra.mxu0 %v632
        %v2267 = vpop.f32.mrf.mxu0
        %v2268 = vadd.f32 %v2219, %v2267
        %v2269 = vpop.f32.mrf.mxu0
        %v2270 = vadd.f32 %v2221, %v2269
        %2271 = vmatmul.bf16.gmra.mxu0 %v636
        %v2272 = vpop.f32.mrf.mxu0
        %v2273 = vadd.f32 %v2224, %v2272
        %v2274 = vpop.f32.mrf.mxu0
        %v2275 = vadd.f32 %v2226, %v2274
        %2276 = vmatmul.bf16.gmra.mxu0 %v640
        %v2277 = vpop.f32.mrf.mxu0
        %v2278 = vadd.f32 %v2229, %v2277
        %v2279 = vpop.f32.mrf.mxu0
        %v2280 = vadd.f32 %v2231, %v2279
        %2281 = vmatmul.bf16.gmra.mxu0 %v644
        %v2282 = vpop.f32.mrf.mxu0
        %v2283 = vadd.f32 %v2234, %v2282
        %v2284 = vpop.f32.mrf.mxu0
        %v2285 = vadd.f32 %v2236, %v2284
        %2286 = vmatmul.bf16.gmra.mxu0 %v648
        %v2287 = vpop.f32.mrf.mxu0
        %v2288 = vadd.f32 %v2239, %v2287
        %v2289 = vpop.f32.mrf.mxu0
        %v2290 = vadd.f32 %v2241, %v2289
        %2291 = vmatmul.bf16.gmra.mxu0 %v652
        %v2292 = vpop.f32.mrf.mxu0
        %v2293 = vadd.f32 %v2244, %v2292
        %v2294 = vpop.f32.mrf.mxu0
        %v2295 = vadd.f32 %v2246, %v2294
        %2296 = vdwg.mxu0
        %2297 = vmatpush.bf16.msra.mxu0 %v1797
        %2298 = vmatpush.bf16.msra.mxu0 %v1793
        %2299 = vmatpush.bf16.msra.mxu0 %v1789
        %2300 = vmatpush.bf16.msra.mxu0 %v1785
        %2301 = vmatpush.bf16.msra.mxu0 %v1781
        %2302 = vmatpush.bf16.msra.mxu0 %v1777
        %2303 = vmatpush.bf16.msra.mxu0 %v1773
        %2304 = vmatpush.bf16.msra.mxu0 %v1769
        %2305 = vmatmul.bf16.gmra.mxu0 %v621
        %v2306 = vpop.f32.mrf.mxu0
        %v2307 = vadd.f32 %v1899, %v2306
        %v2308 = vpop.f32.mrf.mxu0
        %v2309 = vadd.f32 %v1899, %v2308
        %2310 = vmatmul.bf16.gmra.mxu0 %v625
        %v2311 = vpop.f32.mrf.mxu0
        %v2312 = vadd.f32 %v1899, %v2311
        %v2313 = vpop.f32.mrf.mxu0
        %v2314 = vadd.f32 %v1899, %v2313
        %2315 = vmatmul.bf16.gmra.mxu0 %v629
        %v2316 = vpop.f32.mrf.mxu0
        %v2317 = vadd.f32 %v1899, %v2316
        %v2318 = vpop.f32.mrf.mxu0
        %v2319 = vadd.f32 %v1899, %v2318
        %2320 = vmatmul.bf16.gmra.mxu0 %v633
        %v2321 = vpop.f32.mrf.mxu0
        %v2322 = vadd.f32 %v1899, %v2321
        %v2323 = vpop.f32.mrf.mxu0
        %v2324 = vadd.f32 %v1899, %v2323
        %2325 = vmatmul.bf16.gmra.mxu0 %v637
        %v2326 = vpop.f32.mrf.mxu0
        %v2327 = vadd.f32 %v1899, %v2326
        %v2328 = vpop.f32.mrf.mxu0
        %v2329 = vadd.f32 %v1899, %v2328
        %2330 = vmatmul.bf16.gmra.mxu0 %v641
        %v2331 = vpop.f32.mrf.mxu0
        %v2332 = vadd.f32 %v1899, %v2331
        %v2333 = vpop.f32.mrf.mxu0
        %v2334 = vadd.f32 %v1899, %v2333
        %2335 = vmatmul.bf16.gmra.mxu0 %v645
        %v2336 = vpop.f32.mrf.mxu0
        %v2337 = vadd.f32 %v1899, %v2336
        %v2338 = vpop.f32.mrf.mxu0
        %v2339 = vadd.f32 %v1899, %v2338
        %2340 = vmatmul.bf16.gmra.mxu0 %v649
        %v2341 = vpop.f32.mrf.mxu0
        %v2342 = vadd.f32 %v1899, %v2341
        %v2343 = vpop.f32.mrf.mxu0
        %v2344 = vadd.f32 %v1899, %v2343
        %2345 = vdwg.mxu0
        %2346 = vmatpush.bf16.msra.mxu0 %v1829
        %2347 = vmatpush.bf16.msra.mxu0 %v1825
        %2348 = vmatpush.bf16.msra.mxu0 %v1821
        %2349 = vmatpush.bf16.msra.mxu0 %v1817
        %2350 = vmatpush.bf16.msra.mxu0 %v1813
        %2351 = vmatpush.bf16.msra.mxu0 %v1809
        %2352 = vmatpush.bf16.msra.mxu0 %v1805
        %2353 = vmatpush.bf16.msra.mxu0 %v1801
        %2354 = vmatmul.bf16.gmra.mxu0 %v622
        %v2355 = vpop.f32.mrf.mxu0
        %v2356 = vadd.f32 %v2307, %v2355
        %v2357 = vpop.f32.mrf.mxu0
        %v2358 = vadd.f32 %v2309, %v2357
        %2359 = vmatmul.bf16.gmra.mxu0 %v626
        %v2360 = vpop.f32.mrf.mxu0
        %v2361 = vadd.f32 %v2312, %v2360
        %v2362 = vpop.f32.mrf.mxu0
        %v2363 = vadd.f32 %v2314, %v2362
        %2364 = vmatmul.bf16.gmra.mxu0 %v630
        %v2365 = vpop.f32.mrf.mxu0
        %v2366 = vadd.f32 %v2317, %v2365
        %v2367 = vpop.f32.mrf.mxu0
        %v2368 = vadd.f32 %v2319, %v2367
        %2369 = vmatmul.bf16.gmra.mxu0 %v634
        %v2370 = vpop.f32.mrf.mxu0
        %v2371 = vadd.f32 %v2322, %v2370
        %v2372 = vpop.f32.mrf.mxu0
        %v2373 = vadd.f32 %v2324, %v2372
        %2374 = vmatmul.bf16.gmra.mxu0 %v638
        %v2375 = vpop.f32.mrf.mxu0
        %v2376 = vadd.f32 %v2327, %v2375
        %v2377 = vpop.f32.mrf.mxu0
        %v2378 = vadd.f32 %v2329, %v2377
        %2379 = vmatmul.bf16.gmra.mxu0 %v642
        %v2380 = vpop.f32.mrf.mxu0
        %v2381 = vadd.f32 %v2332, %v2380
        %v2382 = vpop.f32.mrf.mxu0
        %v2383 = vadd.f32 %v2334, %v2382
        %2384 = vmatmul.bf16.gmra.mxu0 %v646
        %v2385 = vpop.f32.mrf.mxu0
        %v2386 = vadd.f32 %v2337, %v2385
        %v2387 = vpop.f32.mrf.mxu0
        %v2388 = vadd.f32 %v2339, %v2387
        %2389 = vmatmul.bf16.gmra.mxu0 %v650
        %v2390 = vpop.f32.mrf.mxu0
        %v2391 = vadd.f32 %v2342, %v2390
        %v2392 = vpop.f32.mrf.mxu0
        %v2393 = vadd.f32 %v2344, %v2392
        %2394 = vdwg.mxu0
        %2395 = vmatpush.bf16.msra.mxu0 %v1861
        %2396 = vmatpush.bf16.msra.mxu0 %v1857
        %2397 = vmatpush.bf16.msra.mxu0 %v1853
        %2398 = vmatpush.bf16.msra.mxu0 %v1849
        %2399 = vmatpush.bf16.msra.mxu0 %v1845
        %2400 = vmatpush.bf16.msra.mxu0 %v1841
        %2401 = vmatpush.bf16.msra.mxu0 %v1837
        %2402 = vmatpush.bf16.msra.mxu0 %v1833
        %2403 = vmatmul.bf16.gmra.mxu0 %v623
        %v2404 = vpop.f32.mrf.mxu0
        %v2405 = vadd.f32 %v2356, %v2404
        %v2406 = vpop.f32.mrf.mxu0
        %v2407 = vadd.f32 %v2358, %v2406
        %2408 = vmatmul.bf16.gmra.mxu0 %v627
        %v2409 = vpop.f32.mrf.mxu0
        %v2410 = vadd.f32 %v2361, %v2409
        %v2411 = vpop.f32.mrf.mxu0
        %v2412 = vadd.f32 %v2363, %v2411
        %2413 = vmatmul.bf16.gmra.mxu0 %v631
        %v2414 = vpop.f32.mrf.mxu0
        %v2415 = vadd.f32 %v2366, %v2414
        %v2416 = vpop.f32.mrf.mxu0
        %v2417 = vadd.f32 %v2368, %v2416
        %2418 = vmatmul.bf16.gmra.mxu0 %v635
        %v2419 = vpop.f32.mrf.mxu0
        %v2420 = vadd.f32 %v2371, %v2419
        %v2421 = vpop.f32.mrf.mxu0
        %v2422 = vadd.f32 %v2373, %v2421
        %2423 = vmatmul.bf16.gmra.mxu0 %v639
        %v2424 = vpop.f32.mrf.mxu0
        %v2425 = vadd.f32 %v2376, %v2424
        %v2426 = vpop.f32.mrf.mxu0
        %v2427 = vadd.f32 %v2378, %v2426
        %2428 = vmatmul.bf16.gmra.mxu0 %v643
        %v2429 = vpop.f32.mrf.mxu0
        %v2430 = vadd.f32 %v2381, %v2429
        %v2431 = vpop.f32.mrf.mxu0
        %v2432 = vadd.f32 %v2383, %v2431
        %2433 = vmatmul.bf16.gmra.mxu0 %v647
        %v2434 = vpop.f32.mrf.mxu0
        %v2435 = vadd.f32 %v2386, %v2434
        %v2436 = vpop.f32.mrf.mxu0
        %v2437 = vadd.f32 %v2388, %v2436
        %2438 = vmatmul.bf16.gmra.mxu0 %v651
        %v2439 = vpop.f32.mrf.mxu0
        %v2440 = vadd.f32 %v2391, %v2439
        %v2441 = vpop.f32.mrf.mxu0
        %v2442 = vadd.f32 %v2393, %v2441
        %2443 = vdwg.mxu0
        %2444 = vmatpush.bf16.msra.mxu0 %v1893
        %2445 = vmatpush.bf16.msra.mxu0 %v1889
        %2446 = vmatpush.bf16.msra.mxu0 %v1885
        %2447 = vmatpush.bf16.msra.mxu0 %v1881
        %2448 = vmatpush.bf16.msra.mxu0 %v1877
        %2449 = vmatpush.bf16.msra.mxu0 %v1873
        %2450 = vmatpush.bf16.msra.mxu0 %v1869
        %2451 = vmatpush.bf16.msra.mxu0 %v1865
        %2452 = vmatmul.bf16.gmra.mxu0 %v624
        %v2453 = vpop.f32.mrf.mxu0
        %v2454 = vadd.f32 %v2405, %v2453
        %v2455 = vpop.f32.mrf.mxu0
        %v2456 = vadd.f32 %v2407, %v2455
        %2457 = vmatmul.bf16.gmra.mxu0 %v628
        %v2458 = vpop.f32.mrf.mxu0
        %v2459 = vadd.f32 %v2410, %v2458
        %v2460 = vpop.f32.mrf.mxu0
        %v2461 = vadd.f32 %v2412, %v2460
        %2462 = vmatmul.bf16.gmra.mxu0 %v632
        %v2463 = vpop.f32.mrf.mxu0
        %v2464 = vadd.f32 %v2415, %v2463
        %v2465 = vpop.f32.mrf.mxu0
        %v2466 = vadd.f32 %v2417, %v2465
        %2467 = vmatmul.bf16.gmra.mxu0 %v636
        %v2468 = vpop.f32.mrf.mxu0
        %v2469 = vadd.f32 %v2420, %v2468
        %v2470 = vpop.f32.mrf.mxu0
        %v2471 = vadd.f32 %v2422, %v2470
        %2472 = vmatmul.bf16.gmra.mxu0 %v640
        %v2473 = vpop.f32.mrf.mxu0
        %v2474 = vadd.f32 %v2425, %v2473
        %v2475 = vpop.f32.mrf.mxu0
        %v2476 = vadd.f32 %v2427, %v2475
        %2477 = vmatmul.bf16.gmra.mxu0 %v644
        %v2478 = vpop.f32.mrf.mxu0
        %v2479 = vadd.f32 %v2430, %v2478
        %v2480 = vpop.f32.mrf.mxu0
        %v2481 = vadd.f32 %v2432, %v2480
        %2482 = vmatmul.bf16.gmra.mxu0 %v648
        %v2483 = vpop.f32.mrf.mxu0
        %v2484 = vadd.f32 %v2435, %v2483
        %v2485 = vpop.f32.mrf.mxu0
        %v2486 = vadd.f32 %v2437, %v2485
        %2487 = vmatmul.bf16.gmra.mxu0 %v652
        %v2488 = vpop.f32.mrf.mxu0
        %v2489 = vadd.f32 %v2440, %v2488
        %v2490 = vpop.f32.mrf.mxu0
        %v2491 = vadd.f32 %v2442, %v2490
        %2492 = vdwg.mxu0
        %2493 = vmatpush.bf16.msra.mxu0 %v1798
        %2494 = vmatpush.bf16.msra.mxu0 %v1794
        %2495 = vmatpush.bf16.msra.mxu0 %v1790
        %2496 = vmatpush.bf16.msra.mxu0 %v1786
        %2497 = vmatpush.bf16.msra.mxu0 %v1782
        %2498 = vmatpush.bf16.msra.mxu0 %v1778
        %2499 = vmatpush.bf16.msra.mxu0 %v1774
        %2500 = vmatpush.bf16.msra.mxu0 %v1770
        %2501 = vmatmul.bf16.gmra.mxu0 %v621
        %v2502 = vpop.f32.mrf.mxu0
        %v2503 = vadd.f32 %v1900, %v2502
        %v2504 = vpop.f32.mrf.mxu0
        %v2505 = vadd.f32 %v1900, %v2504
        %2506 = vmatmul.bf16.gmra.mxu0 %v625
        %v2507 = vpop.f32.mrf.mxu0
        %v2508 = vadd.f32 %v1900, %v2507
        %v2509 = vpop.f32.mrf.mxu0
        %v2510 = vadd.f32 %v1900, %v2509
        %2511 = vmatmul.bf16.gmra.mxu0 %v629
        %v2512 = vpop.f32.mrf.mxu0
        %v2513 = vadd.f32 %v1900, %v2512
        %v2514 = vpop.f32.mrf.mxu0
        %v2515 = vadd.f32 %v1900, %v2514
        %2516 = vmatmul.bf16.gmra.mxu0 %v633
        %v2517 = vpop.f32.mrf.mxu0
        %v2518 = vadd.f32 %v1900, %v2517
        %v2519 = vpop.f32.mrf.mxu0
        %v2520 = vadd.f32 %v1900, %v2519
        %2521 = vmatmul.bf16.gmra.mxu0 %v637
        %v2522 = vpop.f32.mrf.mxu0
        %v2523 = vadd.f32 %v1900, %v2522
        %v2524 = vpop.f32.mrf.mxu0
        %v2525 = vadd.f32 %v1900, %v2524
        %2526 = vmatmul.bf16.gmra.mxu0 %v641
        %v2527 = vpop.f32.mrf.mxu0
        %v2528 = vadd.f32 %v1900, %v2527
        %v2529 = vpop.f32.mrf.mxu0
        %v2530 = vadd.f32 %v1900, %v2529
        %2531 = vmatmul.bf16.gmra.mxu0 %v645
        %v2532 = vpop.f32.mrf.mxu0
        %v2533 = vadd.f32 %v1900, %v2532
        %v2534 = vpop.f32.mrf.mxu0
        %v2535 = vadd.f32 %v1900, %v2534
        %2536 = vmatmul.bf16.gmra.mxu0 %v649
        %v2537 = vpop.f32.mrf.mxu0
        %v2538 = vadd.f32 %v1900, %v2537
        %v2539 = vpop.f32.mrf.mxu0
        %v2540 = vadd.f32 %v1900, %v2539
        %2541 = vdwg.mxu0
        %2542 = vmatpush.bf16.msra.mxu0 %v1830
        %2543 = vmatpush.bf16.msra.mxu0 %v1826
        %2544 = vmatpush.bf16.msra.mxu0 %v1822
        %2545 = vmatpush.bf16.msra.mxu0 %v1818
        %2546 = vmatpush.bf16.msra.mxu0 %v1814
        %2547 = vmatpush.bf16.msra.mxu0 %v1810
        %2548 = vmatpush.bf16.msra.mxu0 %v1806
        %2549 = vmatpush.bf16.msra.mxu0 %v1802
        %2550 = vmatmul.bf16.gmra.mxu0 %v622
        %v2551 = vpop.f32.mrf.mxu0
        %v2552 = vadd.f32 %v2503, %v2551
        %v2553 = vpop.f32.mrf.mxu0
        %v2554 = vadd.f32 %v2505, %v2553
        %2555 = vmatmul.bf16.gmra.mxu0 %v626
        %v2556 = vpop.f32.mrf.mxu0
        %v2557 = vadd.f32 %v2508, %v2556
        %v2558 = vpop.f32.mrf.mxu0
        %v2559 = vadd.f32 %v2510, %v2558
        %2560 = vmatmul.bf16.gmra.mxu0 %v630
        %v2561 = vpop.f32.mrf.mxu0
        %v2562 = vadd.f32 %v2513, %v2561
        %v2563 = vpop.f32.mrf.mxu0
        %v2564 = vadd.f32 %v2515, %v2563
        %2565 = vmatmul.bf16.gmra.mxu0 %v634
        %v2566 = vpop.f32.mrf.mxu0
        %v2567 = vadd.f32 %v2518, %v2566
        %v2568 = vpop.f32.mrf.mxu0
        %v2569 = vadd.f32 %v2520, %v2568
        %2570 = vmatmul.bf16.gmra.mxu0 %v638
        %v2571 = vpop.f32.mrf.mxu0
        %v2572 = vadd.f32 %v2523, %v2571
        %v2573 = vpop.f32.mrf.mxu0
        %v2574 = vadd.f32 %v2525, %v2573
        %2575 = vmatmul.bf16.gmra.mxu0 %v642
        %v2576 = vpop.f32.mrf.mxu0
        %v2577 = vadd.f32 %v2528, %v2576
        %v2578 = vpop.f32.mrf.mxu0
        %v2579 = vadd.f32 %v2530, %v2578
        %2580 = vmatmul.bf16.gmra.mxu0 %v646
        %v2581 = vpop.f32.mrf.mxu0
        %v2582 = vadd.f32 %v2533, %v2581
        %v2583 = vpop.f32.mrf.mxu0
        %v2584 = vadd.f32 %v2535, %v2583
        %2585 = vmatmul.bf16.gmra.mxu0 %v650
        %v2586 = vpop.f32.mrf.mxu0
        %v2587 = vadd.f32 %v2538, %v2586
        %v2588 = vpop.f32.mrf.mxu0
        %v2589 = vadd.f32 %v2540, %v2588
        %2590 = vdwg.mxu0
        %2591 = vmatpush.bf16.msra.mxu0 %v1862
        %2592 = vmatpush.bf16.msra.mxu0 %v1858
        %2593 = vmatpush.bf16.msra.mxu0 %v1854
        %2594 = vmatpush.bf16.msra.mxu0 %v1850
        %2595 = vmatpush.bf16.msra.mxu0 %v1846
        %2596 = vmatpush.bf16.msra.mxu0 %v1842
        %2597 = vmatpush.bf16.msra.mxu0 %v1838
        %2598 = vmatpush.bf16.msra.mxu0 %v1834
        %2599 = vmatmul.bf16.gmra.mxu0 %v623
        %v2600 = vpop.f32.mrf.mxu0
        %v2601 = vadd.f32 %v2552, %v2600
        %v2602 = vpop.f32.mrf.mxu0
        %v2603 = vadd.f32 %v2554, %v2602
        %2604 = vmatmul.bf16.gmra.mxu0 %v627
        %v2605 = vpop.f32.mrf.mxu0
        %v2606 = vadd.f32 %v2557, %v2605
        %v2607 = vpop.f32.mrf.mxu0
        %v2608 = vadd.f32 %v2559, %v2607
        %2609 = vmatmul.bf16.gmra.mxu0 %v631
        %v2610 = vpop.f32.mrf.mxu0
        %v2611 = vadd.f32 %v2562, %v2610
        %v2612 = vpop.f32.mrf.mxu0
        %v2613 = vadd.f32 %v2564, %v2612
        %2614 = vmatmul.bf16.gmra.mxu0 %v635
        %v2615 = vpop.f32.mrf.mxu0
        %v2616 = vadd.f32 %v2567, %v2615
        %v2617 = vpop.f32.mrf.mxu0
        %v2618 = vadd.f32 %v2569, %v2617
        %2619 = vmatmul.bf16.gmra.mxu0 %v639
        %v2620 = vpop.f32.mrf.mxu0
        %v2621 = vadd.f32 %v2572, %v2620
        %v2622 = vpop.f32.mrf.mxu0
        %v2623 = vadd.f32 %v2574, %v2622
        %2624 = vmatmul.bf16.gmra.mxu0 %v643
        %v2625 = vpop.f32.mrf.mxu0
        %v2626 = vadd.f32 %v2577, %v2625
        %v2627 = vpop.f32.mrf.mxu0
        %v2628 = vadd.f32 %v2579, %v2627
        %2629 = vmatmul.bf16.gmra.mxu0 %v647
        %v2630 = vpop.f32.mrf.mxu0
        %v2631 = vadd.f32 %v2582, %v2630
        %v2632 = vpop.f32.mrf.mxu0
        %v2633 = vadd.f32 %v2584, %v2632
        %2634 = vmatmul.bf16.gmra.mxu0 %v651
        %v2635 = vpop.f32.mrf.mxu0
        %v2636 = vadd.f32 %v2587, %v2635
        %v2637 = vpop.f32.mrf.mxu0
        %v2638 = vadd.f32 %v2589, %v2637
        %2639 = vdwg.mxu0
        %2640 = vmatpush.bf16.msra.mxu0 %v1894
        %2641 = vmatpush.bf16.msra.mxu0 %v1890
        %2642 = vmatpush.bf16.msra.mxu0 %v1886
        %2643 = vmatpush.bf16.msra.mxu0 %v1882
        %2644 = vmatpush.bf16.msra.mxu0 %v1878
        %2645 = vmatpush.bf16.msra.mxu0 %v1874
        %2646 = vmatpush.bf16.msra.mxu0 %v1870
        %2647 = vmatpush.bf16.msra.mxu0 %v1866
        %2648 = vmatmul.bf16.gmra.mxu0 %v624
        %v2649 = vpop.f32.mrf.mxu0
        %v2650 = vadd.f32 %v2601, %v2649
        %v2651 = vpop.f32.mrf.mxu0
        %v2652 = vadd.f32 %v2603, %v2651
        %2653 = vmatmul.bf16.gmra.mxu0 %v628
        %v2654 = vpop.f32.mrf.mxu0
        %v2655 = vadd.f32 %v2606, %v2654
        %v2656 = vpop.f32.mrf.mxu0
        %v2657 = vadd.f32 %v2608, %v2656
        %2658 = vmatmul.bf16.gmra.mxu0 %v632
        %v2659 = vpop.f32.mrf.mxu0
        %v2660 = vadd.f32 %v2611, %v2659
        %v2661 = vpop.f32.mrf.mxu0
        %v2662 = vadd.f32 %v2613, %v2661
        %2663 = vmatmul.bf16.gmra.mxu0 %v636
        %v2664 = vpop.f32.mrf.mxu0
        %v2665 = vadd.f32 %v2616, %v2664
        %v2666 = vpop.f32.mrf.mxu0
        %v2667 = vadd.f32 %v2618, %v2666
        %2668 = vmatmul.bf16.gmra.mxu0 %v640
        %v2669 = vpop.f32.mrf.mxu0
        %v2670 = vadd.f32 %v2621, %v2669
        %v2671 = vpop.f32.mrf.mxu0
        %v2672 = vadd.f32 %v2623, %v2671
        %2673 = vmatmul.bf16.gmra.mxu0 %v644
        %v2674 = vpop.f32.mrf.mxu0
        %v2675 = vadd.f32 %v2626, %v2674
        %v2676 = vpop.f32.mrf.mxu0
        %v2677 = vadd.f32 %v2628, %v2676
        %2678 = vmatmul.bf16.gmra.mxu0 %v648
        %v2679 = vpop.f32.mrf.mxu0
        %v2680 = vadd.f32 %v2631, %v2679
        %v2681 = vpop.f32.mrf.mxu0
        %v2682 = vadd.f32 %v2633, %v2681
        %2683 = vmatmul.bf16.gmra.mxu0 %v652
        %v2684 = vpop.f32.mrf.mxu0
        %v2685 = vadd.f32 %v2636, %v2684
        %v2686 = vpop.f32.mrf.mxu0
        %v2687 = vadd.f32 %v2638, %v2686
        %2688 = vdwg.mxu0
        %v2689 = vld [vmem:[#allocation11] sm:$0xff]
        %v2690 = vld [vmem:[#allocation11 + $0x8] sm:$0xff]
        %v2691 = vld [vmem:[#allocation11 + $0x10] sm:$0xff]
        %v2692 = vld [vmem:[#allocation11 + $0x18] sm:$0xff]
        %v2693 = vld [vmem:[#allocation11 + $0x20] sm:$0xff]
        %v2694 = vld [vmem:[#allocation11 + $0x28] sm:$0xff]
        %v2695 = vld [vmem:[#allocation11 + $0x30] sm:$0xff]
        %v2696 = vld [vmem:[#allocation11 + $0x38] sm:$0xff]
        %v2697 = vld [vmem:[#allocation11 + $0x40] sm:$0xff]
        %v2698 = vld [vmem:[#allocation11 + $0x48] sm:$0xff]
        %v2699 = vld [vmem:[#allocation11 + $0x50] sm:$0xff]
        %v2700 = vld [vmem:[#allocation11 + $0x58] sm:$0xff]
        %v2701 = vld [vmem:[#allocation11 + $0x60] sm:$0xff]
        %v2702 = vld [vmem:[#allocation11 + $0x68] sm:$0xff]
        %v2703 = vld [vmem:[#allocation11 + $0x70] sm:$0xff]
        %v2704 = vld [vmem:[#allocation11 + $0x78] sm:$0xff]
        %v2705 = vld [vmem:[#allocation11 + $0x80] sm:$0xff]
        %v2706 = vld [vmem:[#allocation11 + $0x88] sm:$0xff]
        %v2707 = vld [vmem:[#allocation11 + $0x90] sm:$0xff]
        %v2708 = vld [vmem:[#allocation11 + $0x98] sm:$0xff]
        %v2709 = vld [vmem:[#allocation11 + $0xa0] sm:$0xff]
        %v2710 = vld [vmem:[#allocation11 + $0xa8] sm:$0xff]
        %v2711 = vld [vmem:[#allocation11 + $0xb0] sm:$0xff]
        %v2712 = vld [vmem:[#allocation11 + $0xb8] sm:$0xff]
        %v2713 = vld [vmem:[#allocation11 + $0xc0] sm:$0xff]
        %v2714 = vld [vmem:[#allocation11 + $0xc8] sm:$0xff]
        %v2715 = vld [vmem:[#allocation11 + $0xd0] sm:$0xff]
        %v2716 = vld [vmem:[#allocation11 + $0xd8] sm:$0xff]
        %v2717 = vld [vmem:[#allocation11 + $0xe0] sm:$0xff]
        %v2718 = vld [vmem:[#allocation11 + $0xe8] sm:$0xff]
        %v2719 = vld [vmem:[#allocation11 + $0xf0] sm:$0xff]
        %v2720 = vld [vmem:[#allocation11 + $0xf8] sm:$0xff]
        %v2721 = vld [vmem:[#allocation11 + $0x100] sm:$0xff]
        %v2722 = vld [vmem:[#allocation11 + $0x108] sm:$0xff]
        %v2723 = vld [vmem:[#allocation11 + $0x110] sm:$0xff]
        %v2724 = vld [vmem:[#allocation11 + $0x118] sm:$0xff]
        %v2725 = vld [vmem:[#allocation11 + $0x120] sm:$0xff]
        %v2726 = vld [vmem:[#allocation11 + $0x128] sm:$0xff]
        %v2727 = vld [vmem:[#allocation11 + $0x130] sm:$0xff]
        %v2728 = vld [vmem:[#allocation11 + $0x138] sm:$0xff]
        %v2729 = vld [vmem:[#allocation11 + $0x140] sm:$0xff]
        %v2730 = vld [vmem:[#allocation11 + $0x148] sm:$0xff]
        %v2731 = vld [vmem:[#allocation11 + $0x150] sm:$0xff]
        %v2732 = vld [vmem:[#allocation11 + $0x158] sm:$0xff]
        %v2733 = vld [vmem:[#allocation11 + $0x160] sm:$0xff]
        %v2734 = vld [vmem:[#allocation11 + $0x168] sm:$0xff]
        %v2735 = vld [vmem:[#allocation11 + $0x170] sm:$0xff]
        %v2736 = vld [vmem:[#allocation11 + $0x178] sm:$0xff]
        %v2737 = vld [vmem:[#allocation11 + $0x180] sm:$0xff]
        %v2738 = vld [vmem:[#allocation11 + $0x188] sm:$0xff]
        %v2739 = vld [vmem:[#allocation11 + $0x190] sm:$0xff]
        %v2740 = vld [vmem:[#allocation11 + $0x198] sm:$0xff]
        %v2741 = vld [vmem:[#allocation11 + $0x1a0] sm:$0xff]
        %v2742 = vld [vmem:[#allocation11 + $0x1a8] sm:$0xff]
        %v2743 = vld [vmem:[#allocation11 + $0x1b0] sm:$0xff]
        %v2744 = vld [vmem:[#allocation11 + $0x1b8] sm:$0xff]
        %v2745 = vld [vmem:[#allocation11 + $0x1c0] sm:$0xff]
        %v2746 = vld [vmem:[#allocation11 + $0x1c8] sm:$0xff]
        %v2747 = vld [vmem:[#allocation11 + $0x1d0] sm:$0xff]
        %v2748 = vld [vmem:[#allocation11 + $0x1d8] sm:$0xff]
        %v2749 = vld [vmem:[#allocation11 + $0x1e0] sm:$0xff]
        %v2750 = vld [vmem:[#allocation11 + $0x1e8] sm:$0xff]
        %v2751 = vld [vmem:[#allocation11 + $0x1f0] sm:$0xff]
        %v2752 = vld [vmem:[#allocation11 + $0x1f8] sm:$0xff]
        %v2753 = vld [vmem:[#allocation11 + $0x200] sm:$0xff]
        %v2754 = vld [vmem:[#allocation11 + $0x208] sm:$0xff]
        %v2755 = vld [vmem:[#allocation11 + $0x210] sm:$0xff]
        %v2756 = vld [vmem:[#allocation11 + $0x218] sm:$0xff]
        %v2757 = vld [vmem:[#allocation11 + $0x220] sm:$0xff]
        %v2758 = vld [vmem:[#allocation11 + $0x228] sm:$0xff]
        %v2759 = vld [vmem:[#allocation11 + $0x230] sm:$0xff]
        %v2760 = vld [vmem:[#allocation11 + $0x238] sm:$0xff]
        %v2761 = vld [vmem:[#allocation11 + $0x240] sm:$0xff]
        %v2762 = vld [vmem:[#allocation11 + $0x248] sm:$0xff]
        %v2763 = vld [vmem:[#allocation11 + $0x250] sm:$0xff]
        %v2764 = vld [vmem:[#allocation11 + $0x258] sm:$0xff]
        %v2765 = vld [vmem:[#allocation11 + $0x260] sm:$0xff]
        %v2766 = vld [vmem:[#allocation11 + $0x268] sm:$0xff]
        %v2767 = vld [vmem:[#allocation11 + $0x270] sm:$0xff]
        %v2768 = vld [vmem:[#allocation11 + $0x278] sm:$0xff]
        %v2769 = vld [vmem:[#allocation11 + $0x280] sm:$0xff]
        %v2770 = vld [vmem:[#allocation11 + $0x288] sm:$0xff]
        %v2771 = vld [vmem:[#allocation11 + $0x290] sm:$0xff]
        %v2772 = vld [vmem:[#allocation11 + $0x298] sm:$0xff]
        %v2773 = vld [vmem:[#allocation11 + $0x2a0] sm:$0xff]
        %v2774 = vld [vmem:[#allocation11 + $0x2a8] sm:$0xff]
        %v2775 = vld [vmem:[#allocation11 + $0x2b0] sm:$0xff]
        %v2776 = vld [vmem:[#allocation11 + $0x2b8] sm:$0xff]
        %v2777 = vld [vmem:[#allocation11 + $0x2c0] sm:$0xff]
        %v2778 = vld [vmem:[#allocation11 + $0x2c8] sm:$0xff]
        %v2779 = vld [vmem:[#allocation11 + $0x2d0] sm:$0xff]
        %v2780 = vld [vmem:[#allocation11 + $0x2d8] sm:$0xff]
        %v2781 = vld [vmem:[#allocation11 + $0x2e0] sm:$0xff]
        %v2782 = vld [vmem:[#allocation11 + $0x2e8] sm:$0xff]
        %v2783 = vld [vmem:[#allocation11 + $0x2f0] sm:$0xff]
        %v2784 = vld [vmem:[#allocation11 + $0x2f8] sm:$0xff]
        %v2785 = vld [vmem:[#allocation11 + $0x300] sm:$0xff]
        %v2786 = vld [vmem:[#allocation11 + $0x308] sm:$0xff]
        %v2787 = vld [vmem:[#allocation11 + $0x310] sm:$0xff]
        %v2788 = vld [vmem:[#allocation11 + $0x318] sm:$0xff]
        %v2789 = vld [vmem:[#allocation11 + $0x320] sm:$0xff]
        %v2790 = vld [vmem:[#allocation11 + $0x328] sm:$0xff]
        %v2791 = vld [vmem:[#allocation11 + $0x330] sm:$0xff]
        %v2792 = vld [vmem:[#allocation11 + $0x338] sm:$0xff]
        %v2793 = vld [vmem:[#allocation11 + $0x340] sm:$0xff]
        %v2794 = vld [vmem:[#allocation11 + $0x348] sm:$0xff]
        %v2795 = vld [vmem:[#allocation11 + $0x350] sm:$0xff]
        %v2796 = vld [vmem:[#allocation11 + $0x358] sm:$0xff]
        %v2797 = vld [vmem:[#allocation11 + $0x360] sm:$0xff]
        %v2798 = vld [vmem:[#allocation11 + $0x368] sm:$0xff]
        %v2799 = vld [vmem:[#allocation11 + $0x370] sm:$0xff]
        %v2800 = vld [vmem:[#allocation11 + $0x378] sm:$0xff]
        %v2801 = vld [vmem:[#allocation11 + $0x380] sm:$0xff]
        %v2802 = vld [vmem:[#allocation11 + $0x388] sm:$0xff]
        %v2803 = vld [vmem:[#allocation11 + $0x390] sm:$0xff]
        %v2804 = vld [vmem:[#allocation11 + $0x398] sm:$0xff]
        %v2805 = vld [vmem:[#allocation11 + $0x3a0] sm:$0xff]
        %v2806 = vld [vmem:[#allocation11 + $0x3a8] sm:$0xff]
        %v2807 = vld [vmem:[#allocation11 + $0x3b0] sm:$0xff]
        %v2808 = vld [vmem:[#allocation11 + $0x3b8] sm:$0xff]
        %v2809 = vld [vmem:[#allocation11 + $0x3c0] sm:$0xff]
        %v2810 = vld [vmem:[#allocation11 + $0x3c8] sm:$0xff]
        %v2811 = vld [vmem:[#allocation11 + $0x3d0] sm:$0xff]
        %v2812 = vld [vmem:[#allocation11 + $0x3d8] sm:$0xff]
        %v2813 = vld [vmem:[#allocation11 + $0x3e0] sm:$0xff]
        %v2814 = vld [vmem:[#allocation11 + $0x3e8] sm:$0xff]
        %v2815 = vld [vmem:[#allocation11 + $0x3f0] sm:$0xff]
        %v2816 = vld [vmem:[#allocation11 + $0x3f8] sm:$0xff]
        %v2817 = vld [vmem:[#allocation11 + $0x400] sm:$0xff]
        %v2818 = vld [vmem:[#allocation11 + $0x408] sm:$0xff]
        %v2819 = vld [vmem:[#allocation11 + $0x410] sm:$0xff]
        %v2820 = vld [vmem:[#allocation11 + $0x418] sm:$0xff]
        %v2821 = vld [vmem:[#allocation11 + $0x420] sm:$0xff]
        %v2822 = vld [vmem:[#allocation11 + $0x428] sm:$0xff]
        %v2823 = vld [vmem:[#allocation11 + $0x430] sm:$0xff]
        %v2824 = vld [vmem:[#allocation11 + $0x438] sm:$0xff]
        %v2825 = vld [vmem:[#allocation11 + $0x440] sm:$0xff]
        %v2826 = vld [vmem:[#allocation11 + $0x448] sm:$0xff]
        %v2827 = vld [vmem:[#allocation11 + $0x450] sm:$0xff]
        %v2828 = vld [vmem:[#allocation11 + $0x458] sm:$0xff]
        %v2829 = vld [vmem:[#allocation11 + $0x460] sm:$0xff]
        %v2830 = vld [vmem:[#allocation11 + $0x468] sm:$0xff]
        %v2831 = vld [vmem:[#allocation11 + $0x470] sm:$0xff]
        %v2832 = vld [vmem:[#allocation11 + $0x478] sm:$0xff]
        %v2833 = vld [vmem:[#allocation11 + $0x480] sm:$0xff]
        %v2834 = vld [vmem:[#allocation11 + $0x488] sm:$0xff]
        %v2835 = vld [vmem:[#allocation11 + $0x490] sm:$0xff]
        %v2836 = vld [vmem:[#allocation11 + $0x498] sm:$0xff]
        %v2837 = vld [vmem:[#allocation11 + $0x4a0] sm:$0xff]
        %v2838 = vld [vmem:[#allocation11 + $0x4a8] sm:$0xff]
        %v2839 = vld [vmem:[#allocation11 + $0x4b0] sm:$0xff]
        %v2840 = vld [vmem:[#allocation11 + $0x4b8] sm:$0xff]
        %v2841 = vld [vmem:[#allocation11 + $0x4c0] sm:$0xff]
        %v2842 = vld [vmem:[#allocation11 + $0x4c8] sm:$0xff]
        %v2843 = vld [vmem:[#allocation11 + $0x4d0] sm:$0xff]
        %v2844 = vld [vmem:[#allocation11 + $0x4d8] sm:$0xff]
        %v2845 = vld [vmem:[#allocation11 + $0x4e0] sm:$0xff]
        %v2846 = vld [vmem:[#allocation11 + $0x4e8] sm:$0xff]
        %v2847 = vld [vmem:[#allocation11 + $0x4f0] sm:$0xff]
        %v2848 = vld [vmem:[#allocation11 + $0x4f8] sm:$0xff]
        %v2849 = vld [vmem:[#allocation11 + $0x500] sm:$0xff]
        %v2850 = vld [vmem:[#allocation11 + $0x508] sm:$0xff]
        %v2851 = vld [vmem:[#allocation11 + $0x510] sm:$0xff]
        %v2852 = vld [vmem:[#allocation11 + $0x518] sm:$0xff]
        %v2853 = vld [vmem:[#allocation11 + $0x520] sm:$0xff]
        %v2854 = vld [vmem:[#allocation11 + $0x528] sm:$0xff]
        %v2855 = vld [vmem:[#allocation11 + $0x530] sm:$0xff]
        %v2856 = vld [vmem:[#allocation11 + $0x538] sm:$0xff]
        %v2857 = vld [vmem:[#allocation11 + $0x540] sm:$0xff]
        %v2858 = vld [vmem:[#allocation11 + $0x548] sm:$0xff]
        %v2859 = vld [vmem:[#allocation11 + $0x550] sm:$0xff]
        %v2860 = vld [vmem:[#allocation11 + $0x558] sm:$0xff]
        %v2861 = vld [vmem:[#allocation11 + $0x560] sm:$0xff]
        %v2862 = vld [vmem:[#allocation11 + $0x568] sm:$0xff]
        %v2863 = vld [vmem:[#allocation11 + $0x570] sm:$0xff]
        %v2864 = vld [vmem:[#allocation11 + $0x578] sm:$0xff]
        %v2865 = vld [vmem:[#allocation11 + $0x580] sm:$0xff]
        %v2866 = vld [vmem:[#allocation11 + $0x588] sm:$0xff]
        %v2867 = vld [vmem:[#allocation11 + $0x590] sm:$0xff]
        %v2868 = vld [vmem:[#allocation11 + $0x598] sm:$0xff]
        %v2869 = vld [vmem:[#allocation11 + $0x5a0] sm:$0xff]
        %v2870 = vld [vmem:[#allocation11 + $0x5a8] sm:$0xff]
        %v2871 = vld [vmem:[#allocation11 + $0x5b0] sm:$0xff]
        %v2872 = vld [vmem:[#allocation11 + $0x5b8] sm:$0xff]
        %v2873 = vld [vmem:[#allocation11 + $0x5c0] sm:$0xff]
        %v2874 = vld [vmem:[#allocation11 + $0x5c8] sm:$0xff]
        %v2875 = vld [vmem:[#allocation11 + $0x5d0] sm:$0xff]
        %v2876 = vld [vmem:[#allocation11 + $0x5d8] sm:$0xff]
        %v2877 = vld [vmem:[#allocation11 + $0x5e0] sm:$0xff]
        %v2878 = vld [vmem:[#allocation11 + $0x5e8] sm:$0xff]
        %v2879 = vld [vmem:[#allocation11 + $0x5f0] sm:$0xff]
        %v2880 = vld [vmem:[#allocation11 + $0x5f8] sm:$0xff]
        %v2881 = vld [vmem:[#allocation11 + $0x600] sm:$0xff]
        %v2882 = vld [vmem:[#allocation11 + $0x608] sm:$0xff]
        %v2883 = vld [vmem:[#allocation11 + $0x610] sm:$0xff]
        %v2884 = vld [vmem:[#allocation11 + $0x618] sm:$0xff]
        %v2885 = vld [vmem:[#allocation11 + $0x620] sm:$0xff]
        %v2886 = vld [vmem:[#allocation11 + $0x628] sm:$0xff]
        %v2887 = vld [vmem:[#allocation11 + $0x630] sm:$0xff]
        %v2888 = vld [vmem:[#allocation11 + $0x638] sm:$0xff]
        %v2889 = vld [vmem:[#allocation11 + $0x640] sm:$0xff]
        %v2890 = vld [vmem:[#allocation11 + $0x648] sm:$0xff]
        %v2891 = vld [vmem:[#allocation11 + $0x650] sm:$0xff]
        %v2892 = vld [vmem:[#allocation11 + $0x658] sm:$0xff]
        %v2893 = vld [vmem:[#allocation11 + $0x660] sm:$0xff]
        %v2894 = vld [vmem:[#allocation11 + $0x668] sm:$0xff]
        %v2895 = vld [vmem:[#allocation11 + $0x670] sm:$0xff]
        %v2896 = vld [vmem:[#allocation11 + $0x678] sm:$0xff]
        %v2897 = vld [vmem:[#allocation11 + $0x680] sm:$0xff]
        %v2898 = vld [vmem:[#allocation11 + $0x688] sm:$0xff]
        %v2899 = vld [vmem:[#allocation11 + $0x690] sm:$0xff]
        %v2900 = vld [vmem:[#allocation11 + $0x698] sm:$0xff]
        %v2901 = vld [vmem:[#allocation11 + $0x6a0] sm:$0xff]
        %v2902 = vld [vmem:[#allocation11 + $0x6a8] sm:$0xff]
        %v2903 = vld [vmem:[#allocation11 + $0x6b0] sm:$0xff]
        %v2904 = vld [vmem:[#allocation11 + $0x6b8] sm:$0xff]
        %v2905 = vld [vmem:[#allocation11 + $0x6c0] sm:$0xff]
        %v2906 = vld [vmem:[#allocation11 + $0x6c8] sm:$0xff]
        %v2907 = vld [vmem:[#allocation11 + $0x6d0] sm:$0xff]
        %v2908 = vld [vmem:[#allocation11 + $0x6d8] sm:$0xff]
        %v2909 = vld [vmem:[#allocation11 + $0x6e0] sm:$0xff]
        %v2910 = vld [vmem:[#allocation11 + $0x6e8] sm:$0xff]
        %v2911 = vld [vmem:[#allocation11 + $0x6f0] sm:$0xff]
        %v2912 = vld [vmem:[#allocation11 + $0x6f8] sm:$0xff]
        %v2913 = vld [vmem:[#allocation11 + $0x700] sm:$0xff]
        %v2914 = vld [vmem:[#allocation11 + $0x708] sm:$0xff]
        %v2915 = vld [vmem:[#allocation11 + $0x710] sm:$0xff]
        %v2916 = vld [vmem:[#allocation11 + $0x718] sm:$0xff]
        %v2917 = vld [vmem:[#allocation11 + $0x720] sm:$0xff]
        %v2918 = vld [vmem:[#allocation11 + $0x728] sm:$0xff]
        %v2919 = vld [vmem:[#allocation11 + $0x730] sm:$0xff]
        %v2920 = vld [vmem:[#allocation11 + $0x738] sm:$0xff]
        %v2921 = vld [vmem:[#allocation11 + $0x740] sm:$0xff]
        %v2922 = vld [vmem:[#allocation11 + $0x748] sm:$0xff]
        %v2923 = vld [vmem:[#allocation11 + $0x750] sm:$0xff]
        %v2924 = vld [vmem:[#allocation11 + $0x758] sm:$0xff]
        %v2925 = vld [vmem:[#allocation11 + $0x760] sm:$0xff]
        %v2926 = vld [vmem:[#allocation11 + $0x768] sm:$0xff]
        %v2927 = vld [vmem:[#allocation11 + $0x770] sm:$0xff]
        %v2928 = vld [vmem:[#allocation11 + $0x778] sm:$0xff]
        %v2929 = vld [vmem:[#allocation11 + $0x780] sm:$0xff]
        %v2930 = vld [vmem:[#allocation11 + $0x788] sm:$0xff]
        %v2931 = vld [vmem:[#allocation11 + $0x790] sm:$0xff]
        %v2932 = vld [vmem:[#allocation11 + $0x798] sm:$0xff]
        %v2933 = vld [vmem:[#allocation11 + $0x7a0] sm:$0xff]
        %v2934 = vld [vmem:[#allocation11 + $0x7a8] sm:$0xff]
        %v2935 = vld [vmem:[#allocation11 + $0x7b0] sm:$0xff]
        %v2936 = vld [vmem:[#allocation11 + $0x7b8] sm:$0xff]
        %v2937 = vld [vmem:[#allocation11 + $0x7c0] sm:$0xff]
        %v2938 = vld [vmem:[#allocation11 + $0x7c8] sm:$0xff]
        %v2939 = vld [vmem:[#allocation11 + $0x7d0] sm:$0xff]
        %v2940 = vld [vmem:[#allocation11 + $0x7d8] sm:$0xff]
        %v2941 = vld [vmem:[#allocation11 + $0x7e0] sm:$0xff]
        %v2942 = vld [vmem:[#allocation11 + $0x7e8] sm:$0xff]
        %v2943 = vld [vmem:[#allocation11 + $0x7f0] sm:$0xff]
        %v2944 = vld [vmem:[#allocation11 + $0x7f8] sm:$0xff]
        %v2945 = vpack.c.bf16 %v2693, %v2689
        %v2946 = vpack.c.bf16 %v2694, %v2690
        %v2947 = vpack.c.bf16 %v2695, %v2691
        %v2948 = vpack.c.bf16 %v2696, %v2692
        %v2949 = vpack.c.bf16 %v2701, %v2697
        %v2950 = vpack.c.bf16 %v2702, %v2698
        %v2951 = vpack.c.bf16 %v2703, %v2699
        %v2952 = vpack.c.bf16 %v2704, %v2700
        %v2953 = vpack.c.bf16 %v2709, %v2705
        %v2954 = vpack.c.bf16 %v2710, %v2706
        %v2955 = vpack.c.bf16 %v2711, %v2707
        %v2956 = vpack.c.bf16 %v2712, %v2708
        %v2957 = vpack.c.bf16 %v2717, %v2713
        %v2958 = vpack.c.bf16 %v2718, %v2714
        %v2959 = vpack.c.bf16 %v2719, %v2715
        %v2960 = vpack.c.bf16 %v2720, %v2716
        %v2961 = vpack.c.bf16 %v2725, %v2721
        %v2962 = vpack.c.bf16 %v2726, %v2722
        %v2963 = vpack.c.bf16 %v2727, %v2723
        %v2964 = vpack.c.bf16 %v2728, %v2724
        %v2965 = vpack.c.bf16 %v2733, %v2729
        %v2966 = vpack.c.bf16 %v2734, %v2730
        %v2967 = vpack.c.bf16 %v2735, %v2731
        %v2968 = vpack.c.bf16 %v2736, %v2732
        %v2969 = vpack.c.bf16 %v2741, %v2737
        %v2970 = vpack.c.bf16 %v2742, %v2738
        %v2971 = vpack.c.bf16 %v2743, %v2739
        %v2972 = vpack.c.bf16 %v2744, %v2740
        %v2973 = vpack.c.bf16 %v2749, %v2745
        %v2974 = vpack.c.bf16 %v2750, %v2746
        %v2975 = vpack.c.bf16 %v2751, %v2747
        %v2976 = vpack.c.bf16 %v2752, %v2748
        %v2977 = vpack.c.bf16 %v2757, %v2753
        %v2978 = vpack.c.bf16 %v2758, %v2754
        %v2979 = vpack.c.bf16 %v2759, %v2755
        %v2980 = vpack.c.bf16 %v2760, %v2756
        %v2981 = vpack.c.bf16 %v2765, %v2761
        %v2982 = vpack.c.bf16 %v2766, %v2762
        %v2983 = vpack.c.bf16 %v2767, %v2763
        %v2984 = vpack.c.bf16 %v2768, %v2764
        %v2985 = vpack.c.bf16 %v2773, %v2769
        %v2986 = vpack.c.bf16 %v2774, %v2770
        %v2987 = vpack.c.bf16 %v2775, %v2771
        %v2988 = vpack.c.bf16 %v2776, %v2772
        %v2989 = vpack.c.bf16 %v2781, %v2777
        %v2990 = vpack.c.bf16 %v2782, %v2778
        %v2991 = vpack.c.bf16 %v2783, %v2779
        %v2992 = vpack.c.bf16 %v2784, %v2780
        %v2993 = vpack.c.bf16 %v2789, %v2785
        %v2994 = vpack.c.bf16 %v2790, %v2786
        %v2995 = vpack.c.bf16 %v2791, %v2787
        %v2996 = vpack.c.bf16 %v2792, %v2788
        %v2997 = vpack.c.bf16 %v2797, %v2793
        %v2998 = vpack.c.bf16 %v2798, %v2794
        %v2999 = vpack.c.bf16 %v2799, %v2795
        %v3000 = vpack.c.bf16 %v2800, %v2796
        %v3001 = vpack.c.bf16 %v2805, %v2801
        %v3002 = vpack.c.bf16 %v2806, %v2802
        %v3003 = vpack.c.bf16 %v2807, %v2803
        %v3004 = vpack.c.bf16 %v2808, %v2804
        %v3005 = vpack.c.bf16 %v2813, %v2809
        %v3006 = vpack.c.bf16 %v2814, %v2810
        %v3007 = vpack.c.bf16 %v2815, %v2811
        %v3008 = vpack.c.bf16 %v2816, %v2812
        %v3009 = vpack.c.bf16 %v2821, %v2817
        %v3010 = vpack.c.bf16 %v2822, %v2818
        %v3011 = vpack.c.bf16 %v2823, %v2819
        %v3012 = vpack.c.bf16 %v2824, %v2820
        %v3013 = vpack.c.bf16 %v2829, %v2825
        %v3014 = vpack.c.bf16 %v2830, %v2826
        %v3015 = vpack.c.bf16 %v2831, %v2827
        %v3016 = vpack.c.bf16 %v2832, %v2828
        %v3017 = vpack.c.bf16 %v2837, %v2833
        %v3018 = vpack.c.bf16 %v2838, %v2834
        %v3019 = vpack.c.bf16 %v2839, %v2835
        %v3020 = vpack.c.bf16 %v2840, %v2836
        %v3021 = vpack.c.bf16 %v2845, %v2841
        %v3022 = vpack.c.bf16 %v2846, %v2842
        %v3023 = vpack.c.bf16 %v2847, %v2843
        %v3024 = vpack.c.bf16 %v2848, %v2844
        %v3025 = vpack.c.bf16 %v2853, %v2849
        %v3026 = vpack.c.bf16 %v2854, %v2850
        %v3027 = vpack.c.bf16 %v2855, %v2851
        %v3028 = vpack.c.bf16 %v2856, %v2852
        %v3029 = vpack.c.bf16 %v2861, %v2857
        %v3030 = vpack.c.bf16 %v2862, %v2858
        %v3031 = vpack.c.bf16 %v2863, %v2859
        %v3032 = vpack.c.bf16 %v2864, %v2860
        %v3033 = vpack.c.bf16 %v2869, %v2865
        %v3034 = vpack.c.bf16 %v2870, %v2866
        %v3035 = vpack.c.bf16 %v2871, %v2867
        %v3036 = vpack.c.bf16 %v2872, %v2868
        %v3037 = vpack.c.bf16 %v2877, %v2873
        %v3038 = vpack.c.bf16 %v2878, %v2874
        %v3039 = vpack.c.bf16 %v2879, %v2875
        %v3040 = vpack.c.bf16 %v2880, %v2876
        %v3041 = vpack.c.bf16 %v2885, %v2881
        %v3042 = vpack.c.bf16 %v2886, %v2882
        %v3043 = vpack.c.bf16 %v2887, %v2883
        %v3044 = vpack.c.bf16 %v2888, %v2884
        %v3045 = vpack.c.bf16 %v2893, %v2889
        %v3046 = vpack.c.bf16 %v2894, %v2890
        %v3047 = vpack.c.bf16 %v2895, %v2891
        %v3048 = vpack.c.bf16 %v2896, %v2892
        %v3049 = vpack.c.bf16 %v2901, %v2897
        %v3050 = vpack.c.bf16 %v2902, %v2898
        %v3051 = vpack.c.bf16 %v2903, %v2899
        %v3052 = vpack.c.bf16 %v2904, %v2900
        %v3053 = vpack.c.bf16 %v2909, %v2905
        %v3054 = vpack.c.bf16 %v2910, %v2906
        %v3055 = vpack.c.bf16 %v2911, %v2907
        %v3056 = vpack.c.bf16 %v2912, %v2908
        %v3057 = vpack.c.bf16 %v2917, %v2913
        %v3058 = vpack.c.bf16 %v2918, %v2914
        %v3059 = vpack.c.bf16 %v2919, %v2915
        %v3060 = vpack.c.bf16 %v2920, %v2916
        %v3061 = vpack.c.bf16 %v2925, %v2921
        %v3062 = vpack.c.bf16 %v2926, %v2922
        %v3063 = vpack.c.bf16 %v2927, %v2923
        %v3064 = vpack.c.bf16 %v2928, %v2924
        %v3065 = vpack.c.bf16 %v2933, %v2929
        %v3066 = vpack.c.bf16 %v2934, %v2930
        %v3067 = vpack.c.bf16 %v2935, %v2931
        %v3068 = vpack.c.bf16 %v2936, %v2932
        %v3069 = vpack.c.bf16 %v2941, %v2937
        %v3070 = vpack.c.bf16 %v2942, %v2938
        %v3071 = vpack.c.bf16 %v2943, %v2939
        %v3072 = vpack.c.bf16 %v2944, %v2940
        %v3073 = vld [vmem:[#allocation13] sm:$0xf]
        %v3075 = vperm.slane %v3073, 0
        %v3076 = vperm.slane %v3073, 1
        %v3077 = vperm.slane %v3073, 2
        %v3078 = vperm.slane %v3073, 3
        %3083 = vmatpush.bf16.msra.mxu0 %v2973
        %3084 = vmatpush.bf16.msra.mxu0 %v2969
        %3085 = vmatpush.bf16.msra.mxu0 %v2965
        %3086 = vmatpush.bf16.msra.mxu0 %v2961
        %3087 = vmatpush.bf16.msra.mxu0 %v2957
        %3088 = vmatpush.bf16.msra.mxu0 %v2953
        %3089 = vmatpush.bf16.msra.mxu0 %v2949
        %3090 = vmatpush.bf16.msra.mxu0 %v2945
        %3091 = vmatmul.bf16.gmra.mxu0 %v621
        %v3092 = vpop.f32.mrf.mxu0
        %v3093 = vadd.f32 %v3075, %v3092
        %v3094 = vpop.f32.mrf.mxu0
        %v3095 = vadd.f32 %v3075, %v3094
        %3096 = vmatmul.bf16.gmra.mxu0 %v625
        %v3097 = vpop.f32.mrf.mxu0
        %v3098 = vadd.f32 %v3075, %v3097
        %v3099 = vpop.f32.mrf.mxu0
        %v3100 = vadd.f32 %v3075, %v3099
        %3101 = vmatmul.bf16.gmra.mxu0 %v629
        %v3102 = vpop.f32.mrf.mxu0
        %v3103 = vadd.f32 %v3075, %v3102
        %v3104 = vpop.f32.mrf.mxu0
        %v3105 = vadd.f32 %v3075, %v3104
        %3106 = vmatmul.bf16.gmra.mxu0 %v633
        %v3107 = vpop.f32.mrf.mxu0
        %v3108 = vadd.f32 %v3075, %v3107
        %v3109 = vpop.f32.mrf.mxu0
        %v3110 = vadd.f32 %v3075, %v3109
        %3111 = vmatmul.bf16.gmra.mxu0 %v637
        %v3112 = vpop.f32.mrf.mxu0
        %v3113 = vadd.f32 %v3075, %v3112
        %v3114 = vpop.f32.mrf.mxu0
        %v3115 = vadd.f32 %v3075, %v3114
        %3116 = vmatmul.bf16.gmra.mxu0 %v641
        %v3117 = vpop.f32.mrf.mxu0
        %v3118 = vadd.f32 %v3075, %v3117
        %v3119 = vpop.f32.mrf.mxu0
        %v3120 = vadd.f32 %v3075, %v3119
        %3121 = vmatmul.bf16.gmra.mxu0 %v645
        %v3122 = vpop.f32.mrf.mxu0
        %v3123 = vadd.f32 %v3075, %v3122
        %v3124 = vpop.f32.mrf.mxu0
        %v3125 = vadd.f32 %v3075, %v3124
        %3126 = vmatmul.bf16.gmra.mxu0 %v649
        %v3127 = vpop.f32.mrf.mxu0
        %v3128 = vadd.f32 %v3075, %v3127
        %v3129 = vpop.f32.mrf.mxu0
        %v3130 = vadd.f32 %v3075, %v3129
        %3131 = vdwg.mxu0
        %3132 = vmatpush.bf16.msra.mxu0 %v3005
        %3133 = vmatpush.bf16.msra.mxu0 %v3001
        %3134 = vmatpush.bf16.msra.mxu0 %v2997
        %3135 = vmatpush.bf16.msra.mxu0 %v2993
        %3136 = vmatpush.bf16.msra.mxu0 %v2989
        %3137 = vmatpush.bf16.msra.mxu0 %v2985
        %3138 = vmatpush.bf16.msra.mxu0 %v2981
        %3139 = vmatpush.bf16.msra.mxu0 %v2977
        %3140 = vmatmul.bf16.gmra.mxu0 %v622
        %v3141 = vpop.f32.mrf.mxu0
        %v3142 = vadd.f32 %v3093, %v3141
        %v3143 = vpop.f32.mrf.mxu0
        %v3144 = vadd.f32 %v3095, %v3143
        %3145 = vmatmul.bf16.gmra.mxu0 %v626
        %v3146 = vpop.f32.mrf.mxu0
        %v3147 = vadd.f32 %v3098, %v3146
        %v3148 = vpop.f32.mrf.mxu0
        %v3149 = vadd.f32 %v3100, %v3148
        %3150 = vmatmul.bf16.gmra.mxu0 %v630
        %v3151 = vpop.f32.mrf.mxu0
        %v3152 = vadd.f32 %v3103, %v3151
        %v3153 = vpop.f32.mrf.mxu0
        %v3154 = vadd.f32 %v3105, %v3153
        %3155 = vmatmul.bf16.gmra.mxu0 %v634
        %v3156 = vpop.f32.mrf.mxu0
        %v3157 = vadd.f32 %v3108, %v3156
        %v3158 = vpop.f32.mrf.mxu0
        %v3159 = vadd.f32 %v3110, %v3158
        %3160 = vmatmul.bf16.gmra.mxu0 %v638
        %v3161 = vpop.f32.mrf.mxu0
        %v3162 = vadd.f32 %v3113, %v3161
        %v3163 = vpop.f32.mrf.mxu0
        %v3164 = vadd.f32 %v3115, %v3163
        %3165 = vmatmul.bf16.gmra.mxu0 %v642
        %v3166 = vpop.f32.mrf.mxu0
        %v3167 = vadd.f32 %v3118, %v3166
        %v3168 = vpop.f32.mrf.mxu0
        %v3169 = vadd.f32 %v3120, %v3168
        %3170 = vmatmul.bf16.gmra.mxu0 %v646
        %v3171 = vpop.f32.mrf.mxu0
        %v3172 = vadd.f32 %v3123, %v3171
        %v3173 = vpop.f32.mrf.mxu0
        %v3174 = vadd.f32 %v3125, %v3173
        %3175 = vmatmul.bf16.gmra.mxu0 %v650
        %v3176 = vpop.f32.mrf.mxu0
        %v3177 = vadd.f32 %v3128, %v3176
        %v3178 = vpop.f32.mrf.mxu0
        %v3179 = vadd.f32 %v3130, %v3178
        %3180 = vdwg.mxu0
        %3181 = vmatpush.bf16.msra.mxu0 %v3037
        %3182 = vmatpush.bf16.msra.mxu0 %v3033
        %3183 = vmatpush.bf16.msra.mxu0 %v3029
        %3184 = vmatpush.bf16.msra.mxu0 %v3025
        %3185 = vmatpush.bf16.msra.mxu0 %v3021
        %3186 = vmatpush.bf16.msra.mxu0 %v3017
        %3187 = vmatpush.bf16.msra.mxu0 %v3013
        %3188 = vmatpush.bf16.msra.mxu0 %v3009
        %3189 = vmatmul.bf16.gmra.mxu0 %v623
        %v3190 = vpop.f32.mrf.mxu0
        %v3191 = vadd.f32 %v3142, %v3190
        %v3192 = vpop.f32.mrf.mxu0
        %v3193 = vadd.f32 %v3144, %v3192
        %3194 = vmatmul.bf16.gmra.mxu0 %v627
        %v3195 = vpop.f32.mrf.mxu0
        %v3196 = vadd.f32 %v3147, %v3195
        %v3197 = vpop.f32.mrf.mxu0
        %v3198 = vadd.f32 %v3149, %v3197
        %3199 = vmatmul.bf16.gmra.mxu0 %v631
        %v3200 = vpop.f32.mrf.mxu0
        %v3201 = vadd.f32 %v3152, %v3200
        %v3202 = vpop.f32.mrf.mxu0
        %v3203 = vadd.f32 %v3154, %v3202
        %3204 = vmatmul.bf16.gmra.mxu0 %v635
        %v3205 = vpop.f32.mrf.mxu0
        %v3206 = vadd.f32 %v3157, %v3205
        %v3207 = vpop.f32.mrf.mxu0
        %v3208 = vadd.f32 %v3159, %v3207
        %3209 = vmatmul.bf16.gmra.mxu0 %v639
        %v3210 = vpop.f32.mrf.mxu0
        %v3211 = vadd.f32 %v3162, %v3210
        %v3212 = vpop.f32.mrf.mxu0
        %v3213 = vadd.f32 %v3164, %v3212
        %3214 = vmatmul.bf16.gmra.mxu0 %v643
        %v3215 = vpop.f32.mrf.mxu0
        %v3216 = vadd.f32 %v3167, %v3215
        %v3217 = vpop.f32.mrf.mxu0
        %v3218 = vadd.f32 %v3169, %v3217
        %3219 = vmatmul.bf16.gmra.mxu0 %v647
        %v3220 = vpop.f32.mrf.mxu0
        %v3221 = vadd.f32 %v3172, %v3220
        %v3222 = vpop.f32.mrf.mxu0
        %v3223 = vadd.f32 %v3174, %v3222
        %3224 = vmatmul.bf16.gmra.mxu0 %v651
        %v3225 = vpop.f32.mrf.mxu0
        %v3226 = vadd.f32 %v3177, %v3225
        %v3227 = vpop.f32.mrf.mxu0
        %v3228 = vadd.f32 %v3179, %v3227
        %3229 = vdwg.mxu0
        %3230 = vmatpush.bf16.msra.mxu0 %v3069
        %3231 = vmatpush.bf16.msra.mxu0 %v3065
        %3232 = vmatpush.bf16.msra.mxu0 %v3061
        %3233 = vmatpush.bf16.msra.mxu0 %v3057
        %3234 = vmatpush.bf16.msra.mxu0 %v3053
        %3235 = vmatpush.bf16.msra.mxu0 %v3049
        %3236 = vmatpush.bf16.msra.mxu0 %v3045
        %3237 = vmatpush.bf16.msra.mxu0 %v3041
        %3238 = vmatmul.bf16.gmra.mxu0 %v624
        %v3239 = vpop.f32.mrf.mxu0
        %v3240 = vadd.f32 %v3191, %v3239
        %v3241 = vpop.f32.mrf.mxu0
        %v3242 = vadd.f32 %v3193, %v3241
        %3243 = vmatmul.bf16.gmra.mxu0 %v628
        %v3244 = vpop.f32.mrf.mxu0
        %v3245 = vadd.f32 %v3196, %v3244
        %v3246 = vpop.f32.mrf.mxu0
        %v3247 = vadd.f32 %v3198, %v3246
        %3248 = vmatmul.bf16.gmra.mxu0 %v632
        %v3249 = vpop.f32.mrf.mxu0
        %v3250 = vadd.f32 %v3201, %v3249
        %v3251 = vpop.f32.mrf.mxu0
        %v3252 = vadd.f32 %v3203, %v3251
        %3253 = vmatmul.bf16.gmra.mxu0 %v636
        %v3254 = vpop.f32.mrf.mxu0
        %v3255 = vadd.f32 %v3206, %v3254
        %v3256 = vpop.f32.mrf.mxu0
        %v3257 = vadd.f32 %v3208, %v3256
        %3258 = vmatmul.bf16.gmra.mxu0 %v640
        %v3259 = vpop.f32.mrf.mxu0
        %v3260 = vadd.f32 %v3211, %v3259
        %v3261 = vpop.f32.mrf.mxu0
        %v3262 = vadd.f32 %v3213, %v3261
        %3263 = vmatmul.bf16.gmra.mxu0 %v644
        %v3264 = vpop.f32.mrf.mxu0
        %v3265 = vadd.f32 %v3216, %v3264
        %v3266 = vpop.f32.mrf.mxu0
        %v3267 = vadd.f32 %v3218, %v3266
        %3268 = vmatmul.bf16.gmra.mxu0 %v648
        %v3269 = vpop.f32.mrf.mxu0
        %v3270 = vadd.f32 %v3221, %v3269
        %v3271 = vpop.f32.mrf.mxu0
        %v3272 = vadd.f32 %v3223, %v3271
        %3273 = vmatmul.bf16.gmra.mxu0 %v652
        %v3274 = vpop.f32.mrf.mxu0
        %v3275 = vadd.f32 %v3226, %v3274
        %v3276 = vpop.f32.mrf.mxu0
        %v3277 = vadd.f32 %v3228, %v3276
        %3278 = vdwg.mxu0
        %3279 = vmatpush.bf16.msra.mxu0 %v2974
        %3280 = vmatpush.bf16.msra.mxu0 %v2970
        %3281 = vmatpush.bf16.msra.mxu0 %v2966
        %3282 = vmatpush.bf16.msra.mxu0 %v2962
        %3283 = vmatpush.bf16.msra.mxu0 %v2958
        %3284 = vmatpush.bf16.msra.mxu0 %v2954
        %3285 = vmatpush.bf16.msra.mxu0 %v2950
        %3286 = vmatpush.bf16.msra.mxu0 %v2946
        %3287 = vmatmul.bf16.gmra.mxu0 %v621
        %v3288 = vpop.f32.mrf.mxu0
        %v3289 = vadd.f32 %v3076, %v3288
        %v3290 = vpop.f32.mrf.mxu0
        %v3291 = vadd.f32 %v3076, %v3290
        %3292 = vmatmul.bf16.gmra.mxu0 %v625
        %v3293 = vpop.f32.mrf.mxu0
        %v3294 = vadd.f32 %v3076, %v3293
        %v3295 = vpop.f32.mrf.mxu0
        %v3296 = vadd.f32 %v3076, %v3295
        %3297 = vmatmul.bf16.gmra.mxu0 %v629
        %v3298 = vpop.f32.mrf.mxu0
        %v3299 = vadd.f32 %v3076, %v3298
        %v3300 = vpop.f32.mrf.mxu0
        %v3301 = vadd.f32 %v3076, %v3300
        %3302 = vmatmul.bf16.gmra.mxu0 %v633
        %v3303 = vpop.f32.mrf.mxu0
        %v3304 = vadd.f32 %v3076, %v3303
        %v3305 = vpop.f32.mrf.mxu0
        %v3306 = vadd.f32 %v3076, %v3305
        %3307 = vmatmul.bf16.gmra.mxu0 %v637
        %v3308 = vpop.f32.mrf.mxu0
        %v3309 = vadd.f32 %v3076, %v3308
        %v3310 = vpop.f32.mrf.mxu0
        %v3311 = vadd.f32 %v3076, %v3310
        %3312 = vmatmul.bf16.gmra.mxu0 %v641
        %v3313 = vpop.f32.mrf.mxu0
        %v3314 = vadd.f32 %v3076, %v3313
        %v3315 = vpop.f32.mrf.mxu0
        %v3316 = vadd.f32 %v3076, %v3315
        %3317 = vmatmul.bf16.gmra.mxu0 %v645
        %v3318 = vpop.f32.mrf.mxu0
        %v3319 = vadd.f32 %v3076, %v3318
        %v3320 = vpop.f32.mrf.mxu0
        %v3321 = vadd.f32 %v3076, %v3320
        %3322 = vmatmul.bf16.gmra.mxu0 %v649
        %v3323 = vpop.f32.mrf.mxu0
        %v3324 = vadd.f32 %v3076, %v3323
        %v3325 = vpop.f32.mrf.mxu0
        %v3326 = vadd.f32 %v3076, %v3325
        %3327 = vdwg.mxu0
        %3328 = vmatpush.bf16.msra.mxu0 %v3006
        %3329 = vmatpush.bf16.msra.mxu0 %v3002
        %3330 = vmatpush.bf16.msra.mxu0 %v2998
        %3331 = vmatpush.bf16.msra.mxu0 %v2994
        %3332 = vmatpush.bf16.msra.mxu0 %v2990
        %3333 = vmatpush.bf16.msra.mxu0 %v2986
        %3334 = vmatpush.bf16.msra.mxu0 %v2982
        %3335 = vmatpush.bf16.msra.mxu0 %v2978
        %3336 = vmatmul.bf16.gmra.mxu0 %v622
        %v3337 = vpop.f32.mrf.mxu0
        %v3338 = vadd.f32 %v3289, %v3337
        %v3339 = vpop.f32.mrf.mxu0
        %v3340 = vadd.f32 %v3291, %v3339
        %3341 = vmatmul.bf16.gmra.mxu0 %v626
        %v3342 = vpop.f32.mrf.mxu0
        %v3343 = vadd.f32 %v3294, %v3342
        %v3344 = vpop.f32.mrf.mxu0
        %v3345 = vadd.f32 %v3296, %v3344
        %3346 = vmatmul.bf16.gmra.mxu0 %v630
        %v3347 = vpop.f32.mrf.mxu0
        %v3348 = vadd.f32 %v3299, %v3347
        %v3349 = vpop.f32.mrf.mxu0
        %v3350 = vadd.f32 %v3301, %v3349
        %3351 = vmatmul.bf16.gmra.mxu0 %v634
        %v3352 = vpop.f32.mrf.mxu0
        %v3353 = vadd.f32 %v3304, %v3352
        %v3354 = vpop.f32.mrf.mxu0
        %v3355 = vadd.f32 %v3306, %v3354
        %3356 = vmatmul.bf16.gmra.mxu0 %v638
        %v3357 = vpop.f32.mrf.mxu0
        %v3358 = vadd.f32 %v3309, %v3357
        %v3359 = vpop.f32.mrf.mxu0
        %v3360 = vadd.f32 %v3311, %v3359
        %3361 = vmatmul.bf16.gmra.mxu0 %v642
        %v3362 = vpop.f32.mrf.mxu0
        %v3363 = vadd.f32 %v3314, %v3362
        %v3364 = vpop.f32.mrf.mxu0
        %v3365 = vadd.f32 %v3316, %v3364
        %3366 = vmatmul.bf16.gmra.mxu0 %v646
        %v3367 = vpop.f32.mrf.mxu0
        %v3368 = vadd.f32 %v3319, %v3367
        %v3369 = vpop.f32.mrf.mxu0
        %v3370 = vadd.f32 %v3321, %v3369
        %3371 = vmatmul.bf16.gmra.mxu0 %v650
        %v3372 = vpop.f32.mrf.mxu0
        %v3373 = vadd.f32 %v3324, %v3372
        %v3374 = vpop.f32.mrf.mxu0
        %v3375 = vadd.f32 %v3326, %v3374
        %3376 = vdwg.mxu0
        %3377 = vmatpush.bf16.msra.mxu0 %v3038
        %3378 = vmatpush.bf16.msra.mxu0 %v3034
        %3379 = vmatpush.bf16.msra.mxu0 %v3030
        %3380 = vmatpush.bf16.msra.mxu0 %v3026
        %3381 = vmatpush.bf16.msra.mxu0 %v3022
        %3382 = vmatpush.bf16.msra.mxu0 %v3018
        %3383 = vmatpush.bf16.msra.mxu0 %v3014
        %3384 = vmatpush.bf16.msra.mxu0 %v3010
        %3385 = vmatmul.bf16.gmra.mxu0 %v623
        %v3386 = vpop.f32.mrf.mxu0
        %v3387 = vadd.f32 %v3338, %v3386
        %v3388 = vpop.f32.mrf.mxu0
        %v3389 = vadd.f32 %v3340, %v3388
        %3390 = vmatmul.bf16.gmra.mxu0 %v627
        %v3391 = vpop.f32.mrf.mxu0
        %v3392 = vadd.f32 %v3343, %v3391
        %v3393 = vpop.f32.mrf.mxu0
        %v3394 = vadd.f32 %v3345, %v3393
        %3395 = vmatmul.bf16.gmra.mxu0 %v631
        %v3396 = vpop.f32.mrf.mxu0
        %v3397 = vadd.f32 %v3348, %v3396
        %v3398 = vpop.f32.mrf.mxu0
        %v3399 = vadd.f32 %v3350, %v3398
        %3400 = vmatmul.bf16.gmra.mxu0 %v635
        %v3401 = vpop.f32.mrf.mxu0
        %v3402 = vadd.f32 %v3353, %v3401
        %v3403 = vpop.f32.mrf.mxu0
        %v3404 = vadd.f32 %v3355, %v3403
        %3405 = vmatmul.bf16.gmra.mxu0 %v639
        %v3406 = vpop.f32.mrf.mxu0
        %v3407 = vadd.f32 %v3358, %v3406
        %v3408 = vpop.f32.mrf.mxu0
        %v3409 = vadd.f32 %v3360, %v3408
        %3410 = vmatmul.bf16.gmra.mxu0 %v643
        %v3411 = vpop.f32.mrf.mxu0
        %v3412 = vadd.f32 %v3363, %v3411
        %v3413 = vpop.f32.mrf.mxu0
        %v3414 = vadd.f32 %v3365, %v3413
        %3415 = vmatmul.bf16.gmra.mxu0 %v647
        %v3416 = vpop.f32.mrf.mxu0
        %v3417 = vadd.f32 %v3368, %v3416
        %v3418 = vpop.f32.mrf.mxu0
        %v3419 = vadd.f32 %v3370, %v3418
        %3420 = vmatmul.bf16.gmra.mxu0 %v651
        %v3421 = vpop.f32.mrf.mxu0
        %v3422 = vadd.f32 %v3373, %v3421
        %v3423 = vpop.f32.mrf.mxu0
        %v3424 = vadd.f32 %v3375, %v3423
        %3425 = vdwg.mxu0
        %3426 = vmatpush.bf16.msra.mxu0 %v3070
        %3427 = vmatpush.bf16.msra.mxu0 %v3066
        %3428 = vmatpush.bf16.msra.mxu0 %v3062
        %3429 = vmatpush.bf16.msra.mxu0 %v3058
        %3430 = vmatpush.bf16.msra.mxu0 %v3054
        %3431 = vmatpush.bf16.msra.mxu0 %v3050
        %3432 = vmatpush.bf16.msra.mxu0 %v3046
        %3433 = vmatpush.bf16.msra.mxu0 %v3042
        %3434 = vmatmul.bf16.gmra.mxu0 %v624
        %v3435 = vpop.f32.mrf.mxu0
        %v3436 = vadd.f32 %v3387, %v3435
        %v3437 = vpop.f32.mrf.mxu0
        %v3438 = vadd.f32 %v3389, %v3437
        %3439 = vmatmul.bf16.gmra.mxu0 %v628
        %v3440 = vpop.f32.mrf.mxu0
        %v3441 = vadd.f32 %v3392, %v3440
        %v3442 = vpop.f32.mrf.mxu0
        %v3443 = vadd.f32 %v3394, %v3442
        %3444 = vmatmul.bf16.gmra.mxu0 %v632
        %v3445 = vpop.f32.mrf.mxu0
        %v3446 = vadd.f32 %v3397, %v3445
        %v3447 = vpop.f32.mrf.mxu0
        %v3448 = vadd.f32 %v3399, %v3447
        %3449 = vmatmul.bf16.gmra.mxu0 %v636
        %v3450 = vpop.f32.mrf.mxu0
        %v3451 = vadd.f32 %v3402, %v3450
        %v3452 = vpop.f32.mrf.mxu0
        %v3453 = vadd.f32 %v3404, %v3452
        %3454 = vmatmul.bf16.gmra.mxu0 %v640
        %v3455 = vpop.f32.mrf.mxu0
        %v3456 = vadd.f32 %v3407, %v3455
        %v3457 = vpop.f32.mrf.mxu0
        %v3458 = vadd.f32 %v3409, %v3457
        %3459 = vmatmul.bf16.gmra.mxu0 %v644
        %v3460 = vpop.f32.mrf.mxu0
        %v3461 = vadd.f32 %v3412, %v3460
        %v3462 = vpop.f32.mrf.mxu0
        %v3463 = vadd.f32 %v3414, %v3462
        %3464 = vmatmul.bf16.gmra.mxu0 %v648
        %v3465 = vpop.f32.mrf.mxu0
        %v3466 = vadd.f32 %v3417, %v3465
        %v3467 = vpop.f32.mrf.mxu0
        %v3468 = vadd.f32 %v3419, %v3467
        %3469 = vmatmul.bf16.gmra.mxu0 %v652
        %v3470 = vpop.f32.mrf.mxu0
        %v3471 = vadd.f32 %v3422, %v3470
        %v3472 = vpop.f32.mrf.mxu0
        %v3473 = vadd.f32 %v3424, %v3472
        %3474 = vdwg.mxu0
        %3475 = vmatpush.bf16.msra.mxu0 %v2975
        %3476 = vmatpush.bf16.msra.mxu0 %v2971
        %3477 = vmatpush.bf16.msra.mxu0 %v2967
        %3478 = vmatpush.bf16.msra.mxu0 %v2963
        %3479 = vmatpush.bf16.msra.mxu0 %v2959
        %3480 = vmatpush.bf16.msra.mxu0 %v2955
        %3481 = vmatpush.bf16.msra.mxu0 %v2951
        %3482 = vmatpush.bf16.msra.mxu0 %v2947
        %3483 = vmatmul.bf16.gmra.mxu0 %v621
        %v3484 = vpop.f32.mrf.mxu0
        %v3485 = vadd.f32 %v3077, %v3484
        %v3486 = vpop.f32.mrf.mxu0
        %v3487 = vadd.f32 %v3077, %v3486
        %3488 = vmatmul.bf16.gmra.mxu0 %v625
        %v3489 = vpop.f32.mrf.mxu0
        %v3490 = vadd.f32 %v3077, %v3489
        %v3491 = vpop.f32.mrf.mxu0
        %v3492 = vadd.f32 %v3077, %v3491
        %3493 = vmatmul.bf16.gmra.mxu0 %v629
        %v3494 = vpop.f32.mrf.mxu0
        %v3495 = vadd.f32 %v3077, %v3494
        %v3496 = vpop.f32.mrf.mxu0
        %v3497 = vadd.f32 %v3077, %v3496
        %3498 = vmatmul.bf16.gmra.mxu0 %v633
        %v3499 = vpop.f32.mrf.mxu0
        %v3500 = vadd.f32 %v3077, %v3499
        %v3501 = vpop.f32.mrf.mxu0
        %v3502 = vadd.f32 %v3077, %v3501
        %3503 = vmatmul.bf16.gmra.mxu0 %v637
        %v3504 = vpop.f32.mrf.mxu0
        %v3505 = vadd.f32 %v3077, %v3504
        %v3506 = vpop.f32.mrf.mxu0
        %v3507 = vadd.f32 %v3077, %v3506
        %3508 = vmatmul.bf16.gmra.mxu0 %v641
        %v3509 = vpop.f32.mrf.mxu0
        %v3510 = vadd.f32 %v3077, %v3509
        %v3511 = vpop.f32.mrf.mxu0
        %v3512 = vadd.f32 %v3077, %v3511
        %3513 = vmatmul.bf16.gmra.mxu0 %v645
        %v3514 = vpop.f32.mrf.mxu0
        %v3515 = vadd.f32 %v3077, %v3514
        %v3516 = vpop.f32.mrf.mxu0
        %v3517 = vadd.f32 %v3077, %v3516
        %3518 = vmatmul.bf16.gmra.mxu0 %v649
        %v3519 = vpop.f32.mrf.mxu0
        %v3520 = vadd.f32 %v3077, %v3519
        %v3521 = vpop.f32.mrf.mxu0
        %v3522 = vadd.f32 %v3077, %v3521
        %3523 = vdwg.mxu0
        %3524 = vmatpush.bf16.msra.mxu0 %v3007
        %3525 = vmatpush.bf16.msra.mxu0 %v3003
        %3526 = vmatpush.bf16.msra.mxu0 %v2999
        %3527 = vmatpush.bf16.msra.mxu0 %v2995
        %3528 = vmatpush.bf16.msra.mxu0 %v2991
        %3529 = vmatpush.bf16.msra.mxu0 %v2987
        %3530 = vmatpush.bf16.msra.mxu0 %v2983
        %3531 = vmatpush.bf16.msra.mxu0 %v2979
        %3532 = vmatmul.bf16.gmra.mxu0 %v622
        %v3533 = vpop.f32.mrf.mxu0
        %v3534 = vadd.f32 %v3485, %v3533
        %v3535 = vpop.f32.mrf.mxu0
        %v3536 = vadd.f32 %v3487, %v3535
        %3537 = vmatmul.bf16.gmra.mxu0 %v626
        %v3538 = vpop.f32.mrf.mxu0
        %v3539 = vadd.f32 %v3490, %v3538
        %v3540 = vpop.f32.mrf.mxu0
        %v3541 = vadd.f32 %v3492, %v3540
        %3542 = vmatmul.bf16.gmra.mxu0 %v630
        %v3543 = vpop.f32.mrf.mxu0
        %v3544 = vadd.f32 %v3495, %v3543
        %v3545 = vpop.f32.mrf.mxu0
        %v3546 = vadd.f32 %v3497, %v3545
        %3547 = vmatmul.bf16.gmra.mxu0 %v634
        %v3548 = vpop.f32.mrf.mxu0
        %v3549 = vadd.f32 %v3500, %v3548
        %v3550 = vpop.f32.mrf.mxu0
        %v3551 = vadd.f32 %v3502, %v3550
        %3552 = vmatmul.bf16.gmra.mxu0 %v638
        %v3553 = vpop.f32.mrf.mxu0
        %v3554 = vadd.f32 %v3505, %v3553
        %v3555 = vpop.f32.mrf.mxu0
        %v3556 = vadd.f32 %v3507, %v3555
        %3557 = vmatmul.bf16.gmra.mxu0 %v642
        %v3558 = vpop.f32.mrf.mxu0
        %v3559 = vadd.f32 %v3510, %v3558
        %v3560 = vpop.f32.mrf.mxu0
        %v3561 = vadd.f32 %v3512, %v3560
        %3562 = vmatmul.bf16.gmra.mxu0 %v646
        %v3563 = vpop.f32.mrf.mxu0
        %v3564 = vadd.f32 %v3515, %v3563
        %v3565 = vpop.f32.mrf.mxu0
        %v3566 = vadd.f32 %v3517, %v3565
        %3567 = vmatmul.bf16.gmra.mxu0 %v650
        %v3568 = vpop.f32.mrf.mxu0
        %v3569 = vadd.f32 %v3520, %v3568
        %v3570 = vpop.f32.mrf.mxu0
        %v3571 = vadd.f32 %v3522, %v3570
        %3572 = vdwg.mxu0
        %3573 = vmatpush.bf16.msra.mxu0 %v3039
        %3574 = vmatpush.bf16.msra.mxu0 %v3035
        %3575 = vmatpush.bf16.msra.mxu0 %v3031
        %3576 = vmatpush.bf16.msra.mxu0 %v3027
        %3577 = vmatpush.bf16.msra.mxu0 %v3023
        %3578 = vmatpush.bf16.msra.mxu0 %v3019
        %3579 = vmatpush.bf16.msra.mxu0 %v3015
        %3580 = vmatpush.bf16.msra.mxu0 %v3011
        %3581 = vmatmul.bf16.gmra.mxu0 %v623
        %v3582 = vpop.f32.mrf.mxu0
        %v3583 = vadd.f32 %v3534, %v3582
        %v3584 = vpop.f32.mrf.mxu0
        %v3585 = vadd.f32 %v3536, %v3584
        %3586 = vmatmul.bf16.gmra.mxu0 %v627
        %v3587 = vpop.f32.mrf.mxu0
        %v3588 = vadd.f32 %v3539, %v3587
        %v3589 = vpop.f32.mrf.mxu0
        %v3590 = vadd.f32 %v3541, %v3589
        %3591 = vmatmul.bf16.gmra.mxu0 %v631
        %v3592 = vpop.f32.mrf.mxu0
        %v3593 = vadd.f32 %v3544, %v3592
        %v3594 = vpop.f32.mrf.mxu0
        %v3595 = vadd.f32 %v3546, %v3594
        %3596 = vmatmul.bf16.gmra.mxu0 %v635
        %v3597 = vpop.f32.mrf.mxu0
        %v3598 = vadd.f32 %v3549, %v3597
        %v3599 = vpop.f32.mrf.mxu0
        %v3600 = vadd.f32 %v3551, %v3599
        %3601 = vmatmul.bf16.gmra.mxu0 %v639
        %v3602 = vpop.f32.mrf.mxu0
        %v3603 = vadd.f32 %v3554, %v3602
        %v3604 = vpop.f32.mrf.mxu0
        %v3605 = vadd.f32 %v3556, %v3604
        %3606 = vmatmul.bf16.gmra.mxu0 %v643
        %v3607 = vpop.f32.mrf.mxu0
        %v3608 = vadd.f32 %v3559, %v3607
        %v3609 = vpop.f32.mrf.mxu0
        %v3610 = vadd.f32 %v3561, %v3609
        %3611 = vmatmul.bf16.gmra.mxu0 %v647
        %v3612 = vpop.f32.mrf.mxu0
        %v3613 = vadd.f32 %v3564, %v3612
        %v3614 = vpop.f32.mrf.mxu0
        %v3615 = vadd.f32 %v3566, %v3614
        %3616 = vmatmul.bf16.gmra.mxu0 %v651
        %v3617 = vpop.f32.mrf.mxu0
        %v3618 = vadd.f32 %v3569, %v3617
        %v3619 = vpop.f32.mrf.mxu0
        %v3620 = vadd.f32 %v3571, %v3619
        %3621 = vdwg.mxu0
        %3622 = vmatpush.bf16.msra.mxu0 %v3071
        %3623 = vmatpush.bf16.msra.mxu0 %v3067
        %3624 = vmatpush.bf16.msra.mxu0 %v3063
        %3625 = vmatpush.bf16.msra.mxu0 %v3059
        %3626 = vmatpush.bf16.msra.mxu0 %v3055
        %3627 = vmatpush.bf16.msra.mxu0 %v3051
        %3628 = vmatpush.bf16.msra.mxu0 %v3047
        %3629 = vmatpush.bf16.msra.mxu0 %v3043
        %3630 = vmatmul.bf16.gmra.mxu0 %v624
        %v3631 = vpop.f32.mrf.mxu0
        %v3632 = vadd.f32 %v3583, %v3631
        %v3633 = vpop.f32.mrf.mxu0
        %v3634 = vadd.f32 %v3585, %v3633
        %3635 = vmatmul.bf16.gmra.mxu0 %v628
        %v3636 = vpop.f32.mrf.mxu0
        %v3637 = vadd.f32 %v3588, %v3636
        %v3638 = vpop.f32.mrf.mxu0
        %v3639 = vadd.f32 %v3590, %v3638
        %3640 = vmatmul.bf16.gmra.mxu0 %v632
        %v3641 = vpop.f32.mrf.mxu0
        %v3642 = vadd.f32 %v3593, %v3641
        %v3643 = vpop.f32.mrf.mxu0
        %v3644 = vadd.f32 %v3595, %v3643
        %3645 = vmatmul.bf16.gmra.mxu0 %v636
        %v3646 = vpop.f32.mrf.mxu0
        %v3647 = vadd.f32 %v3598, %v3646
        %v3648 = vpop.f32.mrf.mxu0
        %v3649 = vadd.f32 %v3600, %v3648
        %3650 = vmatmul.bf16.gmra.mxu0 %v640
        %v3651 = vpop.f32.mrf.mxu0
        %v3652 = vadd.f32 %v3603, %v3651
        %v3653 = vpop.f32.mrf.mxu0
        %v3654 = vadd.f32 %v3605, %v3653
        %3655 = vmatmul.bf16.gmra.mxu0 %v644
        %v3656 = vpop.f32.mrf.mxu0
        %v3657 = vadd.f32 %v3608, %v3656
        %v3658 = vpop.f32.mrf.mxu0
        %v3659 = vadd.f32 %v3610, %v3658
        %3660 = vmatmul.bf16.gmra.mxu0 %v648
        %v3661 = vpop.f32.mrf.mxu0
        %v3662 = vadd.f32 %v3613, %v3661
        %v3663 = vpop.f32.mrf.mxu0
        %v3664 = vadd.f32 %v3615, %v3663
        %3665 = vmatmul.bf16.gmra.mxu0 %v652
        %v3666 = vpop.f32.mrf.mxu0
        %v3667 = vadd.f32 %v3618, %v3666
        %v3668 = vpop.f32.mrf.mxu0
        %v3669 = vadd.f32 %v3620, %v3668
        %3670 = vdwg.mxu0
        %3671 = vmatpush.bf16.msra.mxu0 %v2976
        %3672 = vmatpush.bf16.msra.mxu0 %v2972
        %3673 = vmatpush.bf16.msra.mxu0 %v2968
        %3674 = vmatpush.bf16.msra.mxu0 %v2964
        %3675 = vmatpush.bf16.msra.mxu0 %v2960
        %3676 = vmatpush.bf16.msra.mxu0 %v2956
        %3677 = vmatpush.bf16.msra.mxu0 %v2952
        %3678 = vmatpush.bf16.msra.mxu0 %v2948
        %3679 = vmatmul.bf16.gmra.mxu0 %v621
        %v3680 = vpop.f32.mrf.mxu0
        %v3681 = vadd.f32 %v3078, %v3680
        %v3682 = vpop.f32.mrf.mxu0
        %v3683 = vadd.f32 %v3078, %v3682
        %3684 = vmatmul.bf16.gmra.mxu0 %v625
        %v3685 = vpop.f32.mrf.mxu0
        %v3686 = vadd.f32 %v3078, %v3685
        %v3687 = vpop.f32.mrf.mxu0
        %v3688 = vadd.f32 %v3078, %v3687
        %3689 = vmatmul.bf16.gmra.mxu0 %v629
        %v3690 = vpop.f32.mrf.mxu0
        %v3691 = vadd.f32 %v3078, %v3690
        %v3692 = vpop.f32.mrf.mxu0
        %v3693 = vadd.f32 %v3078, %v3692
        %3694 = vmatmul.bf16.gmra.mxu0 %v633
        %v3695 = vpop.f32.mrf.mxu0
        %v3696 = vadd.f32 %v3078, %v3695
        %v3697 = vpop.f32.mrf.mxu0
        %v3698 = vadd.f32 %v3078, %v3697
        %3699 = vmatmul.bf16.gmra.mxu0 %v637
        %v3700 = vpop.f32.mrf.mxu0
        %v3701 = vadd.f32 %v3078, %v3700
        %v3702 = vpop.f32.mrf.mxu0
        %v3703 = vadd.f32 %v3078, %v3702
        %3704 = vmatmul.bf16.gmra.mxu0 %v641
        %v3705 = vpop.f32.mrf.mxu0
        %v3706 = vadd.f32 %v3078, %v3705
        %v3707 = vpop.f32.mrf.mxu0
        %v3708 = vadd.f32 %v3078, %v3707
        %3709 = vmatmul.bf16.gmra.mxu0 %v645
        %v3710 = vpop.f32.mrf.mxu0
        %v3711 = vadd.f32 %v3078, %v3710
        %v3712 = vpop.f32.mrf.mxu0
        %v3713 = vadd.f32 %v3078, %v3712
        %3714 = vmatmul.bf16.gmra.mxu0 %v649
        %v3715 = vpop.f32.mrf.mxu0
        %v3716 = vadd.f32 %v3078, %v3715
        %v3717 = vpop.f32.mrf.mxu0
        %v3718 = vadd.f32 %v3078, %v3717
        %3719 = vdwg.mxu0
        %3720 = vmatpush.bf16.msra.mxu0 %v3008
        %3721 = vmatpush.bf16.msra.mxu0 %v3004
        %3722 = vmatpush.bf16.msra.mxu0 %v3000
        %3723 = vmatpush.bf16.msra.mxu0 %v2996
        %3724 = vmatpush.bf16.msra.mxu0 %v2992
        %3725 = vmatpush.bf16.msra.mxu0 %v2988
        %3726 = vmatpush.bf16.msra.mxu0 %v2984
        %3727 = vmatpush.bf16.msra.mxu0 %v2980
        %3728 = vmatmul.bf16.gmra.mxu0 %v622
        %v3729 = vpop.f32.mrf.mxu0
        %v3730 = vadd.f32 %v3681, %v3729
        %v3731 = vpop.f32.mrf.mxu0
        %v3732 = vadd.f32 %v3683, %v3731
        %3733 = vmatmul.bf16.gmra.mxu0 %v626
        %v3734 = vpop.f32.mrf.mxu0
        %v3735 = vadd.f32 %v3686, %v3734
        %v3736 = vpop.f32.mrf.mxu0
        %v3737 = vadd.f32 %v3688, %v3736
        %3738 = vmatmul.bf16.gmra.mxu0 %v630
        %v3739 = vpop.f32.mrf.mxu0
        %v3740 = vadd.f32 %v3691, %v3739
        %v3741 = vpop.f32.mrf.mxu0
        %v3742 = vadd.f32 %v3693, %v3741
        %3743 = vmatmul.bf16.gmra.mxu0 %v634
        %v3744 = vpop.f32.mrf.mxu0
        %v3745 = vadd.f32 %v3696, %v3744
        %v3746 = vpop.f32.mrf.mxu0
        %v3747 = vadd.f32 %v3698, %v3746
        %3748 = vmatmul.bf16.gmra.mxu0 %v638
        %v3749 = vpop.f32.mrf.mxu0
        %v3750 = vadd.f32 %v3701, %v3749
        %v3751 = vpop.f32.mrf.mxu0
        %v3752 = vadd.f32 %v3703, %v3751
        %3753 = vmatmul.bf16.gmra.mxu0 %v642
        %v3754 = vpop.f32.mrf.mxu0
        %v3755 = vadd.f32 %v3706, %v3754
        %v3756 = vpop.f32.mrf.mxu0
        %v3757 = vadd.f32 %v3708, %v3756
        %3758 = vmatmul.bf16.gmra.mxu0 %v646
        %v3759 = vpop.f32.mrf.mxu0
        %v3760 = vadd.f32 %v3711, %v3759
        %v3761 = vpop.f32.mrf.mxu0
        %v3762 = vadd.f32 %v3713, %v3761
        %3763 = vmatmul.bf16.gmra.mxu0 %v650
        %v3764 = vpop.f32.mrf.mxu0
        %v3765 = vadd.f32 %v3716, %v3764
        %v3766 = vpop.f32.mrf.mxu0
        %v3767 = vadd.f32 %v3718, %v3766
        %3768 = vdwg.mxu0
        %3769 = vmatpush.bf16.msra.mxu0 %v3040
        %3770 = vmatpush.bf16.msra.mxu0 %v3036
        %3771 = vmatpush.bf16.msra.mxu0 %v3032
        %3772 = vmatpush.bf16.msra.mxu0 %v3028
        %3773 = vmatpush.bf16.msra.mxu0 %v3024
        %3774 = vmatpush.bf16.msra.mxu0 %v3020
        %3775 = vmatpush.bf16.msra.mxu0 %v3016
        %3776 = vmatpush.bf16.msra.mxu0 %v3012
        %3777 = vmatmul.bf16.gmra.mxu0 %v623
        %v3778 = vpop.f32.mrf.mxu0
        %v3779 = vadd.f32 %v3730, %v3778
        %v3780 = vpop.f32.mrf.mxu0
        %v3781 = vadd.f32 %v3732, %v3780
        %3782 = vmatmul.bf16.gmra.mxu0 %v627
        %v3783 = vpop.f32.mrf.mxu0
        %v3784 = vadd.f32 %v3735, %v3783
        %v3785 = vpop.f32.mrf.mxu0
        %v3786 = vadd.f32 %v3737, %v3785
        %3787 = vmatmul.bf16.gmra.mxu0 %v631
        %v3788 = vpop.f32.mrf.mxu0
        %v3789 = vadd.f32 %v3740, %v3788
        %v3790 = vpop.f32.mrf.mxu0
        %v3791 = vadd.f32 %v3742, %v3790
        %3792 = vmatmul.bf16.gmra.mxu0 %v635
        %v3793 = vpop.f32.mrf.mxu0
        %v3794 = vadd.f32 %v3745, %v3793
        %v3795 = vpop.f32.mrf.mxu0
        %v3796 = vadd.f32 %v3747, %v3795
        %3797 = vmatmul.bf16.gmra.mxu0 %v639
        %v3798 = vpop.f32.mrf.mxu0
        %v3799 = vadd.f32 %v3750, %v3798
        %v3800 = vpop.f32.mrf.mxu0
        %v3801 = vadd.f32 %v3752, %v3800
        %3802 = vmatmul.bf16.gmra.mxu0 %v643
        %v3803 = vpop.f32.mrf.mxu0
        %v3804 = vadd.f32 %v3755, %v3803
        %v3805 = vpop.f32.mrf.mxu0
        %v3806 = vadd.f32 %v3757, %v3805
        %3807 = vmatmul.bf16.gmra.mxu0 %v647
        %v3808 = vpop.f32.mrf.mxu0
        %v3809 = vadd.f32 %v3760, %v3808
        %v3810 = vpop.f32.mrf.mxu0
        %v3811 = vadd.f32 %v3762, %v3810
        %3812 = vmatmul.bf16.gmra.mxu0 %v651
        %v3813 = vpop.f32.mrf.mxu0
        %v3814 = vadd.f32 %v3765, %v3813
        %v3815 = vpop.f32.mrf.mxu0
        %v3816 = vadd.f32 %v3767, %v3815
        %3817 = vdwg.mxu0
        %3818 = vmatpush.bf16.msra.mxu0 %v3072
        %3819 = vmatpush.bf16.msra.mxu0 %v3068
        %3820 = vmatpush.bf16.msra.mxu0 %v3064
        %3821 = vmatpush.bf16.msra.mxu0 %v3060
        %3822 = vmatpush.bf16.msra.mxu0 %v3056
        %3823 = vmatpush.bf16.msra.mxu0 %v3052
        %3824 = vmatpush.bf16.msra.mxu0 %v3048
        %3825 = vmatpush.bf16.msra.mxu0 %v3044
        %3826 = vmatmul.bf16.gmra.mxu0 %v624
        %v3827 = vpop.f32.mrf.mxu0
        %v3828 = vadd.f32 %v3779, %v3827
        %v3829 = vpop.f32.mrf.mxu0
        %v3830 = vadd.f32 %v3781, %v3829
        %3831 = vmatmul.bf16.gmra.mxu0 %v628
        %v3832 = vpop.f32.mrf.mxu0
        %v3833 = vadd.f32 %v3784, %v3832
        %v3834 = vpop.f32.mrf.mxu0
        %v3835 = vadd.f32 %v3786, %v3834
        %3836 = vmatmul.bf16.gmra.mxu0 %v632
        %v3837 = vpop.f32.mrf.mxu0
        %v3838 = vadd.f32 %v3789, %v3837
        %v3839 = vpop.f32.mrf.mxu0
        %v3840 = vadd.f32 %v3791, %v3839
        %3841 = vmatmul.bf16.gmra.mxu0 %v636
        %v3842 = vpop.f32.mrf.mxu0
        %v3843 = vadd.f32 %v3794, %v3842
        %v3844 = vpop.f32.mrf.mxu0
        %v3845 = vadd.f32 %v3796, %v3844
        %3846 = vmatmul.bf16.gmra.mxu0 %v640
        %v3847 = vpop.f32.mrf.mxu0
        %v3848 = vadd.f32 %v3799, %v3847
        %v3849 = vpop.f32.mrf.mxu0
        %v3850 = vadd.f32 %v3801, %v3849
        %3851 = vmatmul.bf16.gmra.mxu0 %v644
        %v3852 = vpop.f32.mrf.mxu0
        %v3853 = vadd.f32 %v3804, %v3852
        %v3854 = vpop.f32.mrf.mxu0
        %v3855 = vadd.f32 %v3806, %v3854
        %3856 = vmatmul.bf16.gmra.mxu0 %v648
        %v3857 = vpop.f32.mrf.mxu0
        %v3858 = vadd.f32 %v3809, %v3857
        %v3859 = vpop.f32.mrf.mxu0
        %v3860 = vadd.f32 %v3811, %v3859
        %3861 = vmatmul.bf16.gmra.mxu0 %v652
        %v3862 = vpop.f32.mrf.mxu0
        %v3863 = vadd.f32 %v3814, %v3862
        %v3864 = vpop.f32.mrf.mxu0
        %v3865 = vadd.f32 %v3816, %v3864
        %3866 = vdwg.mxu0
        %v3867 = vpack.c.bf16 %v1146, %v1144
        %v3868 = vpack.c.bf16 %v1151, %v1149
        %v3869 = vpack.c.bf16 %v1156, %v1154
        %v3870 = vpack.c.bf16 %v1161, %v1159
        %v3871 = vpack.c.bf16 %v2064, %v2062
        %v3872 = vpack.c.bf16 %v2069, %v2067
        %v3873 = vpack.c.bf16 %v2074, %v2072
        %v3874 = vpack.c.bf16 %v2079, %v2077
        %v3875 = vpack.c.bf16 %v2084, %v2082
        %v3876 = vpack.c.bf16 %v2089, %v2087
        %v3877 = vpack.c.bf16 %v2094, %v2092
        %v3878 = vpack.c.bf16 %v2099, %v2097
        %v3879 = vpack.c.bf16 %v3242, %v3240
        %v3880 = vpack.c.bf16 %v3247, %v3245
        %v3881 = vpack.c.bf16 %v3252, %v3250
        %v3882 = vpack.c.bf16 %v3257, %v3255
        %v3883 = vpack.c.bf16 %v3262, %v3260
        %v3884 = vpack.c.bf16 %v3267, %v3265
        %v3885 = vpack.c.bf16 %v3272, %v3270
        %v3886 = vpack.c.bf16 %v3277, %v3275
        %3887 = vmatpush.bf16.xpose.msra.mxu0 %v3878
        %3888 = vmatpush.bf16.xpose.msra.mxu0 %v3877
        %3889 = vmatpush.bf16.xpose.msra.mxu0 %v3876
        %3890 = vmatpush.bf16.xpose.msra.mxu0 %v3875
        %3891 = vmatpush.bf16.xpose.msra.mxu0 %v3874
        %3892 = vmatpush.bf16.xpose.msra.mxu0 %v3873
        %3893 = vmatpush.bf16.xpose.msra.mxu0 %v3872
        %3894 = vmatpush.bf16.xpose.msra.mxu0 %v3871
        %3895 = vmatmul.bf16.gmra.mxu0 %v3867
        %v3896 = vpop.f32.mrf.mxu0
        %v3897 = vadd.f32 0.0, %v3896
        %v3898 = vpop.f32.mrf.mxu0
        %v3899 = vadd.f32 0.0, %v3898
        %3900 = vmatmul.bf16.gmra.mxu0 %v3868
        %v3901 = vpop.f32.mrf.mxu0
        %v3902 = vadd.f32 0.0, %v3901
        %v3903 = vpop.f32.mrf.mxu0
        %v3904 = vadd.f32 0.0, %v3903
        %3905 = vmatmul.bf16.gmra.mxu0 %v3869
        %v3906 = vpop.f32.mrf.mxu0
        %v3907 = vadd.f32 0.0, %v3906
        %v3908 = vpop.f32.mrf.mxu0
        %v3909 = vadd.f32 0.0, %v3908
        %3910 = vmatmul.bf16.gmra.mxu0 %v3870
        %v3911 = vpop.f32.mrf.mxu0
        %v3912 = vadd.f32 0.0, %v3911
        %v3913 = vpop.f32.mrf.mxu0
        %v3914 = vadd.f32 0.0, %v3913
        %3915 = vdwg.mxu0
        %3916 = vmax.xlane.f32.xlu0 %v3897
        %v3917 = vpop.xlane.xlu0 %3916
        %3918 = vmax.xlane.f32.xlu0 %v3899
        %v3919 = vpop.xlane.xlu0 %3918
        %3920 = vmax.xlane.f32.xlu0 %v3902
        %v3921 = vpop.xlane.xlu0 %3920
        %3922 = vmax.xlane.f32.xlu0 %v3904
        %v3923 = vpop.xlane.xlu0 %3922
        %3924 = vmax.xlane.f32.xlu0 %v3907
        %v3925 = vpop.xlane.xlu0 %3924
        %3926 = vmax.xlane.f32.xlu0 %v3909
        %v3927 = vpop.xlane.xlu0 %3926
        %3928 = vmax.xlane.f32.xlu0 %v3912
        %v3929 = vpop.xlane.xlu0 %3928
        %3930 = vmax.xlane.f32.xlu0 %v3914
        %v3931 = vpop.xlane.xlu0 %3930
        %v3932 = vsub.f32 %v3897, %v3917
        %v3933 = vsub.f32 %v3899, %v3919
        %v3934 = vsub.f32 %v3902, %v3921
        %v3935 = vsub.f32 %v3904, %v3923
        %v3936 = vsub.f32 %v3907, %v3925
        %v3937 = vsub.f32 %v3909, %v3927
        %v3938 = vsub.f32 %v3912, %v3929
        %v3939 = vsub.f32 %v3914, %v3931
        %v3940 = vmul.f32 %v3932, 1.442695
        %v3941 = vpow.pop %v3940
        %v3942 = vmul.f32 %v3933, 1.442695
        %v3943 = vpow.pop %v3942
        %v3944 = vmul.f32 %v3934, 1.442695
        %v3945 = vpow.pop %v3944
        %v3946 = vmul.f32 %v3935, 1.442695
        %v3947 = vpow.pop %v3946
        %v3948 = vmul.f32 %v3936, 1.442695
        %v3949 = vpow.pop %v3948
        %v3950 = vmul.f32 %v3937, 1.442695
        %v3951 = vpow.pop %v3950
        %v3952 = vmul.f32 %v3938, 1.442695
        %v3953 = vpow.pop %v3952
        %v3954 = vmul.f32 %v3939, 1.442695
        %v3955 = vpow.pop %v3954
        %3956 = vadd.xlane.f32.xlu0 %v3941
        %v3957 = vpop.xlane.xlu0 %3956
        %3958 = vadd.xlane.f32.xlu0 %v3943
        %v3959 = vpop.xlane.xlu0 %3958
        %3960 = vadd.xlane.f32.xlu0 %v3945
        %v3961 = vpop.xlane.xlu0 %3960
        %3962 = vadd.xlane.f32.xlu0 %v3947
        %v3963 = vpop.xlane.xlu0 %3962
        %3964 = vadd.xlane.f32.xlu0 %v3949
        %v3965 = vpop.xlane.xlu0 %3964
        %3966 = vadd.xlane.f32.xlu0 %v3951
        %v3967 = vpop.xlane.xlu0 %3966
        %3968 = vadd.xlane.f32.xlu0 %v3953
        %v3969 = vpop.xlane.xlu0 %3968
        %3970 = vadd.xlane.f32.xlu0 %v3955
        %v3971 = vpop.xlane.xlu0 %3970
        %v3972 = vpack.c.bf16 %v3943, %v3941
        %v3973 = vpack.c.bf16 %v3947, %v3945
        %v3974 = vpack.c.bf16 %v3951, %v3949
        %v3975 = vpack.c.bf16 %v3955, %v3953
        %3976 = vmatpush.bf16.msra.mxu0 %v3886
        %3977 = vmatpush.bf16.msra.mxu0 %v3885
        %3978 = vmatpush.bf16.msra.mxu0 %v3884
        %3979 = vmatpush.bf16.msra.mxu0 %v3883
        %3980 = vmatpush.bf16.msra.mxu0 %v3882
        %3981 = vmatpush.bf16.msra.mxu0 %v3881
        %3982 = vmatpush.bf16.msra.mxu0 %v3880
        %3983 = vmatpush.bf16.msra.mxu0 %v3879
        %3984 = vmatmul.bf16.gmra.mxu0 %v3972
        %v3985 = vpop.f32.mrf.mxu0
        %v3986 = vadd.f32 0.0, %v3985
        %v3987 = vpop.f32.mrf.mxu0
        %v3988 = vadd.f32 0.0, %v3987
        %3989 = vmatmul.bf16.gmra.mxu0 %v3973
        %v3990 = vpop.f32.mrf.mxu0
        %v3991 = vadd.f32 0.0, %v3990
        %v3992 = vpop.f32.mrf.mxu0
        %v3993 = vadd.f32 0.0, %v3992
        %3994 = vmatmul.bf16.gmra.mxu0 %v3974
        %v3995 = vpop.f32.mrf.mxu0
        %v3996 = vadd.f32 0.0, %v3995
        %v3997 = vpop.f32.mrf.mxu0
        %v3998 = vadd.f32 0.0, %v3997
        %3999 = vmatmul.bf16.gmra.mxu0 %v3975
        %v4000 = vpop.f32.mrf.mxu0
        %v4001 = vadd.f32 0.0, %v4000
        %v4002 = vpop.f32.mrf.mxu0
        %v4003 = vadd.f32 0.0, %v4002
        %4004 = vdwg.mxu0
        %v4005 = vrcp.pop %v3957
        %v4006 = vrcp.pop %v3959
        %v4007 = vrcp.pop %v3961
        %v4008 = vrcp.pop %v3963
        %v4009 = vrcp.pop %v3965
        %v4010 = vrcp.pop %v3967
        %v4011 = vrcp.pop %v3969
        %v4012 = vrcp.pop %v3971
        %v4013 = vmul.f32 %v3986, %v4005
        %v4014 = vmul.f32 %v3988, %v4006
        %v4015 = vmul.f32 %v3991, %v4007
        %v4016 = vmul.f32 %v3993, %v4008
        %v4017 = vmul.f32 %v3996, %v4009
        %v4018 = vmul.f32 %v3998, %v4010
        %v4019 = vmul.f32 %v4001, %v4011
        %v4020 = vmul.f32 %v4003, %v4012
        %v4021 = vpack.c.bf16 %v4013, %v4013
        %v4022 = vpack.c.bf16 %v4014, %v4014
        %v4023 = vpack.c.bf16 %v4015, %v4015
        %v4024 = vpack.c.bf16 %v4016, %v4016
        %v4025 = vpack.c.bf16 %v4017, %v4017
        %v4026 = vpack.c.bf16 %v4018, %v4018
        %v4027 = vpack.c.bf16 %v4019, %v4019
        %v4028 = vpack.c.bf16 %v4020, %v4020
        %v4029 = vpack.c.bf16 %v1262, %v1260
        %v4030 = vpack.c.bf16 %v1267, %v1265
        %v4031 = vpack.c.bf16 %v1272, %v1270
        %v4032 = vpack.c.bf16 %v1277, %v1275
        %v4033 = vpack.c.bf16 %v2260, %v2258
        %v4034 = vpack.c.bf16 %v2265, %v2263
        %v4035 = vpack.c.bf16 %v2270, %v2268
        %v4036 = vpack.c.bf16 %v2275, %v2273
        %v4037 = vpack.c.bf16 %v2280, %v2278
        %v4038 = vpack.c.bf16 %v2285, %v2283
        %v4039 = vpack.c.bf16 %v2290, %v2288
        %v4040 = vpack.c.bf16 %v2295, %v2293
        %v4041 = vpack.c.bf16 %v3438, %v3436
        %v4042 = vpack.c.bf16 %v3443, %v3441
        %v4043 = vpack.c.bf16 %v3448, %v3446
        %v4044 = vpack.c.bf16 %v3453, %v3451
        %v4045 = vpack.c.bf16 %v3458, %v3456
        %v4046 = vpack.c.bf16 %v3463, %v3461
        %v4047 = vpack.c.bf16 %v3468, %v3466
        %v4048 = vpack.c.bf16 %v3473, %v3471
        %4049 = vmatpush.bf16.xpose.msra.mxu0 %v4040
        %4050 = vmatpush.bf16.xpose.msra.mxu0 %v4039
        %4051 = vmatpush.bf16.xpose.msra.mxu0 %v4038
        %4052 = vmatpush.bf16.xpose.msra.mxu0 %v4037
        %4053 = vmatpush.bf16.xpose.msra.mxu0 %v4036
        %4054 = vmatpush.bf16.xpose.msra.mxu0 %v4035
        %4055 = vmatpush.bf16.xpose.msra.mxu0 %v4034
        %4056 = vmatpush.bf16.xpose.msra.mxu0 %v4033
        %4057 = vmatmul.bf16.gmra.mxu0 %v4029
        %v4058 = vpop.f32.mrf.mxu0
        %v4059 = vadd.f32 0.0, %v4058
        %v4060 = vpop.f32.mrf.mxu0
        %v4061 = vadd.f32 0.0, %v4060
        %4062 = vmatmul.bf16.gmra.mxu0 %v4030
        %v4063 = vpop.f32.mrf.mxu0
        %v4064 = vadd.f32 0.0, %v4063
        %v4065 = vpop.f32.mrf.mxu0
        %v4066 = vadd.f32 0.0, %v4065
        %4067 = vmatmul.bf16.gmra.mxu0 %v4031
        %v4068 = vpop.f32.mrf.mxu0
        %v4069 = vadd.f32 0.0, %v4068
        %v4070 = vpop.f32.mrf.mxu0
        %v4071 = vadd.f32 0.0, %v4070
        %4072 = vmatmul.bf16.gmra.mxu0 %v4032
        %v4073 = vpop.f32.mrf.mxu0
        %v4074 = vadd.f32 0.0, %v4073
        %v4075 = vpop.f32.mrf.mxu0
        %v4076 = vadd.f32 0.0, %v4075
        %4077 = vdwg.mxu0
        %4078 = vmax.xlane.f32.xlu0 %v4059
        %v4079 = vpop.xlane.xlu0 %4078
        %4080 = vmax.xlane.f32.xlu0 %v4061
        %v4081 = vpop.xlane.xlu0 %4080
        %4082 = vmax.xlane.f32.xlu0 %v4064
        %v4083 = vpop.xlane.xlu0 %4082
        %4084 = vmax.xlane.f32.xlu0 %v4066
        %v4085 = vpop.xlane.xlu0 %4084
        %4086 = vmax.xlane.f32.xlu0 %v4069
        %v4087 = vpop.xlane.xlu0 %4086
        %4088 = vmax.xlane.f32.xlu0 %v4071
        %v4089 = vpop.xlane.xlu0 %4088
        %4090 = vmax.xlane.f32.xlu0 %v4074
        %v4091 = vpop.xlane.xlu0 %4090
        %4092 = vmax.xlane.f32.xlu0 %v4076
        %v4093 = vpop.xlane.xlu0 %4092
        %v4094 = vsub.f32 %v4059, %v4079
        %v4095 = vsub.f32 %v4061, %v4081
        %v4096 = vsub.f32 %v4064, %v4083
        %v4097 = vsub.f32 %v4066, %v4085
        %v4098 = vsub.f32 %v4069, %v4087
        %v4099 = vsub.f32 %v4071, %v4089
        %v4100 = vsub.f32 %v4074, %v4091
        %v4101 = vsub.f32 %v4076, %v4093
        %v4102 = vmul.f32 %v4094, 1.442695
        %v4103 = vpow.pop %v4102
        %v4104 = vmul.f32 %v4095, 1.442695
        %v4105 = vpow.pop %v4104
        %v4106 = vmul.f32 %v4096, 1.442695
        %v4107 = vpow.pop %v4106
        %v4108 = vmul.f32 %v4097, 1.442695
        %v4109 = vpow.pop %v4108
        %v4110 = vmul.f32 %v4098, 1.442695
        %v4111 = vpow.pop %v4110
        %v4112 = vmul.f32 %v4099, 1.442695
        %v4113 = vpow.pop %v4112
        %v4114 = vmul.f32 %v4100, 1.442695
        %v4115 = vpow.pop %v4114
        %v4116 = vmul.f32 %v4101, 1.442695
        %v4117 = vpow.pop %v4116
        %4118 = vadd.xlane.f32.xlu0 %v4103
        %v4119 = vpop.xlane.xlu0 %4118
        %4120 = vadd.xlane.f32.xlu0 %v4105
        %v4121 = vpop.xlane.xlu0 %4120
        %4122 = vadd.xlane.f32.xlu0 %v4107
        %v4123 = vpop.xlane.xlu0 %4122
        %4124 = vadd.xlane.f32.xlu0 %v4109
        %v4125 = vpop.xlane.xlu0 %4124
        %4126 = vadd.xlane.f32.xlu0 %v4111
        %v4127 = vpop.xlane.xlu0 %4126
        %4128 = vadd.xlane.f32.xlu0 %v4113
        %v4129 = vpop.xlane.xlu0 %4128
        %4130 = vadd.xlane.f32.xlu0 %v4115
        %v4131 = vpop.xlane.xlu0 %4130
        %4132 = vadd.xlane.f32.xlu0 %v4117
        %v4133 = vpop.xlane.xlu0 %4132
        %v4134 = vpack.c.bf16 %v4105, %v4103
        %v4135 = vpack.c.bf16 %v4109, %v4107
        %v4136 = vpack.c.bf16 %v4113, %v4111
        %v4137 = vpack.c.bf16 %v4117, %v4115
        %4138 = vmatpush.bf16.msra.mxu0 %v4048
        %4139 = vmatpush.bf16.msra.mxu0 %v4047
        %4140 = vmatpush.bf16.msra.mxu0 %v4046
        %4141 = vmatpush.bf16.msra.mxu0 %v4045
        %4142 = vmatpush.bf16.msra.mxu0 %v4044
        %4143 = vmatpush.bf16.msra.mxu0 %v4043
        %4144 = vmatpush.bf16.msra.mxu0 %v4042
        %4145 = vmatpush.bf16.msra.mxu0 %v4041
        %4146 = vmatmul.bf16.gmra.mxu0 %v4134
        %v4147 = vpop.f32.mrf.mxu0
        %v4148 = vadd.f32 0.0, %v4147
        %v4149 = vpop.f32.mrf.mxu0
        %v4150 = vadd.f32 0.0, %v4149
        %4151 = vmatmul.bf16.gmra.mxu0 %v4135
        %v4152 = vpop.f32.mrf.mxu0
        %v4153 = vadd.f32 0.0, %v4152
        %v4154 = vpop.f32.mrf.mxu0
        %v4155 = vadd.f32 0.0, %v4154
        %4156 = vmatmul.bf16.gmra.mxu0 %v4136
        %v4157 = vpop.f32.mrf.mxu0
        %v4158 = vadd.f32 0.0, %v4157
        %v4159 = vpop.f32.mrf.mxu0
        %v4160 = vadd.f32 0.0, %v4159
        %4161 = vmatmul.bf16.gmra.mxu0 %v4137
        %v4162 = vpop.f32.mrf.mxu0
        %v4163 = vadd.f32 0.0, %v4162
        %v4164 = vpop.f32.mrf.mxu0
        %v4165 = vadd.f32 0.0, %v4164
        %4166 = vdwg.mxu0
        %v4167 = vrcp.pop %v4119
        %v4168 = vrcp.pop %v4121
        %v4169 = vrcp.pop %v4123
        %v4170 = vrcp.pop %v4125
        %v4171 = vrcp.pop %v4127
        %v4172 = vrcp.pop %v4129
        %v4173 = vrcp.pop %v4131
        %v4174 = vrcp.pop %v4133
        %v4175 = vmul.f32 %v4148, %v4167
        %v4176 = vmul.f32 %v4150, %v4168
        %v4177 = vmul.f32 %v4153, %v4169
        %v4178 = vmul.f32 %v4155, %v4170
        %v4179 = vmul.f32 %v4158, %v4171
        %v4180 = vmul.f32 %v4160, %v4172
        %v4181 = vmul.f32 %v4163, %v4173
        %v4182 = vmul.f32 %v4165, %v4174
        %v4183 = vpack.c.bf16 %v4175, %v4175
        %v4184 = vpack.c.bf16 %v4176, %v4176
        %v4185 = vpack.c.bf16 %v4177, %v4177
        %v4186 = vpack.c.bf16 %v4178, %v4178
        %v4187 = vpack.c.bf16 %v4179, %v4179
        %v4188 = vpack.c.bf16 %v4180, %v4180
        %v4189 = vpack.c.bf16 %v4181, %v4181
        %v4190 = vpack.c.bf16 %v4182, %v4182
        %v4191 = vpack.c.bf16 %v1378, %v1376
        %v4192 = vpack.c.bf16 %v1383, %v1381
        %v4193 = vpack.c.bf16 %v1388, %v1386
        %v4194 = vpack.c.bf16 %v1393, %v1391
        %v4195 = vpack.c.bf16 %v2456, %v2454
        %v4196 = vpack.c.bf16 %v2461, %v2459
        %v4197 = vpack.c.bf16 %v2466, %v2464
        %v4198 = vpack.c.bf16 %v2471, %v2469
        %v4199 = vpack.c.bf16 %v2476, %v2474
        %v4200 = vpack.c.bf16 %v2481, %v2479
        %v4201 = vpack.c.bf16 %v2486, %v2484
        %v4202 = vpack.c.bf16 %v2491, %v2489
        %v4203 = vpack.c.bf16 %v3634, %v3632
        %v4204 = vpack.c.bf16 %v3639, %v3637
        %v4205 = vpack.c.bf16 %v3644, %v3642
        %v4206 = vpack.c.bf16 %v3649, %v3647
        %v4207 = vpack.c.bf16 %v3654, %v3652
        %v4208 = vpack.c.bf16 %v3659, %v3657
        %v4209 = vpack.c.bf16 %v3664, %v3662
        %v4210 = vpack.c.bf16 %v3669, %v3667
        %4211 = vmatpush.bf16.xpose.msra.mxu0 %v4202
        %4212 = vmatpush.bf16.xpose.msra.mxu0 %v4201
        %4213 = vmatpush.bf16.xpose.msra.mxu0 %v4200
        %4214 = vmatpush.bf16.xpose.msra.mxu0 %v4199
        %4215 = vmatpush.bf16.xpose.msra.mxu0 %v4198
        %4216 = vmatpush.bf16.xpose.msra.mxu0 %v4197
        %4217 = vmatpush.bf16.xpose.msra.mxu0 %v4196
        %4218 = vmatpush.bf16.xpose.msra.mxu0 %v4195
        %4219 = vmatmul.bf16.gmra.mxu0 %v4191
        %v4220 = vpop.f32.mrf.mxu0
        %v4221 = vadd.f32 0.0, %v4220
        %v4222 = vpop.f32.mrf.mxu0
        %v4223 = vadd.f32 0.0, %v4222
        %4224 = vmatmul.bf16.gmra.mxu0 %v4192
        %v4225 = vpop.f32.mrf.mxu0
        %v4226 = vadd.f32 0.0, %v4225
        %v4227 = vpop.f32.mrf.mxu0
        %v4228 = vadd.f32 0.0, %v4227
        %4229 = vmatmul.bf16.gmra.mxu0 %v4193
        %v4230 = vpop.f32.mrf.mxu0
        %v4231 = vadd.f32 0.0, %v4230
        %v4232 = vpop.f32.mrf.mxu0
        %v4233 = vadd.f32 0.0, %v4232
        %4234 = vmatmul.bf16.gmra.mxu0 %v4194
        %v4235 = vpop.f32.mrf.mxu0
        %v4236 = vadd.f32 0.0, %v4235
        %v4237 = vpop.f32.mrf.mxu0
        %v4238 = vadd.f32 0.0, %v4237
        %4239 = vdwg.mxu0
        %4240 = vmax.xlane.f32.xlu0 %v4221
        %v4241 = vpop.xlane.xlu0 %4240
        %4242 = vmax.xlane.f32.xlu0 %v4223
        %v4243 = vpop.xlane.xlu0 %4242
        %4244 = vmax.xlane.f32.xlu0 %v4226
        %v4245 = vpop.xlane.xlu0 %4244
        %4246 = vmax.xlane.f32.xlu0 %v4228
        %v4247 = vpop.xlane.xlu0 %4246
        %4248 = vmax.xlane.f32.xlu0 %v4231
        %v4249 = vpop.xlane.xlu0 %4248
        %4250 = vmax.xlane.f32.xlu0 %v4233
        %v4251 = vpop.xlane.xlu0 %4250
        %4252 = vmax.xlane.f32.xlu0 %v4236
        %v4253 = vpop.xlane.xlu0 %4252
        %4254 = vmax.xlane.f32.xlu0 %v4238
        %v4255 = vpop.xlane.xlu0 %4254
        %v4256 = vsub.f32 %v4221, %v4241
        %v4257 = vsub.f32 %v4223, %v4243
        %v4258 = vsub.f32 %v4226, %v4245
        %v4259 = vsub.f32 %v4228, %v4247
        %v4260 = vsub.f32 %v4231, %v4249
        %v4261 = vsub.f32 %v4233, %v4251
        %v4262 = vsub.f32 %v4236, %v4253
        %v4263 = vsub.f32 %v4238, %v4255
        %v4264 = vmul.f32 %v4256, 1.442695
        %v4265 = vpow.pop %v4264
        %v4266 = vmul.f32 %v4257, 1.442695
        %v4267 = vpow.pop %v4266
        %v4268 = vmul.f32 %v4258, 1.442695
        %v4269 = vpow.pop %v4268
        %v4270 = vmul.f32 %v4259, 1.442695
        %v4271 = vpow.pop %v4270
        %v4272 = vmul.f32 %v4260, 1.442695
        %v4273 = vpow.pop %v4272
        %v4274 = vmul.f32 %v4261, 1.442695
        %v4275 = vpow.pop %v4274
        %v4276 = vmul.f32 %v4262, 1.442695
        %v4277 = vpow.pop %v4276
        %v4278 = vmul.f32 %v4263, 1.442695
        %v4279 = vpow.pop %v4278
        %4280 = vadd.xlane.f32.xlu0 %v4265
        %v4281 = vpop.xlane.xlu0 %4280
        %4282 = vadd.xlane.f32.xlu0 %v4267
        %v4283 = vpop.xlane.xlu0 %4282
        %4284 = vadd.xlane.f32.xlu0 %v4269
        %v4285 = vpop.xlane.xlu0 %4284
        %4286 = vadd.xlane.f32.xlu0 %v4271
        %v4287 = vpop.xlane.xlu0 %4286
        %4288 = vadd.xlane.f32.xlu0 %v4273
        %v4289 = vpop.xlane.xlu0 %4288
        %4290 = vadd.xlane.f32.xlu0 %v4275
        %v4291 = vpop.xlane.xlu0 %4290
        %4292 = vadd.xlane.f32.xlu0 %v4277
        %v4293 = vpop.xlane.xlu0 %4292
        %4294 = vadd.xlane.f32.xlu0 %v4279
        %v4295 = vpop.xlane.xlu0 %4294
        %v4296 = vpack.c.bf16 %v4267, %v4265
        %v4297 = vpack.c.bf16 %v4271, %v4269
        %v4298 = vpack.c.bf16 %v4275, %v4273
        %v4299 = vpack.c.bf16 %v4279, %v4277
        %4300 = vmatpush.bf16.msra.mxu0 %v4210
        %4301 = vmatpush.bf16.msra.mxu0 %v4209
        %4302 = vmatpush.bf16.msra.mxu0 %v4208
        %4303 = vmatpush.bf16.msra.mxu0 %v4207
        %4304 = vmatpush.bf16.msra.mxu0 %v4206
        %4305 = vmatpush.bf16.msra.mxu0 %v4205
        %4306 = vmatpush.bf16.msra.mxu0 %v4204
        %4307 = vmatpush.bf16.msra.mxu0 %v4203
        %4308 = vmatmul.bf16.gmra.mxu0 %v4296
        %v4309 = vpop.f32.mrf.mxu0
        %v4310 = vadd.f32 0.0, %v4309
        %v4311 = vpop.f32.mrf.mxu0
        %v4312 = vadd.f32 0.0, %v4311
        %4313 = vmatmul.bf16.gmra.mxu0 %v4297
        %v4314 = vpop.f32.mrf.mxu0
        %v4315 = vadd.f32 0.0, %v4314
        %v4316 = vpop.f32.mrf.mxu0
        %v4317 = vadd.f32 0.0, %v4316
        %4318 = vmatmul.bf16.gmra.mxu0 %v4298
        %v4319 = vpop.f32.mrf.mxu0
        %v4320 = vadd.f32 0.0, %v4319
        %v4321 = vpop.f32.mrf.mxu0
        %v4322 = vadd.f32 0.0, %v4321
        %4323 = vmatmul.bf16.gmra.mxu0 %v4299
        %v4324 = vpop.f32.mrf.mxu0
        %v4325 = vadd.f32 0.0, %v4324
        %v4326 = vpop.f32.mrf.mxu0
        %v4327 = vadd.f32 0.0, %v4326
        %4328 = vdwg.mxu0
        %v4329 = vrcp.pop %v4281
        %v4330 = vrcp.pop %v4283
        %v4331 = vrcp.pop %v4285
        %v4332 = vrcp.pop %v4287
        %v4333 = vrcp.pop %v4289
        %v4334 = vrcp.pop %v4291
        %v4335 = vrcp.pop %v4293
        %v4336 = vrcp.pop %v4295
        %v4337 = vmul.f32 %v4310, %v4329
        %v4338 = vmul.f32 %v4312, %v4330
        %v4339 = vmul.f32 %v4315, %v4331
        %v4340 = vmul.f32 %v4317, %v4332
        %v4341 = vmul.f32 %v4320, %v4333
        %v4342 = vmul.f32 %v4322, %v4334
        %v4343 = vmul.f32 %v4325, %v4335
        %v4344 = vmul.f32 %v4327, %v4336
        %v4345 = vpack.c.bf16 %v4337, %v4337
        %v4346 = vpack.c.bf16 %v4338, %v4338
        %v4347 = vpack.c.bf16 %v4339, %v4339
        %v4348 = vpack.c.bf16 %v4340, %v4340
        %v4349 = vpack.c.bf16 %v4341, %v4341
        %v4350 = vpack.c.bf16 %v4342, %v4342
        %v4351 = vpack.c.bf16 %v4343, %v4343
        %v4352 = vpack.c.bf16 %v4344, %v4344
        %v4353 = vpack.c.bf16 %v1494, %v1492
        %v4354 = vpack.c.bf16 %v1499, %v1497
        %v4355 = vpack.c.bf16 %v1504, %v1502
        %v4356 = vpack.c.bf16 %v1509, %v1507
        %v4357 = vpack.c.bf16 %v2652, %v2650
        %v4358 = vpack.c.bf16 %v2657, %v2655
        %v4359 = vpack.c.bf16 %v2662, %v2660
        %v4360 = vpack.c.bf16 %v2667, %v2665
        %v4361 = vpack.c.bf16 %v2672, %v2670
        %v4362 = vpack.c.bf16 %v2677, %v2675
        %v4363 = vpack.c.bf16 %v2682, %v2680
        %v4364 = vpack.c.bf16 %v2687, %v2685
        %v4365 = vpack.c.bf16 %v3830, %v3828
        %v4366 = vpack.c.bf16 %v3835, %v3833
        %v4367 = vpack.c.bf16 %v3840, %v3838
        %v4368 = vpack.c.bf16 %v3845, %v3843
        %v4369 = vpack.c.bf16 %v3850, %v3848
        %v4370 = vpack.c.bf16 %v3855, %v3853
        %v4371 = vpack.c.bf16 %v3860, %v3858
        %v4372 = vpack.c.bf16 %v3865, %v3863
        %4373 = vmatpush.bf16.xpose.msra.mxu0 %v4364
        %4374 = vmatpush.bf16.xpose.msra.mxu0 %v4363
        %4375 = vmatpush.bf16.xpose.msra.mxu0 %v4362
        %4376 = vmatpush.bf16.xpose.msra.mxu0 %v4361
        %4377 = vmatpush.bf16.xpose.msra.mxu0 %v4360
        %4378 = vmatpush.bf16.xpose.msra.mxu0 %v4359
        %4379 = vmatpush.bf16.xpose.msra.mxu0 %v4358
        %4380 = vmatpush.bf16.xpose.msra.mxu0 %v4357
        %4381 = vmatmul.bf16.gmra.mxu0 %v4353
        %v4382 = vpop.f32.mrf.mxu0
        %v4383 = vadd.f32 0.0, %v4382
        %v4384 = vpop.f32.mrf.mxu0
        %v4385 = vadd.f32 0.0, %v4384
        %4386 = vmatmul.bf16.gmra.mxu0 %v4354
        %v4387 = vpop.f32.mrf.mxu0
        %v4388 = vadd.f32 0.0, %v4387
        %v4389 = vpop.f32.mrf.mxu0
        %v4390 = vadd.f32 0.0, %v4389
        %4391 = vmatmul.bf16.gmra.mxu0 %v4355
        %v4392 = vpop.f32.mrf.mxu0
        %v4393 = vadd.f32 0.0, %v4392
        %v4394 = vpop.f32.mrf.mxu0
        %v4395 = vadd.f32 0.0, %v4394
        %4396 = vmatmul.bf16.gmra.mxu0 %v4356
        %v4397 = vpop.f32.mrf.mxu0
        %v4398 = vadd.f32 0.0, %v4397
        %v4399 = vpop.f32.mrf.mxu0
        %v4400 = vadd.f32 0.0, %v4399
        %4401 = vdwg.mxu0
        %4402 = vmax.xlane.f32.xlu0 %v4383
        %v4403 = vpop.xlane.xlu0 %4402
        %4404 = vmax.xlane.f32.xlu0 %v4385
        %v4405 = vpop.xlane.xlu0 %4404
        %4406 = vmax.xlane.f32.xlu0 %v4388
        %v4407 = vpop.xlane.xlu0 %4406
        %4408 = vmax.xlane.f32.xlu0 %v4390
        %v4409 = vpop.xlane.xlu0 %4408
        %4410 = vmax.xlane.f32.xlu0 %v4393
        %v4411 = vpop.xlane.xlu0 %4410
        %4412 = vmax.xlane.f32.xlu0 %v4395
        %v4413 = vpop.xlane.xlu0 %4412
        %4414 = vmax.xlane.f32.xlu0 %v4398
        %v4415 = vpop.xlane.xlu0 %4414
        %4416 = vmax.xlane.f32.xlu0 %v4400
        %v4417 = vpop.xlane.xlu0 %4416
        %v4418 = vsub.f32 %v4383, %v4403
        %v4419 = vsub.f32 %v4385, %v4405
        %v4420 = vsub.f32 %v4388, %v4407
        %v4421 = vsub.f32 %v4390, %v4409
        %v4422 = vsub.f32 %v4393, %v4411
        %v4423 = vsub.f32 %v4395, %v4413
        %v4424 = vsub.f32 %v4398, %v4415
        %v4425 = vsub.f32 %v4400, %v4417
        %v4426 = vmul.f32 %v4418, 1.442695
        %v4427 = vpow.pop %v4426
        %v4428 = vmul.f32 %v4419, 1.442695
        %v4429 = vpow.pop %v4428
        %v4430 = vmul.f32 %v4420, 1.442695
        %v4431 = vpow.pop %v4430
        %v4432 = vmul.f32 %v4421, 1.442695
        %v4433 = vpow.pop %v4432
        %v4434 = vmul.f32 %v4422, 1.442695
        %v4435 = vpow.pop %v4434
        %v4436 = vmul.f32 %v4423, 1.442695
        %v4437 = vpow.pop %v4436
        %v4438 = vmul.f32 %v4424, 1.442695
        %v4439 = vpow.pop %v4438
        %v4440 = vmul.f32 %v4425, 1.442695
        %v4441 = vpow.pop %v4440
        %4442 = vadd.xlane.f32.xlu0 %v4427
        %v4443 = vpop.xlane.xlu0 %4442
        %4444 = vadd.xlane.f32.xlu0 %v4429
        %v4445 = vpop.xlane.xlu0 %4444
        %4446 = vadd.xlane.f32.xlu0 %v4431
        %v4447 = vpop.xlane.xlu0 %4446
        %4448 = vadd.xlane.f32.xlu0 %v4433
        %v4449 = vpop.xlane.xlu0 %4448
        %4450 = vadd.xlane.f32.xlu0 %v4435
        %v4451 = vpop.xlane.xlu0 %4450
        %4452 = vadd.xlane.f32.xlu0 %v4437
        %v4453 = vpop.xlane.xlu0 %4452
        %4454 = vadd.xlane.f32.xlu0 %v4439
        %v4455 = vpop.xlane.xlu0 %4454
        %4456 = vadd.xlane.f32.xlu0 %v4441
        %v4457 = vpop.xlane.xlu0 %4456
        %v4458 = vpack.c.bf16 %v4429, %v4427
        %v4459 = vpack.c.bf16 %v4433, %v4431
        %v4460 = vpack.c.bf16 %v4437, %v4435
        %v4461 = vpack.c.bf16 %v4441, %v4439
        %4462 = vmatpush.bf16.msra.mxu0 %v4372
        %4463 = vmatpush.bf16.msra.mxu0 %v4371
        %4464 = vmatpush.bf16.msra.mxu0 %v4370
        %4465 = vmatpush.bf16.msra.mxu0 %v4369
        %4466 = vmatpush.bf16.msra.mxu0 %v4368
        %4467 = vmatpush.bf16.msra.mxu0 %v4367
        %4468 = vmatpush.bf16.msra.mxu0 %v4366
        %4469 = vmatpush.bf16.msra.mxu0 %v4365
        %4470 = vmatmul.bf16.gmra.mxu0 %v4458
        %v4471 = vpop.f32.mrf.mxu0
        %v4472 = vadd.f32 0.0, %v4471
        %v4473 = vpop.f32.mrf.mxu0
        %v4474 = vadd.f32 0.0, %v4473
        %4475 = vmatmul.bf16.gmra.mxu0 %v4459
        %v4476 = vpop.f32.mrf.mxu0
        %v4477 = vadd.f32 0.0, %v4476
        %v4478 = vpop.f32.mrf.mxu0
        %v4479 = vadd.f32 0.0, %v4478
        %4480 = vmatmul.bf16.gmra.mxu0 %v4460
        %v4481 = vpop.f32.mrf.mxu0
        %v4482 = vadd.f32 0.0, %v4481
        %v4483 = vpop.f32.mrf.mxu0
        %v4484 = vadd.f32 0.0, %v4483
        %4485 = vmatmul.bf16.gmra.mxu0 %v4461
        %v4486 = vpop.f32.mrf.mxu0
        %v4487 = vadd.f32 0.0, %v4486
        %v4488 = vpop.f32.mrf.mxu0
        %v4489 = vadd.f32 0.0, %v4488
        %4490 = vdwg.mxu0
        %v4491 = vrcp.pop %v4443
        %v4492 = vrcp.pop %v4445
        %v4493 = vrcp.pop %v4447
        %v4494 = vrcp.pop %v4449
        %v4495 = vrcp.pop %v4451
        %v4496 = vrcp.pop %v4453
        %v4497 = vrcp.pop %v4455
        %v4498 = vrcp.pop %v4457
        %v4499 = vmul.f32 %v4472, %v4491
        %v4500 = vmul.f32 %v4474, %v4492
        %v4501 = vmul.f32 %v4477, %v4493
        %v4502 = vmul.f32 %v4479, %v4494
        %v4503 = vmul.f32 %v4482, %v4495
        %v4504 = vmul.f32 %v4484, %v4496
        %v4505 = vmul.f32 %v4487, %v4497
        %v4506 = vmul.f32 %v4489, %v4498
        %v4507 = vpack.c.bf16 %v4499, %v4499
        %v4508 = vpack.c.bf16 %v4500, %v4500
        %v4509 = vpack.c.bf16 %v4501, %v4501
        %v4510 = vpack.c.bf16 %v4502, %v4502
        %v4511 = vpack.c.bf16 %v4503, %v4503
        %v4512 = vpack.c.bf16 %v4504, %v4504
        %v4513 = vpack.c.bf16 %v4505, %v4505
        %v4514 = vpack.c.bf16 %v4506, %v4506
        %v4523 = vunpack.c.l.b16 %v4021
        %v4524 = vunpack.c.l.b16 %v4022
        %v4525 = vunpack.c.l.b16 %v4023
        %v4526 = vunpack.c.l.b16 %v4024
        %v4527 = vunpack.c.l.b16 %v4025
        %v4528 = vunpack.c.l.b16 %v4026
        %v4529 = vunpack.c.l.b16 %v4027
        %v4530 = vunpack.c.l.b16 %v4028
        %v4531 = vpack.c.b16 %v4524, %v4523
        %v4532 = vpack.c.b16 %v4526, %v4525
        %v4533 = vpack.c.b16 %v4528, %v4527
        %v4534 = vpack.c.b16 %v4530, %v4529
        %v4547 = vunpack.c.l.b16 %v4183
        %v4548 = vunpack.c.l.b16 %v4184
        %v4549 = vunpack.c.l.b16 %v4185
        %v4550 = vunpack.c.l.b16 %v4186
        %v4551 = vunpack.c.l.b16 %v4187
        %v4552 = vunpack.c.l.b16 %v4188
        %v4553 = vunpack.c.l.b16 %v4189
        %v4554 = vunpack.c.l.b16 %v4190
        %v4555 = vpack.c.b16 %v4548, %v4547
        %v4556 = vpack.c.b16 %v4550, %v4549
        %v4557 = vpack.c.b16 %v4552, %v4551
        %v4558 = vpack.c.b16 %v4554, %v4553
        %v4571 = vunpack.c.l.b16 %v4345
        %v4572 = vunpack.c.l.b16 %v4346
        %v4573 = vunpack.c.l.b16 %v4347
        %v4574 = vunpack.c.l.b16 %v4348
        %v4575 = vunpack.c.l.b16 %v4349
        %v4576 = vunpack.c.l.b16 %v4350
        %v4577 = vunpack.c.l.b16 %v4351
        %v4578 = vunpack.c.l.b16 %v4352
        %v4579 = vpack.c.b16 %v4572, %v4571
        %v4580 = vpack.c.b16 %v4574, %v4573
        %v4581 = vpack.c.b16 %v4576, %v4575
        %v4582 = vpack.c.b16 %v4578, %v4577
        %v4595 = vunpack.c.l.b16 %v4507
        %v4596 = vunpack.c.l.b16 %v4508
        %v4597 = vunpack.c.l.b16 %v4509
        %v4598 = vunpack.c.l.b16 %v4510
        %v4599 = vunpack.c.l.b16 %v4511
        %v4600 = vunpack.c.l.b16 %v4512
        %v4601 = vunpack.c.l.b16 %v4513
        %v4602 = vunpack.c.l.b16 %v4514
        %v4603 = vpack.c.b16 %v4596, %v4595
        %v4604 = vpack.c.b16 %v4598, %v4597
        %v4605 = vpack.c.b16 %v4600, %v4599
        %v4606 = vpack.c.b16 %v4602, %v4601
        %v4611 = vld [vmem:[#allocation14] sm:$0xff]
        %v4612 = vld [vmem:[#allocation14 + $0x8] sm:$0xff]
        %v4613 = vld [vmem:[#allocation14 + $0x10] sm:$0xff]
        %v4614 = vld [vmem:[#allocation14 + $0x18] sm:$0xff]
        %v4615 = vld [vmem:[#allocation14 + $0x20] sm:$0xff]
        %v4616 = vld [vmem:[#allocation14 + $0x28] sm:$0xff]
        %v4617 = vld [vmem:[#allocation14 + $0x30] sm:$0xff]
        %v4618 = vld [vmem:[#allocation14 + $0x38] sm:$0xff]
        %v4619 = vld [vmem:[#allocation14 + $0x40] sm:$0xff]
        %v4620 = vld [vmem:[#allocation14 + $0x48] sm:$0xff]
        %v4621 = vld [vmem:[#allocation14 + $0x50] sm:$0xff]
        %v4622 = vld [vmem:[#allocation14 + $0x58] sm:$0xff]
        %v4623 = vld [vmem:[#allocation14 + $0x60] sm:$0xff]
        %v4624 = vld [vmem:[#allocation14 + $0x68] sm:$0xff]
        %v4625 = vld [vmem:[#allocation14 + $0x70] sm:$0xff]
        %v4626 = vld [vmem:[#allocation14 + $0x78] sm:$0xff]
        %v4627 = vld [vmem:[#allocation14 + $0x80] sm:$0xff]
        %v4628 = vld [vmem:[#allocation14 + $0x88] sm:$0xff]
        %v4629 = vld [vmem:[#allocation14 + $0x90] sm:$0xff]
        %v4630 = vld [vmem:[#allocation14 + $0x98] sm:$0xff]
        %v4631 = vld [vmem:[#allocation14 + $0xa0] sm:$0xff]
        %v4632 = vld [vmem:[#allocation14 + $0xa8] sm:$0xff]
        %v4633 = vld [vmem:[#allocation14 + $0xb0] sm:$0xff]
        %v4634 = vld [vmem:[#allocation14 + $0xb8] sm:$0xff]
        %v4635 = vld [vmem:[#allocation14 + $0xc0] sm:$0xff]
        %v4636 = vld [vmem:[#allocation14 + $0xc8] sm:$0xff]
        %v4637 = vld [vmem:[#allocation14 + $0xd0] sm:$0xff]
        %v4638 = vld [vmem:[#allocation14 + $0xd8] sm:$0xff]
        %v4639 = vld [vmem:[#allocation14 + $0xe0] sm:$0xff]
        %v4640 = vld [vmem:[#allocation14 + $0xe8] sm:$0xff]
        %v4641 = vld [vmem:[#allocation14 + $0xf0] sm:$0xff]
        %v4642 = vld [vmem:[#allocation14 + $0xf8] sm:$0xff]
        %v4643 = vld [vmem:[#allocation14 + $0x100] sm:$0xff]
        %v4644 = vld [vmem:[#allocation14 + $0x108] sm:$0xff]
        %v4645 = vld [vmem:[#allocation14 + $0x110] sm:$0xff]
        %v4646 = vld [vmem:[#allocation14 + $0x118] sm:$0xff]
        %v4647 = vld [vmem:[#allocation14 + $0x120] sm:$0xff]
        %v4648 = vld [vmem:[#allocation14 + $0x128] sm:$0xff]
        %v4649 = vld [vmem:[#allocation14 + $0x130] sm:$0xff]
        %v4650 = vld [vmem:[#allocation14 + $0x138] sm:$0xff]
        %v4651 = vld [vmem:[#allocation14 + $0x140] sm:$0xff]
        %v4652 = vld [vmem:[#allocation14 + $0x148] sm:$0xff]
        %v4653 = vld [vmem:[#allocation14 + $0x150] sm:$0xff]
        %v4654 = vld [vmem:[#allocation14 + $0x158] sm:$0xff]
        %v4655 = vld [vmem:[#allocation14 + $0x160] sm:$0xff]
        %v4656 = vld [vmem:[#allocation14 + $0x168] sm:$0xff]
        %v4657 = vld [vmem:[#allocation14 + $0x170] sm:$0xff]
        %v4658 = vld [vmem:[#allocation14 + $0x178] sm:$0xff]
        %v4659 = vld [vmem:[#allocation14 + $0x180] sm:$0xff]
        %v4660 = vld [vmem:[#allocation14 + $0x188] sm:$0xff]
        %v4661 = vld [vmem:[#allocation14 + $0x190] sm:$0xff]
        %v4662 = vld [vmem:[#allocation14 + $0x198] sm:$0xff]
        %v4663 = vld [vmem:[#allocation14 + $0x1a0] sm:$0xff]
        %v4664 = vld [vmem:[#allocation14 + $0x1a8] sm:$0xff]
        %v4665 = vld [vmem:[#allocation14 + $0x1b0] sm:$0xff]
        %v4666 = vld [vmem:[#allocation14 + $0x1b8] sm:$0xff]
        %v4667 = vld [vmem:[#allocation14 + $0x1c0] sm:$0xff]
        %v4668 = vld [vmem:[#allocation14 + $0x1c8] sm:$0xff]
        %v4669 = vld [vmem:[#allocation14 + $0x1d0] sm:$0xff]
        %v4670 = vld [vmem:[#allocation14 + $0x1d8] sm:$0xff]
        %v4671 = vld [vmem:[#allocation14 + $0x1e0] sm:$0xff]
        %v4672 = vld [vmem:[#allocation14 + $0x1e8] sm:$0xff]
        %v4673 = vld [vmem:[#allocation14 + $0x1f0] sm:$0xff]
        %v4674 = vld [vmem:[#allocation14 + $0x1f8] sm:$0xff]
        %v4675 = vld [vmem:[#allocation14 + $0x200] sm:$0xff]
        %v4676 = vld [vmem:[#allocation14 + $0x208] sm:$0xff]
        %v4677 = vld [vmem:[#allocation14 + $0x210] sm:$0xff]
        %v4678 = vld [vmem:[#allocation14 + $0x218] sm:$0xff]
        %v4679 = vld [vmem:[#allocation14 + $0x220] sm:$0xff]
        %v4680 = vld [vmem:[#allocation14 + $0x228] sm:$0xff]
        %v4681 = vld [vmem:[#allocation14 + $0x230] sm:$0xff]
        %v4682 = vld [vmem:[#allocation14 + $0x238] sm:$0xff]
        %v4683 = vld [vmem:[#allocation14 + $0x240] sm:$0xff]
        %v4684 = vld [vmem:[#allocation14 + $0x248] sm:$0xff]
        %v4685 = vld [vmem:[#allocation14 + $0x250] sm:$0xff]
        %v4686 = vld [vmem:[#allocation14 + $0x258] sm:$0xff]
        %v4687 = vld [vmem:[#allocation14 + $0x260] sm:$0xff]
        %v4688 = vld [vmem:[#allocation14 + $0x268] sm:$0xff]
        %v4689 = vld [vmem:[#allocation14 + $0x270] sm:$0xff]
        %v4690 = vld [vmem:[#allocation14 + $0x278] sm:$0xff]
        %v4691 = vld [vmem:[#allocation14 + $0x280] sm:$0xff]
        %v4692 = vld [vmem:[#allocation14 + $0x288] sm:$0xff]
        %v4693 = vld [vmem:[#allocation14 + $0x290] sm:$0xff]
        %v4694 = vld [vmem:[#allocation14 + $0x298] sm:$0xff]
        %v4695 = vld [vmem:[#allocation14 + $0x2a0] sm:$0xff]
        %v4696 = vld [vmem:[#allocation14 + $0x2a8] sm:$0xff]
        %v4697 = vld [vmem:[#allocation14 + $0x2b0] sm:$0xff]
        %v4698 = vld [vmem:[#allocation14 + $0x2b8] sm:$0xff]
        %v4699 = vld [vmem:[#allocation14 + $0x2c0] sm:$0xff]
        %v4700 = vld [vmem:[#allocation14 + $0x2c8] sm:$0xff]
        %v4701 = vld [vmem:[#allocation14 + $0x2d0] sm:$0xff]
        %v4702 = vld [vmem:[#allocation14 + $0x2d8] sm:$0xff]
        %v4703 = vld [vmem:[#allocation14 + $0x2e0] sm:$0xff]
        %v4704 = vld [vmem:[#allocation14 + $0x2e8] sm:$0xff]
        %v4705 = vld [vmem:[#allocation14 + $0x2f0] sm:$0xff]
        %v4706 = vld [vmem:[#allocation14 + $0x2f8] sm:$0xff]
        %v4707 = vld [vmem:[#allocation14 + $0x300] sm:$0xff]
        %v4708 = vld [vmem:[#allocation14 + $0x308] sm:$0xff]
        %v4709 = vld [vmem:[#allocation14 + $0x310] sm:$0xff]
        %v4710 = vld [vmem:[#allocation14 + $0x318] sm:$0xff]
        %v4711 = vld [vmem:[#allocation14 + $0x320] sm:$0xff]
        %v4712 = vld [vmem:[#allocation14 + $0x328] sm:$0xff]
        %v4713 = vld [vmem:[#allocation14 + $0x330] sm:$0xff]
        %v4714 = vld [vmem:[#allocation14 + $0x338] sm:$0xff]
        %v4715 = vld [vmem:[#allocation14 + $0x340] sm:$0xff]
        %v4716 = vld [vmem:[#allocation14 + $0x348] sm:$0xff]
        %v4717 = vld [vmem:[#allocation14 + $0x350] sm:$0xff]
        %v4718 = vld [vmem:[#allocation14 + $0x358] sm:$0xff]
        %v4719 = vld [vmem:[#allocation14 + $0x360] sm:$0xff]
        %v4720 = vld [vmem:[#allocation14 + $0x368] sm:$0xff]
        %v4721 = vld [vmem:[#allocation14 + $0x370] sm:$0xff]
        %v4722 = vld [vmem:[#allocation14 + $0x378] sm:$0xff]
        %v4723 = vld [vmem:[#allocation14 + $0x380] sm:$0xff]
        %v4724 = vld [vmem:[#allocation14 + $0x388] sm:$0xff]
        %v4725 = vld [vmem:[#allocation14 + $0x390] sm:$0xff]
        %v4726 = vld [vmem:[#allocation14 + $0x398] sm:$0xff]
        %v4727 = vld [vmem:[#allocation14 + $0x3a0] sm:$0xff]
        %v4728 = vld [vmem:[#allocation14 + $0x3a8] sm:$0xff]
        %v4729 = vld [vmem:[#allocation14 + $0x3b0] sm:$0xff]
        %v4730 = vld [vmem:[#allocation14 + $0x3b8] sm:$0xff]
        %v4731 = vld [vmem:[#allocation14 + $0x3c0] sm:$0xff]
        %v4732 = vld [vmem:[#allocation14 + $0x3c8] sm:$0xff]
        %v4733 = vld [vmem:[#allocation14 + $0x3d0] sm:$0xff]
        %v4734 = vld [vmem:[#allocation14 + $0x3d8] sm:$0xff]
        %v4735 = vld [vmem:[#allocation14 + $0x3e0] sm:$0xff]
        %v4736 = vld [vmem:[#allocation14 + $0x3e8] sm:$0xff]
        %v4737 = vld [vmem:[#allocation14 + $0x3f0] sm:$0xff]
        %v4738 = vld [vmem:[#allocation14 + $0x3f8] sm:$0xff]
        %v4739 = vld [vmem:[#allocation14 + $0x400] sm:$0xff]
        %v4740 = vld [vmem:[#allocation14 + $0x408] sm:$0xff]
        %v4741 = vld [vmem:[#allocation14 + $0x410] sm:$0xff]
        %v4742 = vld [vmem:[#allocation14 + $0x418] sm:$0xff]
        %v4743 = vld [vmem:[#allocation14 + $0x420] sm:$0xff]
        %v4744 = vld [vmem:[#allocation14 + $0x428] sm:$0xff]
        %v4745 = vld [vmem:[#allocation14 + $0x430] sm:$0xff]
        %v4746 = vld [vmem:[#allocation14 + $0x438] sm:$0xff]
        %v4747 = vld [vmem:[#allocation14 + $0x440] sm:$0xff]
        %v4748 = vld [vmem:[#allocation14 + $0x448] sm:$0xff]
        %v4749 = vld [vmem:[#allocation14 + $0x450] sm:$0xff]
        %v4750 = vld [vmem:[#allocation14 + $0x458] sm:$0xff]
        %v4751 = vld [vmem:[#allocation14 + $0x460] sm:$0xff]
        %v4752 = vld [vmem:[#allocation14 + $0x468] sm:$0xff]
        %v4753 = vld [vmem:[#allocation14 + $0x470] sm:$0xff]
        %v4754 = vld [vmem:[#allocation14 + $0x478] sm:$0xff]
        %v4755 = vld [vmem:[#allocation14 + $0x480] sm:$0xff]
        %v4756 = vld [vmem:[#allocation14 + $0x488] sm:$0xff]
        %v4757 = vld [vmem:[#allocation14 + $0x490] sm:$0xff]
        %v4758 = vld [vmem:[#allocation14 + $0x498] sm:$0xff]
        %v4759 = vld [vmem:[#allocation14 + $0x4a0] sm:$0xff]
        %v4760 = vld [vmem:[#allocation14 + $0x4a8] sm:$0xff]
        %v4761 = vld [vmem:[#allocation14 + $0x4b0] sm:$0xff]
        %v4762 = vld [vmem:[#allocation14 + $0x4b8] sm:$0xff]
        %v4763 = vld [vmem:[#allocation14 + $0x4c0] sm:$0xff]
        %v4764 = vld [vmem:[#allocation14 + $0x4c8] sm:$0xff]
        %v4765 = vld [vmem:[#allocation14 + $0x4d0] sm:$0xff]
        %v4766 = vld [vmem:[#allocation14 + $0x4d8] sm:$0xff]
        %v4767 = vld [vmem:[#allocation14 + $0x4e0] sm:$0xff]
        %v4768 = vld [vmem:[#allocation14 + $0x4e8] sm:$0xff]
        %v4769 = vld [vmem:[#allocation14 + $0x4f0] sm:$0xff]
        %v4770 = vld [vmem:[#allocation14 + $0x4f8] sm:$0xff]
        %v4771 = vld [vmem:[#allocation14 + $0x500] sm:$0xff]
        %v4772 = vld [vmem:[#allocation14 + $0x508] sm:$0xff]
        %v4773 = vld [vmem:[#allocation14 + $0x510] sm:$0xff]
        %v4774 = vld [vmem:[#allocation14 + $0x518] sm:$0xff]
        %v4775 = vld [vmem:[#allocation14 + $0x520] sm:$0xff]
        %v4776 = vld [vmem:[#allocation14 + $0x528] sm:$0xff]
        %v4777 = vld [vmem:[#allocation14 + $0x530] sm:$0xff]
        %v4778 = vld [vmem:[#allocation14 + $0x538] sm:$0xff]
        %v4779 = vld [vmem:[#allocation14 + $0x540] sm:$0xff]
        %v4780 = vld [vmem:[#allocation14 + $0x548] sm:$0xff]
        %v4781 = vld [vmem:[#allocation14 + $0x550] sm:$0xff]
        %v4782 = vld [vmem:[#allocation14 + $0x558] sm:$0xff]
        %v4783 = vld [vmem:[#allocation14 + $0x560] sm:$0xff]
        %v4784 = vld [vmem:[#allocation14 + $0x568] sm:$0xff]
        %v4785 = vld [vmem:[#allocation14 + $0x570] sm:$0xff]
        %v4786 = vld [vmem:[#allocation14 + $0x578] sm:$0xff]
        %v4787 = vld [vmem:[#allocation14 + $0x580] sm:$0xff]
        %v4788 = vld [vmem:[#allocation14 + $0x588] sm:$0xff]
        %v4789 = vld [vmem:[#allocation14 + $0x590] sm:$0xff]
        %v4790 = vld [vmem:[#allocation14 + $0x598] sm:$0xff]
        %v4791 = vld [vmem:[#allocation14 + $0x5a0] sm:$0xff]
        %v4792 = vld [vmem:[#allocation14 + $0x5a8] sm:$0xff]
        %v4793 = vld [vmem:[#allocation14 + $0x5b0] sm:$0xff]
        %v4794 = vld [vmem:[#allocation14 + $0x5b8] sm:$0xff]
        %v4795 = vld [vmem:[#allocation14 + $0x5c0] sm:$0xff]
        %v4796 = vld [vmem:[#allocation14 + $0x5c8] sm:$0xff]
        %v4797 = vld [vmem:[#allocation14 + $0x5d0] sm:$0xff]
        %v4798 = vld [vmem:[#allocation14 + $0x5d8] sm:$0xff]
        %v4799 = vld [vmem:[#allocation14 + $0x5e0] sm:$0xff]
        %v4800 = vld [vmem:[#allocation14 + $0x5e8] sm:$0xff]
        %v4801 = vld [vmem:[#allocation14 + $0x5f0] sm:$0xff]
        %v4802 = vld [vmem:[#allocation14 + $0x5f8] sm:$0xff]
        %v4803 = vld [vmem:[#allocation14 + $0x600] sm:$0xff]
        %v4804 = vld [vmem:[#allocation14 + $0x608] sm:$0xff]
        %v4805 = vld [vmem:[#allocation14 + $0x610] sm:$0xff]
        %v4806 = vld [vmem:[#allocation14 + $0x618] sm:$0xff]
        %v4807 = vld [vmem:[#allocation14 + $0x620] sm:$0xff]
        %v4808 = vld [vmem:[#allocation14 + $0x628] sm:$0xff]
        %v4809 = vld [vmem:[#allocation14 + $0x630] sm:$0xff]
        %v4810 = vld [vmem:[#allocation14 + $0x638] sm:$0xff]
        %v4811 = vld [vmem:[#allocation14 + $0x640] sm:$0xff]
        %v4812 = vld [vmem:[#allocation14 + $0x648] sm:$0xff]
        %v4813 = vld [vmem:[#allocation14 + $0x650] sm:$0xff]
        %v4814 = vld [vmem:[#allocation14 + $0x658] sm:$0xff]
        %v4815 = vld [vmem:[#allocation14 + $0x660] sm:$0xff]
        %v4816 = vld [vmem:[#allocation14 + $0x668] sm:$0xff]
        %v4817 = vld [vmem:[#allocation14 + $0x670] sm:$0xff]
        %v4818 = vld [vmem:[#allocation14 + $0x678] sm:$0xff]
        %v4819 = vld [vmem:[#allocation14 + $0x680] sm:$0xff]
        %v4820 = vld [vmem:[#allocation14 + $0x688] sm:$0xff]
        %v4821 = vld [vmem:[#allocation14 + $0x690] sm:$0xff]
        %v4822 = vld [vmem:[#allocation14 + $0x698] sm:$0xff]
        %v4823 = vld [vmem:[#allocation14 + $0x6a0] sm:$0xff]
        %v4824 = vld [vmem:[#allocation14 + $0x6a8] sm:$0xff]
        %v4825 = vld [vmem:[#allocation14 + $0x6b0] sm:$0xff]
        %v4826 = vld [vmem:[#allocation14 + $0x6b8] sm:$0xff]
        %v4827 = vld [vmem:[#allocation14 + $0x6c0] sm:$0xff]
        %v4828 = vld [vmem:[#allocation14 + $0x6c8] sm:$0xff]
        %v4829 = vld [vmem:[#allocation14 + $0x6d0] sm:$0xff]
        %v4830 = vld [vmem:[#allocation14 + $0x6d8] sm:$0xff]
        %v4831 = vld [vmem:[#allocation14 + $0x6e0] sm:$0xff]
        %v4832 = vld [vmem:[#allocation14 + $0x6e8] sm:$0xff]
        %v4833 = vld [vmem:[#allocation14 + $0x6f0] sm:$0xff]
        %v4834 = vld [vmem:[#allocation14 + $0x6f8] sm:$0xff]
        %v4835 = vld [vmem:[#allocation14 + $0x700] sm:$0xff]
        %v4836 = vld [vmem:[#allocation14 + $0x708] sm:$0xff]
        %v4837 = vld [vmem:[#allocation14 + $0x710] sm:$0xff]
        %v4838 = vld [vmem:[#allocation14 + $0x718] sm:$0xff]
        %v4839 = vld [vmem:[#allocation14 + $0x720] sm:$0xff]
        %v4840 = vld [vmem:[#allocation14 + $0x728] sm:$0xff]
        %v4841 = vld [vmem:[#allocation14 + $0x730] sm:$0xff]
        %v4842 = vld [vmem:[#allocation14 + $0x738] sm:$0xff]
        %v4843 = vld [vmem:[#allocation14 + $0x740] sm:$0xff]
        %v4844 = vld [vmem:[#allocation14 + $0x748] sm:$0xff]
        %v4845 = vld [vmem:[#allocation14 + $0x750] sm:$0xff]
        %v4846 = vld [vmem:[#allocation14 + $0x758] sm:$0xff]
        %v4847 = vld [vmem:[#allocation14 + $0x760] sm:$0xff]
        %v4848 = vld [vmem:[#allocation14 + $0x768] sm:$0xff]
        %v4849 = vld [vmem:[#allocation14 + $0x770] sm:$0xff]
        %v4850 = vld [vmem:[#allocation14 + $0x778] sm:$0xff]
        %v4851 = vld [vmem:[#allocation14 + $0x780] sm:$0xff]
        %v4852 = vld [vmem:[#allocation14 + $0x788] sm:$0xff]
        %v4853 = vld [vmem:[#allocation14 + $0x790] sm:$0xff]
        %v4854 = vld [vmem:[#allocation14 + $0x798] sm:$0xff]
        %v4855 = vld [vmem:[#allocation14 + $0x7a0] sm:$0xff]
        %v4856 = vld [vmem:[#allocation14 + $0x7a8] sm:$0xff]
        %v4857 = vld [vmem:[#allocation14 + $0x7b0] sm:$0xff]
        %v4858 = vld [vmem:[#allocation14 + $0x7b8] sm:$0xff]
        %v4859 = vld [vmem:[#allocation14 + $0x7c0] sm:$0xff]
        %v4860 = vld [vmem:[#allocation14 + $0x7c8] sm:$0xff]
        %v4861 = vld [vmem:[#allocation14 + $0x7d0] sm:$0xff]
        %v4862 = vld [vmem:[#allocation14 + $0x7d8] sm:$0xff]
        %v4863 = vld [vmem:[#allocation14 + $0x7e0] sm:$0xff]
        %v4864 = vld [vmem:[#allocation14 + $0x7e8] sm:$0xff]
        %v4865 = vld [vmem:[#allocation14 + $0x7f0] sm:$0xff]
        %v4866 = vld [vmem:[#allocation14 + $0x7f8] sm:$0xff]
        %v4867 = vpack.c.bf16 %v4615, %v4611
        %v4868 = vpack.c.bf16 %v4616, %v4612
        %v4869 = vpack.c.bf16 %v4617, %v4613
        %v4870 = vpack.c.bf16 %v4618, %v4614
        %v4871 = vpack.c.bf16 %v4623, %v4619
        %v4872 = vpack.c.bf16 %v4624, %v4620
        %v4873 = vpack.c.bf16 %v4625, %v4621
        %v4874 = vpack.c.bf16 %v4626, %v4622
        %v4875 = vpack.c.bf16 %v4631, %v4627
        %v4876 = vpack.c.bf16 %v4632, %v4628
        %v4877 = vpack.c.bf16 %v4633, %v4629
        %v4878 = vpack.c.bf16 %v4634, %v4630
        %v4879 = vpack.c.bf16 %v4639, %v4635
        %v4880 = vpack.c.bf16 %v4640, %v4636
        %v4881 = vpack.c.bf16 %v4641, %v4637
        %v4882 = vpack.c.bf16 %v4642, %v4638
        %v4883 = vpack.c.bf16 %v4647, %v4643
        %v4884 = vpack.c.bf16 %v4648, %v4644
        %v4885 = vpack.c.bf16 %v4649, %v4645
        %v4886 = vpack.c.bf16 %v4650, %v4646
        %v4887 = vpack.c.bf16 %v4655, %v4651
        %v4888 = vpack.c.bf16 %v4656, %v4652
        %v4889 = vpack.c.bf16 %v4657, %v4653
        %v4890 = vpack.c.bf16 %v4658, %v4654
        %v4891 = vpack.c.bf16 %v4663, %v4659
        %v4892 = vpack.c.bf16 %v4664, %v4660
        %v4893 = vpack.c.bf16 %v4665, %v4661
        %v4894 = vpack.c.bf16 %v4666, %v4662
        %v4895 = vpack.c.bf16 %v4671, %v4667
        %v4896 = vpack.c.bf16 %v4672, %v4668
        %v4897 = vpack.c.bf16 %v4673, %v4669
        %v4898 = vpack.c.bf16 %v4674, %v4670
        %v4899 = vpack.c.bf16 %v4679, %v4675
        %v4900 = vpack.c.bf16 %v4680, %v4676
        %v4901 = vpack.c.bf16 %v4681, %v4677
        %v4902 = vpack.c.bf16 %v4682, %v4678
        %v4903 = vpack.c.bf16 %v4687, %v4683
        %v4904 = vpack.c.bf16 %v4688, %v4684
        %v4905 = vpack.c.bf16 %v4689, %v4685
        %v4906 = vpack.c.bf16 %v4690, %v4686
        %v4907 = vpack.c.bf16 %v4695, %v4691
        %v4908 = vpack.c.bf16 %v4696, %v4692
        %v4909 = vpack.c.bf16 %v4697, %v4693
        %v4910 = vpack.c.bf16 %v4698, %v4694
        %v4911 = vpack.c.bf16 %v4703, %v4699
        %v4912 = vpack.c.bf16 %v4704, %v4700
        %v4913 = vpack.c.bf16 %v4705, %v4701
        %v4914 = vpack.c.bf16 %v4706, %v4702
        %v4915 = vpack.c.bf16 %v4711, %v4707
        %v4916 = vpack.c.bf16 %v4712, %v4708
        %v4917 = vpack.c.bf16 %v4713, %v4709
        %v4918 = vpack.c.bf16 %v4714, %v4710
        %v4919 = vpack.c.bf16 %v4719, %v4715
        %v4920 = vpack.c.bf16 %v4720, %v4716
        %v4921 = vpack.c.bf16 %v4721, %v4717
        %v4922 = vpack.c.bf16 %v4722, %v4718
        %v4923 = vpack.c.bf16 %v4727, %v4723
        %v4924 = vpack.c.bf16 %v4728, %v4724
        %v4925 = vpack.c.bf16 %v4729, %v4725
        %v4926 = vpack.c.bf16 %v4730, %v4726
        %v4927 = vpack.c.bf16 %v4735, %v4731
        %v4928 = vpack.c.bf16 %v4736, %v4732
        %v4929 = vpack.c.bf16 %v4737, %v4733
        %v4930 = vpack.c.bf16 %v4738, %v4734
        %v4931 = vpack.c.bf16 %v4743, %v4739
        %v4932 = vpack.c.bf16 %v4744, %v4740
        %v4933 = vpack.c.bf16 %v4745, %v4741
        %v4934 = vpack.c.bf16 %v4746, %v4742
        %v4935 = vpack.c.bf16 %v4751, %v4747
        %v4936 = vpack.c.bf16 %v4752, %v4748
        %v4937 = vpack.c.bf16 %v4753, %v4749
        %v4938 = vpack.c.bf16 %v4754, %v4750
        %v4939 = vpack.c.bf16 %v4759, %v4755
        %v4940 = vpack.c.bf16 %v4760, %v4756
        %v4941 = vpack.c.bf16 %v4761, %v4757
        %v4942 = vpack.c.bf16 %v4762, %v4758
        %v4943 = vpack.c.bf16 %v4767, %v4763
        %v4944 = vpack.c.bf16 %v4768, %v4764
        %v4945 = vpack.c.bf16 %v4769, %v4765
        %v4946 = vpack.c.bf16 %v4770, %v4766
        %v4947 = vpack.c.bf16 %v4775, %v4771
        %v4948 = vpack.c.bf16 %v4776, %v4772
        %v4949 = vpack.c.bf16 %v4777, %v4773
        %v4950 = vpack.c.bf16 %v4778, %v4774
        %v4951 = vpack.c.bf16 %v4783, %v4779
        %v4952 = vpack.c.bf16 %v4784, %v4780
        %v4953 = vpack.c.bf16 %v4785, %v4781
        %v4954 = vpack.c.bf16 %v4786, %v4782
        %v4955 = vpack.c.bf16 %v4791, %v4787
        %v4956 = vpack.c.bf16 %v4792, %v4788
        %v4957 = vpack.c.bf16 %v4793, %v4789
        %v4958 = vpack.c.bf16 %v4794, %v4790
        %v4959 = vpack.c.bf16 %v4799, %v4795
        %v4960 = vpack.c.bf16 %v4800, %v4796
        %v4961 = vpack.c.bf16 %v4801, %v4797
        %v4962 = vpack.c.bf16 %v4802, %v4798
        %v4963 = vpack.c.bf16 %v4807, %v4803
        %v4964 = vpack.c.bf16 %v4808, %v4804
        %v4965 = vpack.c.bf16 %v4809, %v4805
        %v4966 = vpack.c.bf16 %v4810, %v4806
        %v4967 = vpack.c.bf16 %v4815, %v4811
        %v4968 = vpack.c.bf16 %v4816, %v4812
        %v4969 = vpack.c.bf16 %v4817, %v4813
        %v4970 = vpack.c.bf16 %v4818, %v4814
        %v4971 = vpack.c.bf16 %v4823, %v4819
        %v4972 = vpack.c.bf16 %v4824, %v4820
        %v4973 = vpack.c.bf16 %v4825, %v4821
        %v4974 = vpack.c.bf16 %v4826, %v4822
        %v4975 = vpack.c.bf16 %v4831, %v4827
        %v4976 = vpack.c.bf16 %v4832, %v4828
        %v4977 = vpack.c.bf16 %v4833, %v4829
        %v4978 = vpack.c.bf16 %v4834, %v4830
        %v4979 = vpack.c.bf16 %v4839, %v4835
        %v4980 = vpack.c.bf16 %v4840, %v4836
        %v4981 = vpack.c.bf16 %v4841, %v4837
        %v4982 = vpack.c.bf16 %v4842, %v4838
        %v4983 = vpack.c.bf16 %v4847, %v4843
        %v4984 = vpack.c.bf16 %v4848, %v4844
        %v4985 = vpack.c.bf16 %v4849, %v4845
        %v4986 = vpack.c.bf16 %v4850, %v4846
        %v4987 = vpack.c.bf16 %v4855, %v4851
        %v4988 = vpack.c.bf16 %v4856, %v4852
        %v4989 = vpack.c.bf16 %v4857, %v4853
        %v4990 = vpack.c.bf16 %v4858, %v4854
        %v4991 = vpack.c.bf16 %v4863, %v4859
        %v4992 = vpack.c.bf16 %v4864, %v4860
        %v4993 = vpack.c.bf16 %v4865, %v4861
        %v4994 = vpack.c.bf16 %v4866, %v4862
        %v4995 = vld [vmem:[#allocation16] sm:$0xf]
        %v4997 = vperm.slane %v4995, 0
        %v4998 = vperm.slane %v4995, 1
        %v4999 = vperm.slane %v4995, 2
        %v5000 = vperm.slane %v4995, 3
        %5005 = vmatpush.bf16.msra.mxu0 %v4895
        %5006 = vmatpush.bf16.msra.mxu0 %v4891
        %5007 = vmatpush.bf16.msra.mxu0 %v4887
        %5008 = vmatpush.bf16.msra.mxu0 %v4883
        %5009 = vmatpush.bf16.msra.mxu0 %v4879
        %5010 = vmatpush.bf16.msra.mxu0 %v4875
        %5011 = vmatpush.bf16.msra.mxu0 %v4871
        %5012 = vmatpush.bf16.msra.mxu0 %v4867
        %5013 = vmatmul.bf16.gmra.mxu0 %v4531
        %v5014 = vpop.f32.mrf.mxu0
        %v5015 = vadd.f32 %v4997, %v5014
        %v5016 = vpop.f32.mrf.mxu0
        %v5017 = vadd.f32 %v4997, %v5016
        %5018 = vmatmul.bf16.gmra.mxu0 %v4532
        %v5019 = vpop.f32.mrf.mxu0
        %v5020 = vadd.f32 %v4997, %v5019
        %v5021 = vpop.f32.mrf.mxu0
        %v5022 = vadd.f32 %v4997, %v5021
        %5023 = vmatmul.bf16.gmra.mxu0 %v4533
        %v5024 = vpop.f32.mrf.mxu0
        %v5025 = vadd.f32 %v4997, %v5024
        %v5026 = vpop.f32.mrf.mxu0
        %v5027 = vadd.f32 %v4997, %v5026
        %5028 = vmatmul.bf16.gmra.mxu0 %v4534
        %v5029 = vpop.f32.mrf.mxu0
        %v5030 = vadd.f32 %v4997, %v5029
        %v5031 = vpop.f32.mrf.mxu0
        %v5032 = vadd.f32 %v4997, %v5031
        %5033 = vdwg.mxu0
        %5034 = vmatpush.bf16.msra.mxu0 %v4927
        %5035 = vmatpush.bf16.msra.mxu0 %v4923
        %5036 = vmatpush.bf16.msra.mxu0 %v4919
        %5037 = vmatpush.bf16.msra.mxu0 %v4915
        %5038 = vmatpush.bf16.msra.mxu0 %v4911
        %5039 = vmatpush.bf16.msra.mxu0 %v4907
        %5040 = vmatpush.bf16.msra.mxu0 %v4903
        %5041 = vmatpush.bf16.msra.mxu0 %v4899
        %5042 = vmatmul.bf16.gmra.mxu0 %v4555
        %v5043 = vpop.f32.mrf.mxu0
        %v5044 = vadd.f32 %v5015, %v5043
        %v5045 = vpop.f32.mrf.mxu0
        %v5046 = vadd.f32 %v5017, %v5045
        %5047 = vmatmul.bf16.gmra.mxu0 %v4556
        %v5048 = vpop.f32.mrf.mxu0
        %v5049 = vadd.f32 %v5020, %v5048
        %v5050 = vpop.f32.mrf.mxu0
        %v5051 = vadd.f32 %v5022, %v5050
        %5052 = vmatmul.bf16.gmra.mxu0 %v4557
        %v5053 = vpop.f32.mrf.mxu0
        %v5054 = vadd.f32 %v5025, %v5053
        %v5055 = vpop.f32.mrf.mxu0
        %v5056 = vadd.f32 %v5027, %v5055
        %5057 = vmatmul.bf16.gmra.mxu0 %v4558
        %v5058 = vpop.f32.mrf.mxu0
        %v5059 = vadd.f32 %v5030, %v5058
        %v5060 = vpop.f32.mrf.mxu0
        %v5061 = vadd.f32 %v5032, %v5060
        %5062 = vdwg.mxu0
        %5063 = vmatpush.bf16.msra.mxu0 %v4959
        %5064 = vmatpush.bf16.msra.mxu0 %v4955
        %5065 = vmatpush.bf16.msra.mxu0 %v4951
        %5066 = vmatpush.bf16.msra.mxu0 %v4947
        %5067 = vmatpush.bf16.msra.mxu0 %v4943
        %5068 = vmatpush.bf16.msra.mxu0 %v4939
        %5069 = vmatpush.bf16.msra.mxu0 %v4935
        %5070 = vmatpush.bf16.msra.mxu0 %v4931
        %5071 = vmatmul.bf16.gmra.mxu0 %v4579
        %v5072 = vpop.f32.mrf.mxu0
        %v5073 = vadd.f32 %v5044, %v5072
        %v5074 = vpop.f32.mrf.mxu0
        %v5075 = vadd.f32 %v5046, %v5074
        %5076 = vmatmul.bf16.gmra.mxu0 %v4580
        %v5077 = vpop.f32.mrf.mxu0
        %v5078 = vadd.f32 %v5049, %v5077
        %v5079 = vpop.f32.mrf.mxu0
        %v5080 = vadd.f32 %v5051, %v5079
        %5081 = vmatmul.bf16.gmra.mxu0 %v4581
        %v5082 = vpop.f32.mrf.mxu0
        %v5083 = vadd.f32 %v5054, %v5082
        %v5084 = vpop.f32.mrf.mxu0
        %v5085 = vadd.f32 %v5056, %v5084
        %5086 = vmatmul.bf16.gmra.mxu0 %v4582
        %v5087 = vpop.f32.mrf.mxu0
        %v5088 = vadd.f32 %v5059, %v5087
        %v5089 = vpop.f32.mrf.mxu0
        %v5090 = vadd.f32 %v5061, %v5089
        %5091 = vdwg.mxu0
        %5092 = vmatpush.bf16.msra.mxu0 %v4991
        %5093 = vmatpush.bf16.msra.mxu0 %v4987
        %5094 = vmatpush.bf16.msra.mxu0 %v4983
        %5095 = vmatpush.bf16.msra.mxu0 %v4979
        %5096 = vmatpush.bf16.msra.mxu0 %v4975
        %5097 = vmatpush.bf16.msra.mxu0 %v4971
        %5098 = vmatpush.bf16.msra.mxu0 %v4967
        %5099 = vmatpush.bf16.msra.mxu0 %v4963
        %5100 = vmatmul.bf16.gmra.mxu0 %v4603
        %v5101 = vpop.f32.mrf.mxu0
        %v5102 = vadd.f32 %v5073, %v5101
        %v5103 = vpop.f32.mrf.mxu0
        %v5104 = vadd.f32 %v5075, %v5103
        %5105 = vmatmul.bf16.gmra.mxu0 %v4604
        %v5106 = vpop.f32.mrf.mxu0
        %v5107 = vadd.f32 %v5078, %v5106
        %v5108 = vpop.f32.mrf.mxu0
        %v5109 = vadd.f32 %v5080, %v5108
        %5110 = vmatmul.bf16.gmra.mxu0 %v4605
        %v5111 = vpop.f32.mrf.mxu0
        %v5112 = vadd.f32 %v5083, %v5111
        %v5113 = vpop.f32.mrf.mxu0
        %v5114 = vadd.f32 %v5085, %v5113
        %5115 = vmatmul.bf16.gmra.mxu0 %v4606
        %v5116 = vpop.f32.mrf.mxu0
        %v5117 = vadd.f32 %v5088, %v5116
        %v5118 = vpop.f32.mrf.mxu0
        %v5119 = vadd.f32 %v5090, %v5118
        %5120 = vdwg.mxu0
        %5121 = vmatpush.bf16.msra.mxu0 %v4896
        %5122 = vmatpush.bf16.msra.mxu0 %v4892
        %5123 = vmatpush.bf16.msra.mxu0 %v4888
        %5124 = vmatpush.bf16.msra.mxu0 %v4884
        %5125 = vmatpush.bf16.msra.mxu0 %v4880
        %5126 = vmatpush.bf16.msra.mxu0 %v4876
        %5127 = vmatpush.bf16.msra.mxu0 %v4872
        %5128 = vmatpush.bf16.msra.mxu0 %v4868
        %5129 = vmatmul.bf16.gmra.mxu0 %v4531
        %v5130 = vpop.f32.mrf.mxu0
        %v5131 = vadd.f32 %v4998, %v5130
        %v5132 = vpop.f32.mrf.mxu0
        %v5133 = vadd.f32 %v4998, %v5132
        %5134 = vmatmul.bf16.gmra.mxu0 %v4532
        %v5135 = vpop.f32.mrf.mxu0
        %v5136 = vadd.f32 %v4998, %v5135
        %v5137 = vpop.f32.mrf.mxu0
        %v5138 = vadd.f32 %v4998, %v5137
        %5139 = vmatmul.bf16.gmra.mxu0 %v4533
        %v5140 = vpop.f32.mrf.mxu0
        %v5141 = vadd.f32 %v4998, %v5140
        %v5142 = vpop.f32.mrf.mxu0
        %v5143 = vadd.f32 %v4998, %v5142
        %5144 = vmatmul.bf16.gmra.mxu0 %v4534
        %v5145 = vpop.f32.mrf.mxu0
        %v5146 = vadd.f32 %v4998, %v5145
        %v5147 = vpop.f32.mrf.mxu0
        %v5148 = vadd.f32 %v4998, %v5147
        %5149 = vdwg.mxu0
        %5150 = vmatpush.bf16.msra.mxu0 %v4928
        %5151 = vmatpush.bf16.msra.mxu0 %v4924
        %5152 = vmatpush.bf16.msra.mxu0 %v4920
        %5153 = vmatpush.bf16.msra.mxu0 %v4916
        %5154 = vmatpush.bf16.msra.mxu0 %v4912
        %5155 = vmatpush.bf16.msra.mxu0 %v4908
        %5156 = vmatpush.bf16.msra.mxu0 %v4904
        %5157 = vmatpush.bf16.msra.mxu0 %v4900
        %5158 = vmatmul.bf16.gmra.mxu0 %v4555
        %v5159 = vpop.f32.mrf.mxu0
        %v5160 = vadd.f32 %v5131, %v5159
        %v5161 = vpop.f32.mrf.mxu0
        %v5162 = vadd.f32 %v5133, %v5161
        %5163 = vmatmul.bf16.gmra.mxu0 %v4556
        %v5164 = vpop.f32.mrf.mxu0
        %v5165 = vadd.f32 %v5136, %v5164
        %v5166 = vpop.f32.mrf.mxu0
        %v5167 = vadd.f32 %v5138, %v5166
        %5168 = vmatmul.bf16.gmra.mxu0 %v4557
        %v5169 = vpop.f32.mrf.mxu0
        %v5170 = vadd.f32 %v5141, %v5169
        %v5171 = vpop.f32.mrf.mxu0
        %v5172 = vadd.f32 %v5143, %v5171
        %5173 = vmatmul.bf16.gmra.mxu0 %v4558
        %v5174 = vpop.f32.mrf.mxu0
        %v5175 = vadd.f32 %v5146, %v5174
        %v5176 = vpop.f32.mrf.mxu0
        %v5177 = vadd.f32 %v5148, %v5176
        %5178 = vdwg.mxu0
        %5179 = vmatpush.bf16.msra.mxu0 %v4960
        %5180 = vmatpush.bf16.msra.mxu0 %v4956
        %5181 = vmatpush.bf16.msra.mxu0 %v4952
        %5182 = vmatpush.bf16.msra.mxu0 %v4948
        %5183 = vmatpush.bf16.msra.mxu0 %v4944
        %5184 = vmatpush.bf16.msra.mxu0 %v4940
        %5185 = vmatpush.bf16.msra.mxu0 %v4936
        %5186 = vmatpush.bf16.msra.mxu0 %v4932
        %5187 = vmatmul.bf16.gmra.mxu0 %v4579
        %v5188 = vpop.f32.mrf.mxu0
        %v5189 = vadd.f32 %v5160, %v5188
        %v5190 = vpop.f32.mrf.mxu0
        %v5191 = vadd.f32 %v5162, %v5190
        %5192 = vmatmul.bf16.gmra.mxu0 %v4580
        %v5193 = vpop.f32.mrf.mxu0
        %v5194 = vadd.f32 %v5165, %v5193
        %v5195 = vpop.f32.mrf.mxu0
        %v5196 = vadd.f32 %v5167, %v5195
        %5197 = vmatmul.bf16.gmra.mxu0 %v4581
        %v5198 = vpop.f32.mrf.mxu0
        %v5199 = vadd.f32 %v5170, %v5198
        %v5200 = vpop.f32.mrf.mxu0
        %v5201 = vadd.f32 %v5172, %v5200
        %5202 = vmatmul.bf16.gmra.mxu0 %v4582
        %v5203 = vpop.f32.mrf.mxu0
        %v5204 = vadd.f32 %v5175, %v5203
        %v5205 = vpop.f32.mrf.mxu0
        %v5206 = vadd.f32 %v5177, %v5205
        %5207 = vdwg.mxu0
        %5208 = vmatpush.bf16.msra.mxu0 %v4992
        %5209 = vmatpush.bf16.msra.mxu0 %v4988
        %5210 = vmatpush.bf16.msra.mxu0 %v4984
        %5211 = vmatpush.bf16.msra.mxu0 %v4980
        %5212 = vmatpush.bf16.msra.mxu0 %v4976
        %5213 = vmatpush.bf16.msra.mxu0 %v4972
        %5214 = vmatpush.bf16.msra.mxu0 %v4968
        %5215 = vmatpush.bf16.msra.mxu0 %v4964
        %5216 = vmatmul.bf16.gmra.mxu0 %v4603
        %v5217 = vpop.f32.mrf.mxu0
        %v5218 = vadd.f32 %v5189, %v5217
        %v5219 = vpop.f32.mrf.mxu0
        %v5220 = vadd.f32 %v5191, %v5219
        %5221 = vmatmul.bf16.gmra.mxu0 %v4604
        %v5222 = vpop.f32.mrf.mxu0
        %v5223 = vadd.f32 %v5194, %v5222
        %v5224 = vpop.f32.mrf.mxu0
        %v5225 = vadd.f32 %v5196, %v5224
        %5226 = vmatmul.bf16.gmra.mxu0 %v4605
        %v5227 = vpop.f32.mrf.mxu0
        %v5228 = vadd.f32 %v5199, %v5227
        %v5229 = vpop.f32.mrf.mxu0
        %v5230 = vadd.f32 %v5201, %v5229
        %5231 = vmatmul.bf16.gmra.mxu0 %v4606
        %v5232 = vpop.f32.mrf.mxu0
        %v5233 = vadd.f32 %v5204, %v5232
        %v5234 = vpop.f32.mrf.mxu0
        %v5235 = vadd.f32 %v5206, %v5234
        %5236 = vdwg.mxu0
        %5237 = vmatpush.bf16.msra.mxu0 %v4897
        %5238 = vmatpush.bf16.msra.mxu0 %v4893
        %5239 = vmatpush.bf16.msra.mxu0 %v4889
        %5240 = vmatpush.bf16.msra.mxu0 %v4885
        %5241 = vmatpush.bf16.msra.mxu0 %v4881
        %5242 = vmatpush.bf16.msra.mxu0 %v4877
        %5243 = vmatpush.bf16.msra.mxu0 %v4873
        %5244 = vmatpush.bf16.msra.mxu0 %v4869
        %5245 = vmatmul.bf16.gmra.mxu0 %v4531
        %v5246 = vpop.f32.mrf.mxu0
        %v5247 = vadd.f32 %v4999, %v5246
        %v5248 = vpop.f32.mrf.mxu0
        %v5249 = vadd.f32 %v4999, %v5248
        %5250 = vmatmul.bf16.gmra.mxu0 %v4532
        %v5251 = vpop.f32.mrf.mxu0
        %v5252 = vadd.f32 %v4999, %v5251
        %v5253 = vpop.f32.mrf.mxu0
        %v5254 = vadd.f32 %v4999, %v5253
        %5255 = vmatmul.bf16.gmra.mxu0 %v4533
        %v5256 = vpop.f32.mrf.mxu0
        %v5257 = vadd.f32 %v4999, %v5256
        %v5258 = vpop.f32.mrf.mxu0
        %v5259 = vadd.f32 %v4999, %v5258
        %5260 = vmatmul.bf16.gmra.mxu0 %v4534
        %v5261 = vpop.f32.mrf.mxu0
        %v5262 = vadd.f32 %v4999, %v5261
        %v5263 = vpop.f32.mrf.mxu0
        %v5264 = vadd.f32 %v4999, %v5263
        %5265 = vdwg.mxu0
        %5266 = vmatpush.bf16.msra.mxu0 %v4929
        %5267 = vmatpush.bf16.msra.mxu0 %v4925
        %5268 = vmatpush.bf16.msra.mxu0 %v4921
        %5269 = vmatpush.bf16.msra.mxu0 %v4917
        %5270 = vmatpush.bf16.msra.mxu0 %v4913
        %5271 = vmatpush.bf16.msra.mxu0 %v4909
        %5272 = vmatpush.bf16.msra.mxu0 %v4905
        %5273 = vmatpush.bf16.msra.mxu0 %v4901
        %5274 = vmatmul.bf16.gmra.mxu0 %v4555
        %v5275 = vpop.f32.mrf.mxu0
        %v5276 = vadd.f32 %v5247, %v5275
        %v5277 = vpop.f32.mrf.mxu0
        %v5278 = vadd.f32 %v5249, %v5277
        %5279 = vmatmul.bf16.gmra.mxu0 %v4556
        %v5280 = vpop.f32.mrf.mxu0
        %v5281 = vadd.f32 %v5252, %v5280
        %v5282 = vpop.f32.mrf.mxu0
        %v5283 = vadd.f32 %v5254, %v5282
        %5284 = vmatmul.bf16.gmra.mxu0 %v4557
        %v5285 = vpop.f32.mrf.mxu0
        %v5286 = vadd.f32 %v5257, %v5285
        %v5287 = vpop.f32.mrf.mxu0
        %v5288 = vadd.f32 %v5259, %v5287
        %5289 = vmatmul.bf16.gmra.mxu0 %v4558
        %v5290 = vpop.f32.mrf.mxu0
        %v5291 = vadd.f32 %v5262, %v5290
        %v5292 = vpop.f32.mrf.mxu0
        %v5293 = vadd.f32 %v5264, %v5292
        %5294 = vdwg.mxu0
        %5295 = vmatpush.bf16.msra.mxu0 %v4961
        %5296 = vmatpush.bf16.msra.mxu0 %v4957
        %5297 = vmatpush.bf16.msra.mxu0 %v4953
        %5298 = vmatpush.bf16.msra.mxu0 %v4949
        %5299 = vmatpush.bf16.msra.mxu0 %v4945
        %5300 = vmatpush.bf16.msra.mxu0 %v4941
        %5301 = vmatpush.bf16.msra.mxu0 %v4937
        %5302 = vmatpush.bf16.msra.mxu0 %v4933
        %5303 = vmatmul.bf16.gmra.mxu0 %v4579
        %v5304 = vpop.f32.mrf.mxu0
        %v5305 = vadd.f32 %v5276, %v5304
        %v5306 = vpop.f32.mrf.mxu0
        %v5307 = vadd.f32 %v5278, %v5306
        %5308 = vmatmul.bf16.gmra.mxu0 %v4580
        %v5309 = vpop.f32.mrf.mxu0
        %v5310 = vadd.f32 %v5281, %v5309
        %v5311 = vpop.f32.mrf.mxu0
        %v5312 = vadd.f32 %v5283, %v5311
        %5313 = vmatmul.bf16.gmra.mxu0 %v4581
        %v5314 = vpop.f32.mrf.mxu0
        %v5315 = vadd.f32 %v5286, %v5314
        %v5316 = vpop.f32.mrf.mxu0
        %v5317 = vadd.f32 %v5288, %v5316
        %5318 = vmatmul.bf16.gmra.mxu0 %v4582
        %v5319 = vpop.f32.mrf.mxu0
        %v5320 = vadd.f32 %v5291, %v5319
        %v5321 = vpop.f32.mrf.mxu0
        %v5322 = vadd.f32 %v5293, %v5321
        %5323 = vdwg.mxu0
        %5324 = vmatpush.bf16.msra.mxu0 %v4993
        %5325 = vmatpush.bf16.msra.mxu0 %v4989
        %5326 = vmatpush.bf16.msra.mxu0 %v4985
        %5327 = vmatpush.bf16.msra.mxu0 %v4981
        %5328 = vmatpush.bf16.msra.mxu0 %v4977
        %5329 = vmatpush.bf16.msra.mxu0 %v4973
        %5330 = vmatpush.bf16.msra.mxu0 %v4969
        %5331 = vmatpush.bf16.msra.mxu0 %v4965
        %5332 = vmatmul.bf16.gmra.mxu0 %v4603
        %v5333 = vpop.f32.mrf.mxu0
        %v5334 = vadd.f32 %v5305, %v5333
        %v5335 = vpop.f32.mrf.mxu0
        %v5336 = vadd.f32 %v5307, %v5335
        %5337 = vmatmul.bf16.gmra.mxu0 %v4604
        %v5338 = vpop.f32.mrf.mxu0
        %v5339 = vadd.f32 %v5310, %v5338
        %v5340 = vpop.f32.mrf.mxu0
        %v5341 = vadd.f32 %v5312, %v5340
        %5342 = vmatmul.bf16.gmra.mxu0 %v4605
        %v5343 = vpop.f32.mrf.mxu0
        %v5344 = vadd.f32 %v5315, %v5343
        %v5345 = vpop.f32.mrf.mxu0
        %v5346 = vadd.f32 %v5317, %v5345
        %5347 = vmatmul.bf16.gmra.mxu0 %v4606
        %v5348 = vpop.f32.mrf.mxu0
        %v5349 = vadd.f32 %v5320, %v5348
        %v5350 = vpop.f32.mrf.mxu0
        %v5351 = vadd.f32 %v5322, %v5350
        %5352 = vdwg.mxu0
        %5353 = vmatpush.bf16.msra.mxu0 %v4898
        %5354 = vmatpush.bf16.msra.mxu0 %v4894
        %5355 = vmatpush.bf16.msra.mxu0 %v4890
        %5356 = vmatpush.bf16.msra.mxu0 %v4886
        %5357 = vmatpush.bf16.msra.mxu0 %v4882
        %5358 = vmatpush.bf16.msra.mxu0 %v4878
        %5359 = vmatpush.bf16.msra.mxu0 %v4874
        %5360 = vmatpush.bf16.msra.mxu0 %v4870
        %5361 = vmatmul.bf16.gmra.mxu0 %v4531
        %v5362 = vpop.f32.mrf.mxu0
        %v5363 = vadd.f32 %v5000, %v5362
        %v5364 = vpop.f32.mrf.mxu0
        %v5365 = vadd.f32 %v5000, %v5364
        %5366 = vmatmul.bf16.gmra.mxu0 %v4532
        %v5367 = vpop.f32.mrf.mxu0
        %v5368 = vadd.f32 %v5000, %v5367
        %v5369 = vpop.f32.mrf.mxu0
        %v5370 = vadd.f32 %v5000, %v5369
        %5371 = vmatmul.bf16.gmra.mxu0 %v4533
        %v5372 = vpop.f32.mrf.mxu0
        %v5373 = vadd.f32 %v5000, %v5372
        %v5374 = vpop.f32.mrf.mxu0
        %v5375 = vadd.f32 %v5000, %v5374
        %5376 = vmatmul.bf16.gmra.mxu0 %v4534
        %v5377 = vpop.f32.mrf.mxu0
        %v5378 = vadd.f32 %v5000, %v5377
        %v5379 = vpop.f32.mrf.mxu0
        %v5380 = vadd.f32 %v5000, %v5379
        %5381 = vdwg.mxu0
        %5382 = vmatpush.bf16.msra.mxu0 %v4930
        %5383 = vmatpush.bf16.msra.mxu0 %v4926
        %5384 = vmatpush.bf16.msra.mxu0 %v4922
        %5385 = vmatpush.bf16.msra.mxu0 %v4918
        %5386 = vmatpush.bf16.msra.mxu0 %v4914
        %5387 = vmatpush.bf16.msra.mxu0 %v4910
        %5388 = vmatpush.bf16.msra.mxu0 %v4906
        %5389 = vmatpush.bf16.msra.mxu0 %v4902
        %5390 = vmatmul.bf16.gmra.mxu0 %v4555
        %v5391 = vpop.f32.mrf.mxu0
        %v5392 = vadd.f32 %v5363, %v5391
        %v5393 = vpop.f32.mrf.mxu0
        %v5394 = vadd.f32 %v5365, %v5393
        %5395 = vmatmul.bf16.gmra.mxu0 %v4556
        %v5396 = vpop.f32.mrf.mxu0
        %v5397 = vadd.f32 %v5368, %v5396
        %v5398 = vpop.f32.mrf.mxu0
        %v5399 = vadd.f32 %v5370, %v5398
        %5400 = vmatmul.bf16.gmra.mxu0 %v4557
        %v5401 = vpop.f32.mrf.mxu0
        %v5402 = vadd.f32 %v5373, %v5401
        %v5403 = vpop.f32.mrf.mxu0
        %v5404 = vadd.f32 %v5375, %v5403
        %5405 = vmatmul.bf16.gmra.mxu0 %v4558
        %v5406 = vpop.f32.mrf.mxu0
        %v5407 = vadd.f32 %v5378, %v5406
        %v5408 = vpop.f32.mrf.mxu0
        %v5409 = vadd.f32 %v5380, %v5408
        %5410 = vdwg.mxu0
        %5411 = vmatpush.bf16.msra.mxu0 %v4962
        %5412 = vmatpush.bf16.msra.mxu0 %v4958
        %5413 = vmatpush.bf16.msra.mxu0 %v4954
        %5414 = vmatpush.bf16.msra.mxu0 %v4950
        %5415 = vmatpush.bf16.msra.mxu0 %v4946
        %5416 = vmatpush.bf16.msra.mxu0 %v4942
        %5417 = vmatpush.bf16.msra.mxu0 %v4938
        %5418 = vmatpush.bf16.msra.mxu0 %v4934
        %5419 = vmatmul.bf16.gmra.mxu0 %v4579
        %v5420 = vpop.f32.mrf.mxu0
        %v5421 = vadd.f32 %v5392, %v5420
        %v5422 = vpop.f32.mrf.mxu0
        %v5423 = vadd.f32 %v5394, %v5422
        %5424 = vmatmul.bf16.gmra.mxu0 %v4580
        %v5425 = vpop.f32.mrf.mxu0
        %v5426 = vadd.f32 %v5397, %v5425
        %v5427 = vpop.f32.mrf.mxu0
        %v5428 = vadd.f32 %v5399, %v5427
        %5429 = vmatmul.bf16.gmra.mxu0 %v4581
        %v5430 = vpop.f32.mrf.mxu0
        %v5431 = vadd.f32 %v5402, %v5430
        %v5432 = vpop.f32.mrf.mxu0
        %v5433 = vadd.f32 %v5404, %v5432
        %5434 = vmatmul.bf16.gmra.mxu0 %v4582
        %v5435 = vpop.f32.mrf.mxu0
        %v5436 = vadd.f32 %v5407, %v5435
        %v5437 = vpop.f32.mrf.mxu0
        %v5438 = vadd.f32 %v5409, %v5437
        %5439 = vdwg.mxu0
        %5440 = vmatpush.bf16.msra.mxu0 %v4994
        %5441 = vmatpush.bf16.msra.mxu0 %v4990
        %5442 = vmatpush.bf16.msra.mxu0 %v4986
        %5443 = vmatpush.bf16.msra.mxu0 %v4982
        %5444 = vmatpush.bf16.msra.mxu0 %v4978
        %5445 = vmatpush.bf16.msra.mxu0 %v4974
        %5446 = vmatpush.bf16.msra.mxu0 %v4970
        %5447 = vmatpush.bf16.msra.mxu0 %v4966
        %5448 = vmatmul.bf16.gmra.mxu0 %v4603
        %v5449 = vpop.f32.mrf.mxu0
        %v5450 = vadd.f32 %v5421, %v5449
        %v5451 = vpop.f32.mrf.mxu0
        %v5452 = vadd.f32 %v5423, %v5451
        %5453 = vmatmul.bf16.gmra.mxu0 %v4604
        %v5454 = vpop.f32.mrf.mxu0
        %v5455 = vadd.f32 %v5426, %v5454
        %v5456 = vpop.f32.mrf.mxu0
        %v5457 = vadd.f32 %v5428, %v5456
        %5458 = vmatmul.bf16.gmra.mxu0 %v4605
        %v5459 = vpop.f32.mrf.mxu0
        %v5460 = vadd.f32 %v5431, %v5459
        %v5461 = vpop.f32.mrf.mxu0
        %v5462 = vadd.f32 %v5433, %v5461
        %5463 = vmatmul.bf16.gmra.mxu0 %v4606
        %v5464 = vpop.f32.mrf.mxu0
        %v5465 = vadd.f32 %v5436, %v5464
        %v5466 = vpop.f32.mrf.mxu0
        %v5467 = vadd.f32 %v5438, %v5466
        %5468 = vdwg.mxu0
        %5469 = vst [vmem:[%s506] sm:$0xff] %v5102
        %5470 = vst [vmem:[%s506 + $0x8] sm:$0xff] %v5218
        %5471 = vst [vmem:[%s506 + $0x10] sm:$0xff] %v5334
        %5472 = vst [vmem:[%s506 + $0x18] sm:$0xff] %v5450
        %5473 = vst [vmem:[%s506 + $0x20] sm:$0xff] %v5104
        %5474 = vst [vmem:[%s506 + $0x28] sm:$0xff] %v5220
        %5475 = vst [vmem:[%s506 + $0x30] sm:$0xff] %v5336
        %5476 = vst [vmem:[%s506 + $0x38] sm:$0xff] %v5452
        %5477 = vst [vmem:[%s506 + $0x40] sm:$0xff] %v5107
        %5478 = vst [vmem:[%s506 + $0x48] sm:$0xff] %v5223
        %5479 = vst [vmem:[%s506 + $0x50] sm:$0xff] %v5339
        %5480 = vst [vmem:[%s506 + $0x58] sm:$0xff] %v5455
        %5481 = vst [vmem:[%s506 + $0x60] sm:$0xff] %v5109
        %5482 = vst [vmem:[%s506 + $0x68] sm:$0xff] %v5225
        %5483 = vst [vmem:[%s506 + $0x70] sm:$0xff] %v5341
        %5484 = vst [vmem:[%s506 + $0x78] sm:$0xff] %v5457
        %5485 = vst [vmem:[%s506 + $0x80] sm:$0xff] %v5112
        %5486 = vst [vmem:[%s506 + $0x88] sm:$0xff] %v5228
        %5487 = vst [vmem:[%s506 + $0x90] sm:$0xff] %v5344
        %5488 = vst [vmem:[%s506 + $0x98] sm:$0xff] %v5460
        %5489 = vst [vmem:[%s506 + $0xa0] sm:$0xff] %v5114
        %5490 = vst [vmem:[%s506 + $0xa8] sm:$0xff] %v5230
        %5491 = vst [vmem:[%s506 + $0xb0] sm:$0xff] %v5346
        %5492 = vst [vmem:[%s506 + $0xb8] sm:$0xff] %v5462
        %5493 = vst [vmem:[%s506 + $0xc0] sm:$0xff] %v5117
        %5494 = vst [vmem:[%s506 + $0xc8] sm:$0xff] %v5233
        %5495 = vst [vmem:[%s506 + $0xd0] sm:$0xff] %v5349
        %5496 = vst [vmem:[%s506 + $0xd8] sm:$0xff] %v5465
        %5497 = vst [vmem:[%s506 + $0xe0] sm:$0xff] %v5119
        %5498 = vst [vmem:[%s506 + $0xe8] sm:$0xff] %v5235
        %5499 = vst [vmem:[%s506 + $0xf0] sm:$0xff] %v5351
        %5500 = vst [vmem:[%s506 + $0xf8] sm:$0xff] %v5467
        %s5501 = sand.u32 %s254, 1
        %s5502 = scalar_lea.sflag [#allocation4], %s5501
        %s5503 = sand.u32 %s254, 1
        %s5504 = smul.addr %s5503, 256
        %s5505 = scalar_lea.vmem [#allocation17], %s5504
        // Predicated region
        $region97: #{multi_head_attention.1} parent=59 // pred_check
          %p5506 = pneg %p264
        $region98: #{multi_head_attention.1} parent=59 // pred_check_branch
          %5508 = sbr.rel (%p5506) target = $region100
        $region99: #{multi_head_attention.1} parent=59 // pred_region
          %s5509 = smul.u32 8, %s31
          %5511 = vsyncadd %s5502, 0
          %s5512 = smul.addr %s5509, 4
          %s5513 = smul.addr %s5512, 8
          %s5514 = scalar_lea.hbm %s10, %s5513
          %s5515 = sshll.u32 %s5505, 4
          %s5516 = int_to_ptr.vmem [resolvable:$true] %s5515
          %s5517 = sshll.u32 %s5514, 4
          %s5518 = int_to_ptr.hbm [resolvable:$true] %s5517
          %5523 = dma.vmem_to_hbm [thread:$0]  %s5516, 4096, %s5518, %s5502, 512, 512, 32
        $region100: #{multi_head_attention.1} parent=59 // pred_fallthru
          _
      $region60: #{multi_head_attention.1} parent=5 // pred_fallthru
        _
      %p5524 = scmp.le.s32.totalorder 2, %s26
      // Predicated region
      $region101: #{multi_head_attention.1} parent=5 // pred_check
        %p5525 = pneg %p5524
      $region102: #{multi_head_attention.1} parent=5 // pred_check_branch
        %5527 = sbr.rel (%p5525) target = $region104
      $region103: #{multi_head_attention.1} parent=5 // pred_region
        %s5528 = ssub.s32 %s26, 2
        // Predicated region
        $region105: #{multi_head_attention.1} parent=103 // pred_check
          %p5529 = pneg %p270
        $region106: #{multi_head_attention.1} parent=103 // pred_check_branch
          %5531 = sbr.rel (%p5529) target = $region108
        $region107: #{multi_head_attention.1} parent=103 // pred_region
          %s5532 = sand.u32 %s255, 1
          %s5533 = scalar_lea.sflag [#allocation4], %s5532
          %s5534 = sand.u32 %s255, 1
          %s5535 = smul.addr %s5534, 256
          %s5536 = scalar_lea.vmem [#allocation17], %s5535
          %5538 = dma.done %s5533, 4096
        $region108: #{multi_head_attention.1} parent=103 // pred_fallthru
          _
      $region104: #{multi_head_attention.1} parent=5 // pred_fallthru
        _
    $region6: #{multi_head_attention.1} parent=1 // loop_footer
      %s30 = sadd.s32 1, %s26
    $region7: #{multi_head_attention.1} parent=1 // loop_footer_branch
      %25 = sbr.rel target = $region3
    $region8: #{multi_head_attention.1} parent=1 // loop_exit
      _
    %5539 = vsyncpa [#allocation3], 1
    %s5540 = scalar_lea.sflag [#allocation3], 1
    %5541 = vsyncpa %s5540, 1
    %5542 = vsyncpa [#allocation6], 1
    %5543 = vsyncpa [#allocation9], 1
    %5544 = vsyncpa [#allocation12], 1
    %5545 = vsyncpa [#allocation15], 1
    %5546 = vsyncpa [#allocation4], 1
    %s5547 = scalar_lea.sflag [#allocation4], 1
    %5548 = vsyncpa %s5547, 1

</llo_original>
